<compile_context>
chip_gen: v7x
topology: tpu7x:2x2x1
jax: 0.10.0
libtpu: 0.0.40
codegen_flags: <defaults>
</compile_context>

<pallas_src>
import functools

import jax
import jax.numpy as jnp
import numpy as np
from jax import lax
from jax.experimental import pallas as pl
from jax.experimental.pallas import tpu as pltpu

HIDDEN = 64                      # LSTM hidden size per direction
EMB_DIM = 100                    # nn.Embedding(512, 100)
VOCAB = 512
RAW_FEAT = 768                   # raw input features
IN_FEAT = RAW_FEAT + EMB_DIM     # 868 = LSTM input size
F_PAD = 896                      # 7 * 128, padded feature dim
MLP_HID = 32
OUT_DIM = 4


def _interleave_gate_cols(wf, wb):
    """Interleave per-gate 64-wide column blocks of the two LSTM directions.

    wf, wb: (rows, 4*HIDDEN) in PyTorch gate order [i, f, g, o].
    Result: (rows, 8*HIDDEN) ordered [i_f, i_b, f_f, f_b, g_f, g_b, o_f, o_b],
    so each gate activation in the kernel covers a 128-lane-aligned slice.
    """
    parts = []
    for k in range(4):
        parts.append(wf[:, k * HIDDEN:(k + 1) * HIDDEN])
        parts.append(wb[:, k * HIDDEN:(k + 1) * HIDDEN])
    return jnp.concatenate(parts, axis=1)


# ----------------------------------------------------------------------------
# Fused kernel: input projection + BiLSTM recurrence + MLP head
# ----------------------------------------------------------------------------
def fused_bilstm_head(x2_flat, w_in, b_in, whh, w1, b1, ln_g, ln_b, w2, b2,
                      *, T, B):
    TB = T * B
    G = 8 * HIDDEN      # 512 interleaved gate columns (both directions)
    H2 = 2 * HIDDEN     # 128 = concatenated hidden width

    def kernel(x2_ref, w_in_ref, b_in_ref, whh_ref,
               w1_ref, b1_ref, ln_g_ref, ln_b_ref, w2_ref, b2_ref,
               y_ref,
               gx_ref, hs_ref, hsr_ref, h_ref, c_ref):
        # ---- phase 1: hoisted, time-independent input projection ----------
        gx_ref[...] = (jnp.dot(x2_ref[...], w_in_ref[...],
                               preferred_element_type=jnp.float32)
                       + b_in_ref[...])

        # ---- phase 2: time recurrence, state VMEM/vreg resident ------------
        h_ref[...] = jnp.zeros_like(h_ref)
        c_ref[...] = jnp.zeros_like(c_ref)

        # T is small and static: fully-unrolled loop with static slices.
        for s in range(T):
            gates = (gx_ref[s * B:(s + 1) * B, :]
                     + jnp.dot(h_ref[...], whh_ref[...],
                               preferred_element_type=jnp.float32))
            # 128-lane-aligned gate slices (both directions packed together).
            i = jax.nn.sigmoid(gates[:, 0 * H2:1 * H2])
            f = jax.nn.sigmoid(gates[:, 1 * H2:2 * H2])
            g = jnp.tanh(gates[:, 2 * H2:3 * H2])
            o = jax.nn.sigmoid(gates[:, 3 * H2:4 * H2])
            c = f * c_ref[...] + i * g
            h = o * jnp.tanh(c)
            c_ref[...] = c
            h_ref[...] = h
            # Lane-dense (B, 128) stores; hsr holds the time-reversed copy so
            # fwd/bwd halves can be recombined with a full-vreg select below.
            hs_ref[s * B:(s + 1) * B, :] = h
            hsr_ref[(T - 1 - s) * B:(T - s) * B, :] = h

        # ---- phase 3: fused MLP head on the VMEM-resident hidden slab ------
        lane = lax.broadcasted_iota(jnp.int32, (TB, H2), 1)
        hidden = jnp.where(lane < HIDDEN, hs_ref[...], hsr_ref[...])  # (TB,128)

        z = (jnp.dot(hidden, w1_ref[...], preferred_element_type=jnp.float32)
             + b1_ref[...])
        mu = jnp.mean(z, axis=-1, keepdims=True)
        var = jnp.mean((z - mu) ** 2, axis=-1, keepdims=True)
        z = (z - mu) * lax.rsqrt(var + 1e-5) * ln_g_ref[...] + ln_b_ref[...]
        z = jnp.maximum(z, 0.0)
        # TODO(synk): Dropout(0.3) is inference-mode identity (no RNG masking).
        y_ref[...] = (jnp.dot(z, w2_ref[...], preferred_element_type=jnp.float32)
                      + b2_ref[...]).astype(y_ref.dtype)

    def full_spec(arr):
        nd = arr.ndim
        return pl.BlockSpec(arr.shape, lambda i, nd=nd: (0,) * nd)

    args = (x2_flat, w_in, b_in, whh, w1, b1, ln_g, ln_b, w2, b2)
    return pl.pallas_call(
        kernel,
        out_shape=jax.ShapeDtypeStruct((TB, OUT_DIM), jnp.float32),
        grid_spec=pltpu.PrefetchScalarGridSpec(
            num_scalar_prefetch=0,
            grid=(1,),
            in_specs=[full_spec(a) for a in args],
            out_specs=pl.BlockSpec((TB, OUT_DIM), lambda i: (0, 0)),
            scratch_shapes=[
                pltpu.VMEM((TB, G), jnp.float32),    # precomputed x-gates
                pltpu.VMEM((TB, H2), jnp.float32),   # hidden, step order
                pltpu.VMEM((TB, H2), jnp.float32),   # hidden, time-reversed
                pltpu.VMEM((B, H2), jnp.float32),    # [h_fwd | h_bwd]
                pltpu.VMEM((B, H2), jnp.float32),    # [c_fwd | c_bwd]
            ],
        ),
        compiler_params=pltpu.CompilerParams(
            dimension_semantics=("arbitrary",)),
    )(*args)


# ----------------------------------------------------------------------------
# Parameters (PyTorch layout: LSTM gate order i,f,g,o; weights pre-transposed)
# ----------------------------------------------------------------------------
def init_params(key):
    ks = jax.random.split(key, 16)

    def u(k, shape, fan):
        lim = 1.0 / np.sqrt(fan)
        return jax.random.uniform(k, shape, jnp.float32, -lim, lim)

    p = {}
    p["emb"] = jax.random.normal(ks[0], (VOCAB, EMB_DIM), jnp.float32)
    p["wih_f"] = u(ks[1], (IN_FEAT, 4 * HIDDEN), HIDDEN)
    p["whh_f"] = u(ks[2], (HIDDEN, 4 * HIDDEN), HIDDEN)
    p["b_f"] = u(ks[3], (1, 4 * HIDDEN), HIDDEN) + u(ks[4], (1, 4 * HIDDEN), HIDDEN)
    p["wih_b"] = u(ks[5], (IN_FEAT, 4 * HIDDEN), HIDDEN)
    p["whh_b"] = u(ks[6], (HIDDEN, 4 * HIDDEN), HIDDEN)
    p["b_b"] = u(ks[7], (1, 4 * HIDDEN), HIDDEN) + u(ks[8], (1, 4 * HIDDEN), HIDDEN)
    p["w1"] = u(ks[9], (2 * HIDDEN, MLP_HID), 2 * HIDDEN)
    p["b1"] = u(ks[10], (1, MLP_HID), 2 * HIDDEN)
    p["gamma"] = jnp.ones((1, MLP_HID), jnp.float32)
    p["beta"] = jnp.zeros((1, MLP_HID), jnp.float32)
    p["w2"] = u(ks[11], (MLP_HID, OUT_DIM), MLP_HID)
    p["b2"] = u(ks[12], (1, OUT_DIM), MLP_HID)
    return p


# ----------------------------------------------------------------------------
# Full model (plain-JAX glue: embedding gather, concat, pad, weight re-layout)
# ----------------------------------------------------------------------------
@jax.jit
def model_forward(inputs, pos, params):
    # inputs: (B, T, 768) f32 ; pos: (B, T) int
    B, T, _ = inputs.shape
    pos_emb = jnp.take(params["emb"], pos.astype(jnp.int32), axis=0)   # (B,T,100)
    combined = jnp.concatenate([inputs, pos_emb], axis=-1)             # (B,T,868)
    x = jnp.transpose(combined, (1, 0, 2))                             # (T,B,868)
    x = jnp.pad(x, ((0, 0), (0, 0), (0, F_PAD - IN_FEAT)))             # (T,B,896)
    # Row s of x2 carries x[s] (forward) and x[T-1-s] (backward) side by side,
    # so one matmul produces both directions' time-aligned gate inputs.
    x2 = jnp.concatenate([x, x[::-1]], axis=-1)                        # (T,B,1792)
    x2_flat = x2.reshape(T * B, 2 * F_PAD)

    wih_f = jnp.pad(params["wih_f"], ((0, F_PAD - IN_FEAT), (0, 0)))
    wih_b = jnp.pad(params["wih_b"], ((0, F_PAD - IN_FEAT), (0, 0)))
    w_in = jnp.concatenate(
        [_interleave_gate_cols(wih_f, jnp.zeros_like(wih_f)),
         _interleave_gate_cols(jnp.zeros_like(wih_b), wih_b)], axis=0)  # (1792,512)
    b_in = _interleave_gate_cols(params["b_f"], params["b_b"])          # (1,512)
    zh = jnp.zeros((HIDDEN, 4 * HIDDEN), jnp.float32)
    whh = jnp.concatenate(
        [_interleave_gate_cols(params["whh_f"], zh),
         _interleave_gate_cols(zh, params["whh_b"])], axis=0)           # (128,512)

    y_flat = fused_bilstm_head(
        x2_flat, w_in, b_in, whh,
        params["w1"], params["b1"], params["gamma"], params["beta"],
        params["w2"], params["b2"], T=T, B=B)                           # (T*B,4)
    return y_flat.reshape(T, B, OUT_DIM).transpose(1, 0, 2)             # (B,T,4)


# ----------------------------------------------------------------------------
# Pure-JAX reference (sanity check)
# ----------------------------------------------------------------------------
def reference_forward(inputs, pos, p):
    B, T, _ = inputs.shape
    pos_emb = jnp.take(p["emb"], pos.astype(jnp.int32), axis=0)
    x = jnp.concatenate([inputs, pos_emb], axis=-1)        # (B, T, 868)
    x_t = jnp.transpose(x, (1, 0, 2))                      # (T, B, 868)

    def run_dir(xs, wih, whh, b):
        def cell(carry, x_step):
            h, c = carry
            gates = x_step @ wih + h @ whh + b
            i = jax.nn.sigmoid(gates[:, 0 * HIDDEN:1 * HIDDEN])
            f = jax.nn.sigmoid(gates[:, 1 * HIDDEN:2 * HIDDEN])
            g = jnp.tanh(gates[:, 2 * HIDDEN:3 * HIDDEN])
            o = jax.nn.sigmoid(gates[:, 3 * HIDDEN:4 * HIDDEN])
            c = f * c + i * g
            h = o * jnp.tanh(c)
            return (h, c), h
        init = (jnp.zeros((B, HIDDEN), jnp.float32),
                jnp.zeros((B, HIDDEN), jnp.float32))
        _, hs = jax.lax.scan(cell, init, xs)
        return hs

    hf = run_dir(x_t, p["wih_f"], p["whh_f"], p["b_f"])
    hb = run_dir(x_t[::-1], p["wih_b"], p["whh_b"], p["b_b"])[::-1]
    out = jnp.concatenate([hf, hb], axis=-1)               # (T, B, 128)
    out = jnp.transpose(out, (1, 0, 2)).reshape(B * T, 2 * HIDDEN)

    h = out @ p["w1"] + p["b1"]
    mu = jnp.mean(h, -1, keepdims=True)
    var = jnp.mean((h - mu) ** 2, -1, keepdims=True)
    h = (h - mu) * jax.lax.rsqrt(var + 1e-5) * p["gamma"] + p["beta"]
    h = jnp.maximum(h, 0.0)
    y = h @ p["w2"] + p["b2"]
    return y.reshape(B, T, OUT_DIM)


if __name__ == "__main__":
    B, T = 2, 8
    key = jax.random.PRNGKey(0)
    k_in, k_pos, k_par = jax.random.split(key, 3)

    inputs = jax.random.normal(k_in, (B, T, RAW_FEAT), jnp.float32)   # (2, 8, 768)
    pos = jax.random.randint(k_pos, (B, T), 0, VOCAB, jnp.int32)      # (2, 8)
    params = init_params(k_par)

    out = jax.block_until_ready(model_forward(inputs, pos, params))
    assert out.shape == (B, T, OUT_DIM), out.shape

    ref = jax.block_until_ready(reference_forward(inputs, pos, params))
    np.testing.assert_allclose(np.asarray(out), np.asarray(ref),
                               atol=2e-2, rtol=2e-2)

    print("KERNEL_OK")
</pallas_src>

<mosaic_0001>
module attributes {stable_mosaic.version = 11 : i64} {
  func.func @kernel(%arg0: i32, %arg1: memref<16x1792xf32, #tpu.memory_space<vmem>>, %arg2: memref<1792x512xf32, #tpu.memory_space<vmem>>, %arg3: memref<1x512xf32, #tpu.memory_space<vmem>>, %arg4: memref<128x512xf32, #tpu.memory_space<vmem>>, %arg5: memref<128x32xf32, #tpu.memory_space<vmem>>, %arg6: memref<1x32xf32, #tpu.memory_space<vmem>>, %arg7: memref<1x32xf32, #tpu.memory_space<vmem>>, %arg8: memref<1x32xf32, #tpu.memory_space<vmem>>, %arg9: memref<32x4xf32, #tpu.memory_space<vmem>>, %arg10: memref<1x4xf32, #tpu.memory_space<vmem>>, %arg11: memref<16x4xf32, #tpu.memory_space<vmem>>, %arg12: memref<16x512xf32, #tpu.memory_space<vmem>>, %arg13: memref<16x128xf32, #tpu.memory_space<vmem>>, %arg14: memref<16x128xf32, #tpu.memory_space<vmem>>, %arg15: memref<2x128xf32, #tpu.memory_space<vmem>>, %arg16: memref<2x128xf32, #tpu.memory_space<vmem>>) attributes {dimension_semantics = [#tpu.dimension_semantics<arbitrary>], iteration_bounds = array<i64: 1>, scalar_prefetch = 0 : i64, scratch_operands = 5 : i64, tpu.core_type = #tpu.core_type<tc>, window_params = [{pipeline_mode = #tpu.pipeline_mode<synchronous>, transform_indices = @transform_0, window_bounds = array<i64: 16, 1792>}, {pipeline_mode = #tpu.pipeline_mode<synchronous>, transform_indices = @transform_1, window_bounds = array<i64: 1792, 512>}, {pipeline_mode = #tpu.pipeline_mode<synchronous>, transform_indices = @transform_2, window_bounds = array<i64: 1, 512>}, {pipeline_mode = #tpu.pipeline_mode<synchronous>, transform_indices = @transform_3, window_bounds = array<i64: 128, 512>}, {pipeline_mode = #tpu.pipeline_mode<synchronous>, transform_indices = @transform_4, window_bounds = array<i64: 128, 32>}, {pipeline_mode = #tpu.pipeline_mode<synchronous>, transform_indices = @transform_5, window_bounds = array<i64: 1, 32>}, {pipeline_mode = #tpu.pipeline_mode<synchronous>, transform_indices = @transform_6, window_bounds = array<i64: 1, 32>}, {pipeline_mode = #tpu.pipeline_mode<synchronous>, transform_indices = @transform_7, window_bounds = array<i64: 1, 32>}, {pipeline_mode = #tpu.pipeline_mode<synchronous>, transform_indices = @transform_8, window_bounds = array<i64: 32, 4>}, {pipeline_mode = #tpu.pipeline_mode<synchronous>, transform_indices = @transform_9, window_bounds = array<i64: 1, 4>}, {pipeline_mode = #tpu.pipeline_mode<synchronous>, transform_indices = @transform_10, window_bounds = array<i64: 16, 4>}]} {
    %c0 = arith.constant 0 : index
    %c0_0 = arith.constant 0 : index
    %0 = vector.load %arg1[%c0, %c0_0] : memref<16x1792xf32, #tpu.memory_space<vmem>>, vector<16x1792xf32>
    %c0_1 = arith.constant 0 : index
    %c0_2 = arith.constant 0 : index
    %1 = vector.load %arg2[%c0_1, %c0_2] : memref<1792x512xf32, #tpu.memory_space<vmem>>, vector<1792x512xf32>
    %cst = arith.constant dense<0.000000e+00> : vector<16x512xf32>
    %2 = tpu.matmul %0, %1, %cst {dimension_numbers = #tpu.dot_dimension_numbers<[1], [0], [0], [1], [0, 0, 1, 1], [], []>} : vector<16x1792xf32>, vector<1792x512xf32>, vector<16x512xf32> -> vector<16x512xf32>
    %c0_3 = arith.constant 0 : index
    %c0_4 = arith.constant 0 : index
    %3 = vector.load %arg3[%c0_3, %c0_4] : memref<1x512xf32, #tpu.memory_space<vmem>>, vector<1x512xf32>
    %4 = vector.broadcast %3 : vector<1x512xf32> to vector<16x512xf32>
    %5 = arith.addf %2, %4 : vector<16x512xf32>
    %c0_5 = arith.constant 0 : index
    %c0_6 = arith.constant 0 : index
    %6 = vector.load %arg12[%c0_5, %c0_6] : memref<16x512xf32, #tpu.memory_space<vmem>>, vector<16x512xf32>
    tpu.vector_store %arg12[%c0_5, %c0_6], %5 {strides = array<i32>} : memref<16x512xf32, #tpu.memory_space<vmem>>, vector<16x512xf32>,
    %cst_7 = arith.constant 0.000000e+00 : f32
    %7 = vector.broadcast %cst_7 : f32 to vector<2x128xf32>
    %c0_8 = arith.constant 0 : index
    %c0_9 = arith.constant 0 : index
    %8 = vector.load %arg15[%c0_8, %c0_9] : memref<2x128xf32, #tpu.memory_space<vmem>>, vector<2x128xf32>
    tpu.vector_store %arg15[%c0_8, %c0_9], %7 {strides = array<i32>} : memref<2x128xf32, #tpu.memory_space<vmem>>, vector<2x128xf32>,
    %cst_10 = arith.constant 0.000000e+00 : f32
    %9 = vector.broadcast %cst_10 : f32 to vector<2x128xf32>
    %c0_11 = arith.constant 0 : index
    %c0_12 = arith.constant 0 : index
    %10 = vector.load %arg16[%c0_11, %c0_12] : memref<2x128xf32, #tpu.memory_space<vmem>>, vector<2x128xf32>
    tpu.vector_store %arg16[%c0_11, %c0_12], %9 {strides = array<i32>} : memref<2x128xf32, #tpu.memory_space<vmem>>, vector<2x128xf32>,
    %c0_13 = arith.constant 0 : index
    %c0_14 = arith.constant 0 : index
    %11 = vector.load %arg12[%c0_13, %c0_14] : memref<16x512xf32, #tpu.memory_space<vmem>>, vector<2x512xf32>
    %c0_15 = arith.constant 0 : index
    %c0_16 = arith.constant 0 : index
    %12 = vector.load %arg15[%c0_15, %c0_16] : memref<2x128xf32, #tpu.memory_space<vmem>>, vector<2x128xf32>
    %c0_17 = arith.constant 0 : index
    %c0_18 = arith.constant 0 : index
    %13 = vector.load %arg4[%c0_17, %c0_18] : memref<128x512xf32, #tpu.memory_space<vmem>>, vector<128x512xf32>
    %cst_19 = arith.constant dense<0.000000e+00> : vector<2x512xf32>
    %14 = tpu.matmul %12, %13, %cst_19 {dimension_numbers = #tpu.dot_dimension_numbers<[1], [0], [0], [1], [0, 0, 1, 1], [], []>} : vector<2x128xf32>, vector<128x512xf32>, vector<2x512xf32> -> vector<2x512xf32>
    %15 = arith.addf %11, %14 : vector<2x512xf32>
    %16 = vector.extract_strided_slice %15 {offsets = [0, 0], sizes = [2, 128], strides = [1, 1]} : vector<2x512xf32> to vector<2x128xf32>
    %17 = arith.negf %16 : vector<2x128xf32>
    %18 = math.exp %17 : vector<2x128xf32>
    %cst_20 = arith.constant 1.000000e+00 : f32
    %19 = vector.broadcast %cst_20 : f32 to vector<2x128xf32>
    %20 = arith.addf %19, %18 : vector<2x128xf32>
    %21 = arith.divf %19, %20 : vector<2x128xf32>
    %22 = vector.extract_strided_slice %15 {offsets = [0, 128], sizes = [2, 128], strides = [1, 1]} : vector<2x512xf32> to vector<2x128xf32>
    %23 = arith.negf %22 : vector<2x128xf32>
    %24 = math.exp %23 : vector<2x128xf32>
    %cst_21 = arith.constant 1.000000e+00 : f32
    %25 = vector.broadcast %cst_21 : f32 to vector<2x128xf32>
    %26 = arith.addf %25, %24 : vector<2x128xf32>
    %27 = arith.divf %25, %26 : vector<2x128xf32>
    %28 = vector.extract_strided_slice %15 {offsets = [0, 256], sizes = [2, 128], strides = [1, 1]} : vector<2x512xf32> to vector<2x128xf32>
    %29 = math.tanh %28 : vector<2x128xf32>
    %30 = vector.extract_strided_slice %15 {offsets = [0, 384], sizes = [2, 128], strides = [1, 1]} : vector<2x512xf32> to vector<2x128xf32>
    %31 = arith.negf %30 : vector<2x128xf32>
    %32 = math.exp %31 : vector<2x128xf32>
    %cst_22 = arith.constant 1.000000e+00 : f32
    %33 = vector.broadcast %cst_22 : f32 to vector<2x128xf32>
    %34 = arith.addf %33, %32 : vector<2x128xf32>
    %35 = arith.divf %33, %34 : vector<2x128xf32>
    %c0_23 = arith.constant 0 : index
    %c0_24 = arith.constant 0 : index
    %36 = vector.load %arg16[%c0_23, %c0_24] : memref<2x128xf32, #tpu.memory_space<vmem>>, vector<2x128xf32>
    %37 = arith.mulf %27, %36 : vector<2x128xf32>
    %38 = arith.mulf %21, %29 : vector<2x128xf32>
    %39 = arith.addf %37, %38 : vector<2x128xf32>
    %40 = math.tanh %39 : vector<2x128xf32>
    %41 = arith.mulf %35, %40 : vector<2x128xf32>
    %c0_25 = arith.constant 0 : index
    %c0_26 = arith.constant 0 : index
    %42 = vector.load %arg16[%c0_25, %c0_26] : memref<2x128xf32, #tpu.memory_space<vmem>>, vector<2x128xf32>
    tpu.vector_store %arg16[%c0_25, %c0_26], %39 {strides = array<i32>} : memref<2x128xf32, #tpu.memory_space<vmem>>, vector<2x128xf32>,
    %c0_27 = arith.constant 0 : index
    %c0_28 = arith.constant 0 : index
    %43 = vector.load %arg15[%c0_27, %c0_28] : memref<2x128xf32, #tpu.memory_space<vmem>>, vector<2x128xf32>
    tpu.vector_store %arg15[%c0_27, %c0_28], %41 {strides = array<i32>} : memref<2x128xf32, #tpu.memory_space<vmem>>, vector<2x128xf32>,
    %c0_29 = arith.constant 0 : index
    %c0_30 = arith.constant 0 : index
    %44 = vector.load %arg13[%c0_29, %c0_30] : memref<16x128xf32, #tpu.memory_space<vmem>>, vector<2x128xf32>
    tpu.vector_store %arg13[%c0_29, %c0_30], %41 {strides = array<i32>} : memref<16x128xf32, #tpu.memory_space<vmem>>, vector<2x128xf32>,
    %c14 = arith.constant 14 : index
    %c0_31 = arith.constant 0 : index
    %45 = vector.load %arg14[%c14, %c0_31] : memref<16x128xf32, #tpu.memory_space<vmem>>, vector<2x128xf32>
    tpu.vector_store %arg14[%c14, %c0_31], %41 {strides = array<i32>} : memref<16x128xf32, #tpu.memory_space<vmem>>, vector<2x128xf32>,
    %c2 = arith.constant 2 : index
    %c0_32 = arith.constant 0 : index
    %46 = vector.load %arg12[%c2, %c0_32] : memref<16x512xf32, #tpu.memory_space<vmem>>, vector<2x512xf32>
    %c0_33 = arith.constant 0 : index
    %c0_34 = arith.constant 0 : index
    %47 = vector.load %arg15[%c0_33, %c0_34] : memref<2x128xf32, #tpu.memory_space<vmem>>, vector<2x128xf32>
    %c0_35 = arith.constant 0 : index
    %c0_36 = arith.constant 0 : index
    %48 = vector.load %arg4[%c0_35, %c0_36] : memref<128x512xf32, #tpu.memory_space<vmem>>, vector<128x512xf32>
    %cst_37 = arith.constant dense<0.000000e+00> : vector<2x512xf32>
    %49 = tpu.matmul %47, %48, %cst_37 {dimension_numbers = #tpu.dot_dimension_numbers<[1], [0], [0], [1], [0, 0, 1, 1], [], []>} : vector<2x128xf32>, vector<128x512xf32>, vector<2x512xf32> -> vector<2x512xf32>
    %50 = arith.addf %46, %49 : vector<2x512xf32>
    %51 = vector.extract_strided_slice %50 {offsets = [0, 0], sizes = [2, 128], strides = [1, 1]} : vector<2x512xf32> to vector<2x128xf32>
    %52 = arith.negf %51 : vector<2x128xf32>
    %53 = math.exp %52 : vector<2x128xf32>
    %cst_38 = arith.constant 1.000000e+00 : f32
    %54 = vector.broadcast %cst_38 : f32 to vector<2x128xf32>
    %55 = arith.addf %54, %53 : vector<2x128xf32>
    %56 = arith.divf %54, %55 : vector<2x128xf32>
    %57 = vector.extract_strided_slice %50 {offsets = [0, 128], sizes = [2, 128], strides = [1, 1]} : vector<2x512xf32> to vector<2x128xf32>
    %58 = arith.negf %57 : vector<2x128xf32>
    %59 = math.exp %58 : vector<2x128xf32>
    %cst_39 = arith.constant 1.000000e+00 : f32
    %60 = vector.broadcast %cst_39 : f32 to vector<2x128xf32>
    %61 = arith.addf %60, %59 : vector<2x128xf32>
    %62 = arith.divf %60, %61 : vector<2x128xf32>
    %63 = vector.extract_strided_slice %50 {offsets = [0, 256], sizes = [2, 128], strides = [1, 1]} : vector<2x512xf32> to vector<2x128xf32>
    %64 = math.tanh %63 : vector<2x128xf32>
    %65 = vector.extract_strided_slice %50 {offsets = [0, 384], sizes = [2, 128], strides = [1, 1]} : vector<2x512xf32> to vector<2x128xf32>
    %66 = arith.negf %65 : vector<2x128xf32>
    %67 = math.exp %66 : vector<2x128xf32>
    %cst_40 = arith.constant 1.000000e+00 : f32
    %68 = vector.broadcast %cst_40 : f32 to vector<2x128xf32>
    %69 = arith.addf %68, %67 : vector<2x128xf32>
    %70 = arith.divf %68, %69 : vector<2x128xf32>
    %c0_41 = arith.constant 0 : index
    %c0_42 = arith.constant 0 : index
    %71 = vector.load %arg16[%c0_41, %c0_42] : memref<2x128xf32, #tpu.memory_space<vmem>>, vector<2x128xf32>
    %72 = arith.mulf %62, %71 : vector<2x128xf32>
    %73 = arith.mulf %56, %64 : vector<2x128xf32>
    %74 = arith.addf %72, %73 : vector<2x128xf32>
    %75 = math.tanh %74 : vector<2x128xf32>
    %76 = arith.mulf %70, %75 : vector<2x128xf32>
    %c0_43 = arith.constant 0 : index
    %c0_44 = arith.constant 0 : index
    %77 = vector.load %arg16[%c0_43, %c0_44] : memref<2x128xf32, #tpu.memory_space<vmem>>, vector<2x128xf32>
    tpu.vector_store %arg16[%c0_43, %c0_44], %74 {strides = array<i32>} : memref<2x128xf32, #tpu.memory_space<vmem>>, vector<2x128xf32>,
    %c0_45 = arith.constant 0 : index
    %c0_46 = arith.constant 0 : index
    %78 = vector.load %arg15[%c0_45, %c0_46] : memref<2x128xf32, #tpu.memory_space<vmem>>, vector<2x128xf32>
    tpu.vector_store %arg15[%c0_45, %c0_46], %76 {strides = array<i32>} : memref<2x128xf32, #tpu.memory_space<vmem>>, vector<2x128xf32>,
    %c2_47 = arith.constant 2 : index
    %c0_48 = arith.constant 0 : index
    %79 = vector.load %arg13[%c2_47, %c0_48] : memref<16x128xf32, #tpu.memory_space<vmem>>, vector<2x128xf32>
    tpu.vector_store %arg13[%c2_47, %c0_48], %76 {strides = array<i32>} : memref<16x128xf32, #tpu.memory_space<vmem>>, vector<2x128xf32>,
    %c12 = arith.constant 12 : index
    %c0_49 = arith.constant 0 : index
    %80 = vector.load %arg14[%c12, %c0_49] : memref<16x128xf32, #tpu.memory_space<vmem>>, vector<2x128xf32>
    tpu.vector_store %arg14[%c12, %c0_49], %76 {strides = array<i32>} : memref<16x128xf32, #tpu.memory_space<vmem>>, vector<2x128xf32>,
    %c4 = arith.constant 4 : index
    %c0_50 = arith.constant 0 : index
    %81 = vector.load %arg12[%c4, %c0_50] : memref<16x512xf32, #tpu.memory_space<vmem>>, vector<2x512xf32>
    %c0_51 = arith.constant 0 : index
    %c0_52 = arith.constant 0 : index
    %82 = vector.load %arg15[%c0_51, %c0_52] : memref<2x128xf32, #tpu.memory_space<vmem>>, vector<2x128xf32>
    %c0_53 = arith.constant 0 : index
    %c0_54 = arith.constant 0 : index
    %83 = vector.load %arg4[%c0_53, %c0_54] : memref<128x512xf32, #tpu.memory_space<vmem>>, vector<128x512xf32>
    %cst_55 = arith.constant dense<0.000000e+00> : vector<2x512xf32>
    %84 = tpu.matmul %82, %83, %cst_55 {dimension_numbers = #tpu.dot_dimension_numbers<[1], [0], [0], [1], [0, 0, 1, 1], [], []>} : vector<2x128xf32>, vector<128x512xf32>, vector<2x512xf32> -> vector<2x512xf32>
    %85 = arith.addf %81, %84 : vector<2x512xf32>
    %86 = vector.extract_strided_slice %85 {offsets = [0, 0], sizes = [2, 128], strides = [1, 1]} : vector<2x512xf32> to vector<2x128xf32>
    %87 = arith.negf %86 : vector<2x128xf32>
    %88 = math.exp %87 : vector<2x128xf32>
    %cst_56 = arith.constant 1.000000e+00 : f32
    %89 = vector.broadcast %cst_56 : f32 to vector<2x128xf32>
    %90 = arith.addf %89, %88 : vector<2x128xf32>
    %91 = arith.divf %89, %90 : vector<2x128xf32>
    %92 = vector.extract_strided_slice %85 {offsets = [0, 128], sizes = [2, 128], strides = [1, 1]} : vector<2x512xf32> to vector<2x128xf32>
    %93 = arith.negf %92 : vector<2x128xf32>
    %94 = math.exp %93 : vector<2x128xf32>
    %cst_57 = arith.constant 1.000000e+00 : f32
    %95 = vector.broadcast %cst_57 : f32 to vector<2x128xf32>
    %96 = arith.addf %95, %94 : vector<2x128xf32>
    %97 = arith.divf %95, %96 : vector<2x128xf32>
    %98 = vector.extract_strided_slice %85 {offsets = [0, 256], sizes = [2, 128], strides = [1, 1]} : vector<2x512xf32> to vector<2x128xf32>
    %99 = math.tanh %98 : vector<2x128xf32>
    %100 = vector.extract_strided_slice %85 {offsets = [0, 384], sizes = [2, 128], strides = [1, 1]} : vector<2x512xf32> to vector<2x128xf32>
    %101 = arith.negf %100 : vector<2x128xf32>
    %102 = math.exp %101 : vector<2x128xf32>
    %cst_58 = arith.constant 1.000000e+00 : f32
    %103 = vector.broadcast %cst_58 : f32 to vector<2x128xf32>
    %104 = arith.addf %103, %102 : vector<2x128xf32>
    %105 = arith.divf %103, %104 : vector<2x128xf32>
    %c0_59 = arith.constant 0 : index
    %c0_60 = arith.constant 0 : index
    %106 = vector.load %arg16[%c0_59, %c0_60] : memref<2x128xf32, #tpu.memory_space<vmem>>, vector<2x128xf32>
    %107 = arith.mulf %97, %106 : vector<2x128xf32>
    %108 = arith.mulf %91, %99 : vector<2x128xf32>
    %109 = arith.addf %107, %108 : vector<2x128xf32>
    %110 = math.tanh %109 : vector<2x128xf32>
    %111 = arith.mulf %105, %110 : vector<2x128xf32>
    %c0_61 = arith.constant 0 : index
    %c0_62 = arith.constant 0 : index
    %112 = vector.load %arg16[%c0_61, %c0_62] : memref<2x128xf32, #tpu.memory_space<vmem>>, vector<2x128xf32>
    tpu.vector_store %arg16[%c0_61, %c0_62], %109 {strides = array<i32>} : memref<2x128xf32, #tpu.memory_space<vmem>>, vector<2x128xf32>,
    %c0_63 = arith.constant 0 : index
    %c0_64 = arith.constant 0 : index
    %113 = vector.load %arg15[%c0_63, %c0_64] : memref<2x128xf32, #tpu.memory_space<vmem>>, vector<2x128xf32>
    tpu.vector_store %arg15[%c0_63, %c0_64], %111 {strides = array<i32>} : memref<2x128xf32, #tpu.memory_space<vmem>>, vector<2x128xf32>,
    %c4_65 = arith.constant 4 : index
    %c0_66 = arith.constant 0 : index
    %114 = vector.load %arg13[%c4_65, %c0_66] : memref<16x128xf32, #tpu.memory_space<vmem>>, vector<2x128xf32>
    tpu.vector_store %arg13[%c4_65, %c0_66], %111 {strides = array<i32>} : memref<16x128xf32, #tpu.memory_space<vmem>>, vector<2x128xf32>,
    %c10 = arith.constant 10 : index
    %c0_67 = arith.constant 0 : index
    %115 = vector.load %arg14[%c10, %c0_67] : memref<16x128xf32, #tpu.memory_space<vmem>>, vector<2x128xf32>
    tpu.vector_store %arg14[%c10, %c0_67], %111 {strides = array<i32>} : memref<16x128xf32, #tpu.memory_space<vmem>>, vector<2x128xf32>,
    %c6 = arith.constant 6 : index
    %c0_68 = arith.constant 0 : index
    %116 = vector.load %arg12[%c6, %c0_68] : memref<16x512xf32, #tpu.memory_space<vmem>>, vector<2x512xf32>
    %c0_69 = arith.constant 0 : index
    %c0_70 = arith.constant 0 : index
    %117 = vector.load %arg15[%c0_69, %c0_70] : memref<2x128xf32, #tpu.memory_space<vmem>>, vector<2x128xf32>
    %c0_71 = arith.constant 0 : index
    %c0_72 = arith.constant 0 : index
    %118 = vector.load %arg4[%c0_71, %c0_72] : memref<128x512xf32, #tpu.memory_space<vmem>>, vector<128x512xf32>
    %cst_73 = arith.constant dense<0.000000e+00> : vector<2x512xf32>
    %119 = tpu.matmul %117, %118, %cst_73 {dimension_numbers = #tpu.dot_dimension_numbers<[1], [0], [0], [1], [0, 0, 1, 1], [], []>} : vector<2x128xf32>, vector<128x512xf32>, vector<2x512xf32> -> vector<2x512xf32>
    %120 = arith.addf %116, %119 : vector<2x512xf32>
    %121 = vector.extract_strided_slice %120 {offsets = [0, 0], sizes = [2, 128], strides = [1, 1]} : vector<2x512xf32> to vector<2x128xf32>
    %122 = arith.negf %121 : vector<2x128xf32>
    %123 = math.exp %122 : vector<2x128xf32>
    %cst_74 = arith.constant 1.000000e+00 : f32
    %124 = vector.broadcast %cst_74 : f32 to vector<2x128xf32>
    %125 = arith.addf %124, %123 : vector<2x128xf32>
    %126 = arith.divf %124, %125 : vector<2x128xf32>
    %127 = vector.extract_strided_slice %120 {offsets = [0, 128], sizes = [2, 128], strides = [1, 1]} : vector<2x512xf32> to vector<2x128xf32>
    %128 = arith.negf %127 : vector<2x128xf32>
    %129 = math.exp %128 : vector<2x128xf32>
    %cst_75 = arith.constant 1.000000e+00 : f32
    %130 = vector.broadcast %cst_75 : f32 to vector<2x128xf32>
    %131 = arith.addf %130, %129 : vector<2x128xf32>
    %132 = arith.divf %130, %131 : vector<2x128xf32>
    %133 = vector.extract_strided_slice %120 {offsets = [0, 256], sizes = [2, 128], strides = [1, 1]} : vector<2x512xf32> to vector<2x128xf32>
    %134 = math.tanh %133 : vector<2x128xf32>
    %135 = vector.extract_strided_slice %120 {offsets = [0, 384], sizes = [2, 128], strides = [1, 1]} : vector<2x512xf32> to vector<2x128xf32>
    %136 = arith.negf %135 : vector<2x128xf32>
    %137 = math.exp %136 : vector<2x128xf32>
    %cst_76 = arith.constant 1.000000e+00 : f32
    %138 = vector.broadcast %cst_76 : f32 to vector<2x128xf32>
    %139 = arith.addf %138, %137 : vector<2x128xf32>
    %140 = arith.divf %138, %139 : vector<2x128xf32>
    %c0_77 = arith.constant 0 : index
    %c0_78 = arith.constant 0 : index
    %141 = vector.load %arg16[%c0_77, %c0_78] : memref<2x128xf32, #tpu.memory_space<vmem>>, vector<2x128xf32>
    %142 = arith.mulf %132, %141 : vector<2x128xf32>
    %143 = arith.mulf %126, %134 : vector<2x128xf32>
    %144 = arith.addf %142, %143 : vector<2x128xf32>
    %145 = math.tanh %144 : vector<2x128xf32>
    %146 = arith.mulf %140, %145 : vector<2x128xf32>
    %c0_79 = arith.constant 0 : index
    %c0_80 = arith.constant 0 : index
    %147 = vector.load %arg16[%c0_79, %c0_80] : memref<2x128xf32, #tpu.memory_space<vmem>>, vector<2x128xf32>
    tpu.vector_store %arg16[%c0_79, %c0_80], %144 {strides = array<i32>} : memref<2x128xf32, #tpu.memory_space<vmem>>, vector<2x128xf32>,
    %c0_81 = arith.constant 0 : index
    %c0_82 = arith.constant 0 : index
    %148 = vector.load %arg15[%c0_81, %c0_82] : memref<2x128xf32, #tpu.memory_space<vmem>>, vector<2x128xf32>
    tpu.vector_store %arg15[%c0_81, %c0_82], %146 {strides = array<i32>} : memref<2x128xf32, #tpu.memory_space<vmem>>, vector<2x128xf32>,
    %c6_83 = arith.constant 6 : index
    %c0_84 = arith.constant 0 : index
    %149 = vector.load %arg13[%c6_83, %c0_84] : memref<16x128xf32, #tpu.memory_space<vmem>>, vector<2x128xf32>
    tpu.vector_store %arg13[%c6_83, %c0_84], %146 {strides = array<i32>} : memref<16x128xf32, #tpu.memory_space<vmem>>, vector<2x128xf32>,
    %c8 = arith.constant 8 : index
    %c0_85 = arith.constant 0 : index
    %150 = vector.load %arg14[%c8, %c0_85] : memref<16x128xf32, #tpu.memory_space<vmem>>, vector<2x128xf32>
    tpu.vector_store %arg14[%c8, %c0_85], %146 {strides = array<i32>} : memref<16x128xf32, #tpu.memory_space<vmem>>, vector<2x128xf32>,
    %c8_86 = arith.constant 8 : index
    %c0_87 = arith.constant 0 : index
    %151 = vector.load %arg12[%c8_86, %c0_87] : memref<16x512xf32, #tpu.memory_space<vmem>>, vector<2x512xf32>
    %c0_88 = arith.constant 0 : index
    %c0_89 = arith.constant 0 : index
    %152 = vector.load %arg15[%c0_88, %c0_89] : memref<2x128xf32, #tpu.memory_space<vmem>>, vector<2x128xf32>
    %c0_90 = arith.constant 0 : index
    %c0_91 = arith.constant 0 : index
    %153 = vector.load %arg4[%c0_90, %c0_91] : memref<128x512xf32, #tpu.memory_space<vmem>>, vector<128x512xf32>
    %cst_92 = arith.constant dense<0.000000e+00> : vector<2x512xf32>
    %154 = tpu.matmul %152, %153, %cst_92 {dimension_numbers = #tpu.dot_dimension_numbers<[1], [0], [0], [1], [0, 0, 1, 1], [], []>} : vector<2x128xf32>, vector<128x512xf32>, vector<2x512xf32> -> vector<2x512xf32>
    %155 = arith.addf %151, %154 : vector<2x512xf32>
    %156 = vector.extract_strided_slice %155 {offsets = [0, 0], sizes = [2, 128], strides = [1, 1]} : vector<2x512xf32> to vector<2x128xf32>
    %157 = arith.negf %156 : vector<2x128xf32>
    %158 = math.exp %157 : vector<2x128xf32>
    %cst_93 = arith.constant 1.000000e+00 : f32
    %159 = vector.broadcast %cst_93 : f32 to vector<2x128xf32>
    %160 = arith.addf %159, %158 : vector<2x128xf32>
    %161 = arith.divf %159, %160 : vector<2x128xf32>
    %162 = vector.extract_strided_slice %155 {offsets = [0, 128], sizes = [2, 128], strides = [1, 1]} : vector<2x512xf32> to vector<2x128xf32>
    %163 = arith.negf %162 : vector<2x128xf32>
    %164 = math.exp %163 : vector<2x128xf32>
    %cst_94 = arith.constant 1.000000e+00 : f32
    %165 = vector.broadcast %cst_94 : f32 to vector<2x128xf32>
    %166 = arith.addf %165, %164 : vector<2x128xf32>
    %167 = arith.divf %165, %166 : vector<2x128xf32>
    %168 = vector.extract_strided_slice %155 {offsets = [0, 256], sizes = [2, 128], strides = [1, 1]} : vector<2x512xf32> to vector<2x128xf32>
    %169 = math.tanh %168 : vector<2x128xf32>
    %170 = vector.extract_strided_slice %155 {offsets = [0, 384], sizes = [2, 128], strides = [1, 1]} : vector<2x512xf32> to vector<2x128xf32>
    %171 = arith.negf %170 : vector<2x128xf32>
    %172 = math.exp %171 : vector<2x128xf32>
    %cst_95 = arith.constant 1.000000e+00 : f32
    %173 = vector.broadcast %cst_95 : f32 to vector<2x128xf32>
    %174 = arith.addf %173, %172 : vector<2x128xf32>
    %175 = arith.divf %173, %174 : vector<2x128xf32>
    %c0_96 = arith.constant 0 : index
    %c0_97 = arith.constant 0 : index
    %176 = vector.load %arg16[%c0_96, %c0_97] : memref<2x128xf32, #tpu.memory_space<vmem>>, vector<2x128xf32>
    %177 = arith.mulf %167, %176 : vector<2x128xf32>
    %178 = arith.mulf %161, %169 : vector<2x128xf32>
    %179 = arith.addf %177, %178 : vector<2x128xf32>
    %180 = math.tanh %179 : vector<2x128xf32>
    %181 = arith.mulf %175, %180 : vector<2x128xf32>
    %c0_98 = arith.constant 0 : index
    %c0_99 = arith.constant 0 : index
    %182 = vector.load %arg16[%c0_98, %c0_99] : memref<2x128xf32, #tpu.memory_space<vmem>>, vector<2x128xf32>
    tpu.vector_store %arg16[%c0_98, %c0_99], %179 {strides = array<i32>} : memref<2x128xf32, #tpu.memory_space<vmem>>, vector<2x128xf32>,
    %c0_100 = arith.constant 0 : index
    %c0_101 = arith.constant 0 : index
    %183 = vector.load %arg15[%c0_100, %c0_101] : memref<2x128xf32, #tpu.memory_space<vmem>>, vector<2x128xf32>
    tpu.vector_store %arg15[%c0_100, %c0_101], %181 {strides = array<i32>} : memref<2x128xf32, #tpu.memory_space<vmem>>, vector<2x128xf32>,
    %c8_102 = arith.constant 8 : index
    %c0_103 = arith.constant 0 : index
    %184 = vector.load %arg13[%c8_102, %c0_103] : memref<16x128xf32, #tpu.memory_space<vmem>>, vector<2x128xf32>
    tpu.vector_store %arg13[%c8_102, %c0_103], %181 {strides = array<i32>} : memref<16x128xf32, #tpu.memory_space<vmem>>, vector<2x128xf32>,
    %c6_104 = arith.constant 6 : index
    %c0_105 = arith.constant 0 : index
    %185 = vector.load %arg14[%c6_104, %c0_105] : memref<16x128xf32, #tpu.memory_space<vmem>>, vector<2x128xf32>
    tpu.vector_store %arg14[%c6_104, %c0_105], %181 {strides = array<i32>} : memref<16x128xf32, #tpu.memory_space<vmem>>, vector<2x128xf32>,
    %c10_106 = arith.constant 10 : index
    %c0_107 = arith.constant 0 : index
    %186 = vector.load %arg12[%c10_106, %c0_107] : memref<16x512xf32, #tpu.memory_space<vmem>>, vector<2x512xf32>
    %c0_108 = arith.constant 0 : index
    %c0_109 = arith.constant 0 : index
    %187 = vector.load %arg15[%c0_108, %c0_109] : memref<2x128xf32, #tpu.memory_space<vmem>>, vector<2x128xf32>
    %c0_110 = arith.constant 0 : index
    %c0_111 = arith.constant 0 : index
    %188 = vector.load %arg4[%c0_110, %c0_111] : memref<128x512xf32, #tpu.memory_space<vmem>>, vector<128x512xf32>
    %cst_112 = arith.constant dense<0.000000e+00> : vector<2x512xf32>
    %189 = tpu.matmul %187, %188, %cst_112 {dimension_numbers = #tpu.dot_dimension_numbers<[1], [0], [0], [1], [0, 0, 1, 1], [], []>} : vector<2x128xf32>, vector<128x512xf32>, vector<2x512xf32> -> vector<2x512xf32>
    %190 = arith.addf %186, %189 : vector<2x512xf32>
    %191 = vector.extract_strided_slice %190 {offsets = [0, 0], sizes = [2, 128], strides = [1, 1]} : vector<2x512xf32> to vector<2x128xf32>
    %192 = arith.negf %191 : vector<2x128xf32>
    %193 = math.exp %192 : vector<2x128xf32>
    %cst_113 = arith.constant 1.000000e+00 : f32
    %194 = vector.broadcast %cst_113 : f32 to vector<2x128xf32>
    %195 = arith.addf %194, %193 : vector<2x128xf32>
    %196 = arith.divf %194, %195 : vector<2x128xf32>
    %197 = vector.extract_strided_slice %190 {offsets = [0, 128], sizes = [2, 128], strides = [1, 1]} : vector<2x512xf32> to vector<2x128xf32>
    %198 = arith.negf %197 : vector<2x128xf32>
    %199 = math.exp %198 : vector<2x128xf32>
    %cst_114 = arith.constant 1.000000e+00 : f32
    %200 = vector.broadcast %cst_114 : f32 to vector<2x128xf32>
    %201 = arith.addf %200, %199 : vector<2x128xf32>
    %202 = arith.divf %200, %201 : vector<2x128xf32>
    %203 = vector.extract_strided_slice %190 {offsets = [0, 256], sizes = [2, 128], strides = [1, 1]} : vector<2x512xf32> to vector<2x128xf32>
    %204 = math.tanh %203 : vector<2x128xf32>
    %205 = vector.extract_strided_slice %190 {offsets = [0, 384], sizes = [2, 128], strides = [1, 1]} : vector<2x512xf32> to vector<2x128xf32>
    %206 = arith.negf %205 : vector<2x128xf32>
    %207 = math.exp %206 : vector<2x128xf32>
    %cst_115 = arith.constant 1.000000e+00 : f32
    %208 = vector.broadcast %cst_115 : f32 to vector<2x128xf32>
    %209 = arith.addf %208, %207 : vector<2x128xf32>
    %210 = arith.divf %208, %209 : vector<2x128xf32>
    %c0_116 = arith.constant 0 : index
    %c0_117 = arith.constant 0 : index
    %211 = vector.load %arg16[%c0_116, %c0_117] : memref<2x128xf32, #tpu.memory_space<vmem>>, vector<2x128xf32>
    %212 = arith.mulf %202, %211 : vector<2x128xf32>
    %213 = arith.mulf %196, %204 : vector<2x128xf32>
    %214 = arith.addf %212, %213 : vector<2x128xf32>
    %215 = math.tanh %214 : vector<2x128xf32>
    %216 = arith.mulf %210, %215 : vector<2x128xf32>
    %c0_118 = arith.constant 0 : index
    %c0_119 = arith.constant 0 : index
    %217 = vector.load %arg16[%c0_118, %c0_119] : memref<2x128xf32, #tpu.memory_space<vmem>>, vector<2x128xf32>
    tpu.vector_store %arg16[%c0_118, %c0_119], %214 {strides = array<i32>} : memref<2x128xf32, #tpu.memory_space<vmem>>, vector<2x128xf32>,
    %c0_120 = arith.constant 0 : index
    %c0_121 = arith.constant 0 : index
    %218 = vector.load %arg15[%c0_120, %c0_121] : memref<2x128xf32, #tpu.memory_space<vmem>>, vector<2x128xf32>
    tpu.vector_store %arg15[%c0_120, %c0_121], %216 {strides = array<i32>} : memref<2x128xf32, #tpu.memory_space<vmem>>, vector<2x128xf32>,
    %c10_122 = arith.constant 10 : index
    %c0_123 = arith.constant 0 : index
    %219 = vector.load %arg13[%c10_122, %c0_123] : memref<16x128xf32, #tpu.memory_space<vmem>>, vector<2x128xf32>
    tpu.vector_store %arg13[%c10_122, %c0_123], %216 {strides = array<i32>} : memref<16x128xf32, #tpu.memory_space<vmem>>, vector<2x128xf32>,
    %c4_124 = arith.constant 4 : index
    %c0_125 = arith.constant 0 : index
    %220 = vector.load %arg14[%c4_124, %c0_125] : memref<16x128xf32, #tpu.memory_space<vmem>>, vector<2x128xf32>
    tpu.vector_store %arg14[%c4_124, %c0_125], %216 {strides = array<i32>} : memref<16x128xf32, #tpu.memory_space<vmem>>, vector<2x128xf32>,
    %c12_126 = arith.constant 12 : index
    %c0_127 = arith.constant 0 : index
    %221 = vector.load %arg12[%c12_126, %c0_127] : memref<16x512xf32, #tpu.memory_space<vmem>>, vector<2x512xf32>
    %c0_128 = arith.constant 0 : index
    %c0_129 = arith.constant 0 : index
    %222 = vector.load %arg15[%c0_128, %c0_129] : memref<2x128xf32, #tpu.memory_space<vmem>>, vector<2x128xf32>
    %c0_130 = arith.constant 0 : index
    %c0_131 = arith.constant 0 : index
    %223 = vector.load %arg4[%c0_130, %c0_131] : memref<128x512xf32, #tpu.memory_space<vmem>>, vector<128x512xf32>
    %cst_132 = arith.constant dense<0.000000e+00> : vector<2x512xf32>
    %224 = tpu.matmul %222, %223, %cst_132 {dimension_numbers = #tpu.dot_dimension_numbers<[1], [0], [0], [1], [0, 0, 1, 1], [], []>} : vector<2x128xf32>, vector<128x512xf32>, vector<2x512xf32> -> vector<2x512xf32>
    %225 = arith.addf %221, %224 : vector<2x512xf32>
    %226 = vector.extract_strided_slice %225 {offsets = [0, 0], sizes = [2, 128], strides = [1, 1]} : vector<2x512xf32> to vector<2x128xf32>
    %227 = arith.negf %226 : vector<2x128xf32>
    %228 = math.exp %227 : vector<2x128xf32>
    %cst_133 = arith.constant 1.000000e+00 : f32
    %229 = vector.broadcast %cst_133 : f32 to vector<2x128xf32>
    %230 = arith.addf %229, %228 : vector<2x128xf32>
    %231 = arith.divf %229, %230 : vector<2x128xf32>
    %232 = vector.extract_strided_slice %225 {offsets = [0, 128], sizes = [2, 128], strides = [1, 1]} : vector<2x512xf32> to vector<2x128xf32>
    %233 = arith.negf %232 : vector<2x128xf32>
    %234 = math.exp %233 : vector<2x128xf32>
    %cst_134 = arith.constant 1.000000e+00 : f32
    %235 = vector.broadcast %cst_134 : f32 to vector<2x128xf32>
    %236 = arith.addf %235, %234 : vector<2x128xf32>
    %237 = arith.divf %235, %236 : vector<2x128xf32>
    %238 = vector.extract_strided_slice %225 {offsets = [0, 256], sizes = [2, 128], strides = [1, 1]} : vector<2x512xf32> to vector<2x128xf32>
    %239 = math.tanh %238 : vector<2x128xf32>
    %240 = vector.extract_strided_slice %225 {offsets = [0, 384], sizes = [2, 128], strides = [1, 1]} : vector<2x512xf32> to vector<2x128xf32>
    %241 = arith.negf %240 : vector<2x128xf32>
    %242 = math.exp %241 : vector<2x128xf32>
    %cst_135 = arith.constant 1.000000e+00 : f32
    %243 = vector.broadcast %cst_135 : f32 to vector<2x128xf32>
    %244 = arith.addf %243, %242 : vector<2x128xf32>
    %245 = arith.divf %243, %244 : vector<2x128xf32>
    %c0_136 = arith.constant 0 : index
    %c0_137 = arith.constant 0 : index
    %246 = vector.load %arg16[%c0_136, %c0_137] : memref<2x128xf32, #tpu.memory_space<vmem>>, vector<2x128xf32>
    %247 = arith.mulf %237, %246 : vector<2x128xf32>
    %248 = arith.mulf %231, %239 : vector<2x128xf32>
    %249 = arith.addf %247, %248 : vector<2x128xf32>
    %250 = math.tanh %249 : vector<2x128xf32>
    %251 = arith.mulf %245, %250 : vector<2x128xf32>
    %c0_138 = arith.constant 0 : index
    %c0_139 = arith.constant 0 : index
    %252 = vector.load %arg16[%c0_138, %c0_139] : memref<2x128xf32, #tpu.memory_space<vmem>>, vector<2x128xf32>
    tpu.vector_store %arg16[%c0_138, %c0_139], %249 {strides = array<i32>} : memref<2x128xf32, #tpu.memory_space<vmem>>, vector<2x128xf32>,
    %c0_140 = arith.constant 0 : index
    %c0_141 = arith.constant 0 : index
    %253 = vector.load %arg15[%c0_140, %c0_141] : memref<2x128xf32, #tpu.memory_space<vmem>>, vector<2x128xf32>
    tpu.vector_store %arg15[%c0_140, %c0_141], %251 {strides = array<i32>} : memref<2x128xf32, #tpu.memory_space<vmem>>, vector<2x128xf32>,
    %c12_142 = arith.constant 12 : index
    %c0_143 = arith.constant 0 : index
    %254 = vector.load %arg13[%c12_142, %c0_143] : memref<16x128xf32, #tpu.memory_space<vmem>>, vector<2x128xf32>
    tpu.vector_store %arg13[%c12_142, %c0_143], %251 {strides = array<i32>} : memref<16x128xf32, #tpu.memory_space<vmem>>, vector<2x128xf32>,
    %c2_144 = arith.constant 2 : index
    %c0_145 = arith.constant 0 : index
    %255 = vector.load %arg14[%c2_144, %c0_145] : memref<16x128xf32, #tpu.memory_space<vmem>>, vector<2x128xf32>
    tpu.vector_store %arg14[%c2_144, %c0_145], %251 {strides = array<i32>} : memref<16x128xf32, #tpu.memory_space<vmem>>, vector<2x128xf32>,
    %c14_146 = arith.constant 14 : index
    %c0_147 = arith.constant 0 : index
    %256 = vector.load %arg12[%c14_146, %c0_147] : memref<16x512xf32, #tpu.memory_space<vmem>>, vector<2x512xf32>
    %c0_148 = arith.constant 0 : index
    %c0_149 = arith.constant 0 : index
    %257 = vector.load %arg15[%c0_148, %c0_149] : memref<2x128xf32, #tpu.memory_space<vmem>>, vector<2x128xf32>
    %c0_150 = arith.constant 0 : index
    %c0_151 = arith.constant 0 : index
    %258 = vector.load %arg4[%c0_150, %c0_151] : memref<128x512xf32, #tpu.memory_space<vmem>>, vector<128x512xf32>
    %cst_152 = arith.constant dense<0.000000e+00> : vector<2x512xf32>
    %259 = tpu.matmul %257, %258, %cst_152 {dimension_numbers = #tpu.dot_dimension_numbers<[1], [0], [0], [1], [0, 0, 1, 1], [], []>} : vector<2x128xf32>, vector<128x512xf32>, vector<2x512xf32> -> vector<2x512xf32>
    %260 = arith.addf %256, %259 : vector<2x512xf32>
    %261 = vector.extract_strided_slice %260 {offsets = [0, 0], sizes = [2, 128], strides = [1, 1]} : vector<2x512xf32> to vector<2x128xf32>
    %262 = arith.negf %261 : vector<2x128xf32>
    %263 = math.exp %262 : vector<2x128xf32>
    %cst_153 = arith.constant 1.000000e+00 : f32
    %264 = vector.broadcast %cst_153 : f32 to vector<2x128xf32>
    %265 = arith.addf %264, %263 : vector<2x128xf32>
    %266 = arith.divf %264, %265 : vector<2x128xf32>
    %267 = vector.extract_strided_slice %260 {offsets = [0, 128], sizes = [2, 128], strides = [1, 1]} : vector<2x512xf32> to vector<2x128xf32>
    %268 = arith.negf %267 : vector<2x128xf32>
    %269 = math.exp %268 : vector<2x128xf32>
    %cst_154 = arith.constant 1.000000e+00 : f32
    %270 = vector.broadcast %cst_154 : f32 to vector<2x128xf32>
    %271 = arith.addf %270, %269 : vector<2x128xf32>
    %272 = arith.divf %270, %271 : vector<2x128xf32>
    %273 = vector.extract_strided_slice %260 {offsets = [0, 256], sizes = [2, 128], strides = [1, 1]} : vector<2x512xf32> to vector<2x128xf32>
    %274 = math.tanh %273 : vector<2x128xf32>
    %275 = vector.extract_strided_slice %260 {offsets = [0, 384], sizes = [2, 128], strides = [1, 1]} : vector<2x512xf32> to vector<2x128xf32>
    %276 = arith.negf %275 : vector<2x128xf32>
    %277 = math.exp %276 : vector<2x128xf32>
    %cst_155 = arith.constant 1.000000e+00 : f32
    %278 = vector.broadcast %cst_155 : f32 to vector<2x128xf32>
    %279 = arith.addf %278, %277 : vector<2x128xf32>
    %280 = arith.divf %278, %279 : vector<2x128xf32>
    %c0_156 = arith.constant 0 : index
    %c0_157 = arith.constant 0 : index
    %281 = vector.load %arg16[%c0_156, %c0_157] : memref<2x128xf32, #tpu.memory_space<vmem>>, vector<2x128xf32>
    %282 = arith.mulf %272, %281 : vector<2x128xf32>
    %283 = arith.mulf %266, %274 : vector<2x128xf32>
    %284 = arith.addf %282, %283 : vector<2x128xf32>
    %285 = math.tanh %284 : vector<2x128xf32>
    %286 = arith.mulf %280, %285 : vector<2x128xf32>
    %c0_158 = arith.constant 0 : index
    %c0_159 = arith.constant 0 : index
    %287 = vector.load %arg16[%c0_158, %c0_159] : memref<2x128xf32, #tpu.memory_space<vmem>>, vector<2x128xf32>
    tpu.vector_store %arg16[%c0_158, %c0_159], %284 {strides = array<i32>} : memref<2x128xf32, #tpu.memory_space<vmem>>, vector<2x128xf32>,
    %c0_160 = arith.constant 0 : index
    %c0_161 = arith.constant 0 : index
    %288 = vector.load %arg15[%c0_160, %c0_161] : memref<2x128xf32, #tpu.memory_space<vmem>>, vector<2x128xf32>
    tpu.vector_store %arg15[%c0_160, %c0_161], %286 {strides = array<i32>} : memref<2x128xf32, #tpu.memory_space<vmem>>, vector<2x128xf32>,
    %c14_162 = arith.constant 14 : index
    %c0_163 = arith.constant 0 : index
    %289 = vector.load %arg13[%c14_162, %c0_163] : memref<16x128xf32, #tpu.memory_space<vmem>>, vector<2x128xf32>
    tpu.vector_store %arg13[%c14_162, %c0_163], %286 {strides = array<i32>} : memref<16x128xf32, #tpu.memory_space<vmem>>, vector<2x128xf32>,
    %c0_164 = arith.constant 0 : index
    %c0_165 = arith.constant 0 : index
    %290 = vector.load %arg14[%c0_164, %c0_165] : memref<16x128xf32, #tpu.memory_space<vmem>>, vector<2x128xf32>
    tpu.vector_store %arg14[%c0_164, %c0_165], %286 {strides = array<i32>} : memref<16x128xf32, #tpu.memory_space<vmem>>, vector<2x128xf32>,
    %291 = tpu.iota {dimensions = array<i32: 1>} : vector<16x128xi32>
    %c64_i32 = arith.constant 64 : i32
    %292 = vector.broadcast %c64_i32 : i32 to vector<16x128xi32>
    %293 = arith.cmpi slt, %291, %292 : vector<16x128xi32>
    %c0_166 = arith.constant 0 : index
    %c0_167 = arith.constant 0 : index
    %294 = vector.load %arg13[%c0_166, %c0_167] : memref<16x128xf32, #tpu.memory_space<vmem>>, vector<16x128xf32>
    %c0_168 = arith.constant 0 : index
    %c0_169 = arith.constant 0 : index
    %295 = vector.load %arg14[%c0_168, %c0_169] : memref<16x128xf32, #tpu.memory_space<vmem>>, vector<16x128xf32>
    %296 = arith.select %293, %294, %295 : vector<16x128xi1>, vector<16x128xf32>
    %c0_170 = arith.constant 0 : index
    %c0_171 = arith.constant 0 : index
    %297 = vector.load %arg5[%c0_170, %c0_171] : memref<128x32xf32, #tpu.memory_space<vmem>>, vector<128x32xf32>
    %cst_172 = arith.constant dense<0.000000e+00> : vector<16x32xf32>
    %298 = tpu.matmul %296, %297, %cst_172 {dimension_numbers = #tpu.dot_dimension_numbers<[1], [0], [0], [1], [0, 0, 1, 1], [], []>} : vector<16x128xf32>, vector<128x32xf32>, vector<16x32xf32> -> vector<16x32xf32>
    %c0_173 = arith.constant 0 : index
    %c0_174 = arith.constant 0 : index
    %299 = vector.load %arg6[%c0_173, %c0_174] : memref<1x32xf32, #tpu.memory_space<vmem>>, vector<1x32xf32>
    %300 = vector.broadcast %299 : vector<1x32xf32> to vector<16x32xf32>
    %301 = arith.addf %298, %300 : vector<16x32xf32>
    %cst_175 = arith.constant dense<0.000000e+00> : vector<16xf32>
    %302 = vector.multi_reduction <add>, %301, %cst_175 [1] : vector<16x32xf32> to vector<16xf32>
    %303 = vector.shape_cast %302 : vector<16xf32> to vector<16x1xf32>
    %cst_176 = arith.constant 3.200000e+01 : f32
    %304 = vector.broadcast %cst_176 : f32 to vector<16x1xf32>
    %305 = arith.divf %303, %304 : vector<16x1xf32>
    %306 = vector.broadcast %305 : vector<16x1xf32> to vector<16x32xf32>
    %307 = arith.subf %301, %306 : vector<16x32xf32>
    %308 = arith.mulf %307, %307 : vector<16x32xf32>
    %cst_177 = arith.constant dense<0.000000e+00> : vector<16xf32>
    %309 = vector.multi_reduction <add>, %308, %cst_177 [1] : vector<16x32xf32> to vector<16xf32>
    %310 = vector.shape_cast %309 : vector<16xf32> to vector<16x1xf32>
    %cst_178 = arith.constant 3.200000e+01 : f32
    %311 = vector.broadcast %cst_178 : f32 to vector<16x1xf32>
    %312 = arith.divf %310, %311 : vector<16x1xf32>
    %313 = vector.broadcast %305 : vector<16x1xf32> to vector<16x32xf32>
    %314 = arith.subf %301, %313 : vector<16x32xf32>
    %cst_179 = arith.constant 9.99999974E-6 : f32
    %315 = vector.broadcast %cst_179 : f32 to vector<16x1xf32>
    %316 = arith.addf %312, %315 : vector<16x1xf32>
    %317 = math.rsqrt %316 : vector<16x1xf32>
    %318 = vector.broadcast %317 : vector<16x1xf32> to vector<16x32xf32>
    %319 = arith.mulf %314, %318 : vector<16x32xf32>
    %c0_180 = arith.constant 0 : index
    %c0_181 = arith.constant 0 : index
    %320 = vector.load %arg7[%c0_180, %c0_181] : memref<1x32xf32, #tpu.memory_space<vmem>>, vector<1x32xf32>
    %321 = vector.broadcast %320 : vector<1x32xf32> to vector<16x32xf32>
    %322 = arith.mulf %319, %321 : vector<16x32xf32>
    %c0_182 = arith.constant 0 : index
    %c0_183 = arith.constant 0 : index
    %323 = vector.load %arg8[%c0_182, %c0_183] : memref<1x32xf32, #tpu.memory_space<vmem>>, vector<1x32xf32>
    %324 = vector.broadcast %323 : vector<1x32xf32> to vector<16x32xf32>
    %325 = arith.addf %322, %324 : vector<16x32xf32>
    %cst_184 = arith.constant 0.000000e+00 : f32
    %326 = vector.broadcast %cst_184 : f32 to vector<16x32xf32>
    %327 = arith.maximumf %325, %326 : vector<16x32xf32>
    %c0_185 = arith.constant 0 : index
    %c0_186 = arith.constant 0 : index
    %328 = vector.load %arg9[%c0_185, %c0_186] : memref<32x4xf32, #tpu.memory_space<vmem>>, vector<32x4xf32>
    %cst_187 = arith.constant dense<0.000000e+00> : vector<16x4xf32>
    %329 = tpu.matmul %327, %328, %cst_187 {dimension_numbers = #tpu.dot_dimension_numbers<[1], [0], [0], [1], [0, 0, 1, 1], [], []>} : vector<16x32xf32>, vector<32x4xf32>, vector<16x4xf32> -> vector<16x4xf32>
    %c0_188 = arith.constant 0 : index
    %c0_189 = arith.constant 0 : index
    %330 = vector.load %arg10[%c0_188, %c0_189] : memref<1x4xf32, #tpu.memory_space<vmem>>, vector<1x4xf32>
    %331 = vector.broadcast %330 : vector<1x4xf32> to vector<16x4xf32>
    %332 = arith.addf %329, %331 : vector<16x4xf32>
    %c0_190 = arith.constant 0 : index
    %c0_191 = arith.constant 0 : index
    %333 = vector.load %arg11[%c0_190, %c0_191] : memref<16x4xf32, #tpu.memory_space<vmem>>, vector<16x4xf32>
    tpu.vector_store %arg11[%c0_190, %c0_191], %332 {strides = array<i32>} : memref<16x4xf32, #tpu.memory_space<vmem>>, vector<16x4xf32>,
    return
  }
  func.func @transform_0(%arg0: i32) -> (i32, i32) {
    %c0_i32 = arith.constant 0 : i32
    %c0_i32_0 = arith.constant 0 : i32
    %c0_i32_1 = arith.constant 0 : i32
    return %c0_i32, %c0_i32_0 : i32, i32
  }
  func.func @transform_1(%arg0: i32) -> (i32, i32) {
    %c0_i32 = arith.constant 0 : i32
    %c0_i32_0 = arith.constant 0 : i32
    %c0_i32_1 = arith.constant 0 : i32
    return %c0_i32, %c0_i32_0 : i32, i32
  }
  func.func @transform_2(%arg0: i32) -> (i32, i32) {
    %c0_i32 = arith.constant 0 : i32
    %c0_i32_0 = arith.constant 0 : i32
    %c0_i32_1 = arith.constant 0 : i32
    return %c0_i32, %c0_i32_0 : i32, i32
  }
  func.func @transform_3(%arg0: i32) -> (i32, i32) {
    %c0_i32 = arith.constant 0 : i32
    %c0_i32_0 = arith.constant 0 : i32
    %c0_i32_1 = arith.constant 0 : i32
    return %c0_i32, %c0_i32_0 : i32, i32
  }
  func.func @transform_4(%arg0: i32) -> (i32, i32) {
    %c0_i32 = arith.constant 0 : i32
    %c0_i32_0 = arith.constant 0 : i32
    %c0_i32_1 = arith.constant 0 : i32
    return %c0_i32, %c0_i32_0 : i32, i32
  }
  func.func @transform_5(%arg0: i32) -> (i32, i32) {
    %c0_i32 = arith.constant 0 : i32
    %c0_i32_0 = arith.constant 0 : i32
    %c0_i32_1 = arith.constant 0 : i32
    return %c0_i32, %c0_i32_0 : i32, i32
  }
  func.func @transform_6(%arg0: i32) -> (i32, i32) {
    %c0_i32 = arith.constant 0 : i32
    %c0_i32_0 = arith.constant 0 : i32
    %c0_i32_1 = arith.constant 0 : i32
    return %c0_i32, %c0_i32_0 : i32, i32
  }
  func.func @transform_7(%arg0: i32) -> (i32, i32) {
    %c0_i32 = arith.constant 0 : i32
    %c0_i32_0 = arith.constant 0 : i32
    %c0_i32_1 = arith.constant 0 : i32
    return %c0_i32, %c0_i32_0 : i32, i32
  }
  func.func @transform_8(%arg0: i32) -> (i32, i32) {
    %c0_i32 = arith.constant 0 : i32
    %c0_i32_0 = arith.constant 0 : i32
    %c0_i32_1 = arith.constant 0 : i32
    return %c0_i32, %c0_i32_0 : i32, i32
  }
  func.func @transform_9(%arg0: i32) -> (i32, i32) {
    %c0_i32 = arith.constant 0 : i32
    %c0_i32_0 = arith.constant 0 : i32
    %c0_i32_1 = arith.constant 0 : i32
    return %c0_i32, %c0_i32_0 : i32, i32
  }
  func.func @transform_10(%arg0: i32) -> (i32, i32) {
    %c0_i32 = arith.constant 0 : i32
    %c0_i32_0 = arith.constant 0 : i32
    %c0_i32_1 = arith.constant 0 : i32
    return %c0_i32, %c0_i32_0 : i32, i32
  }
}

</mosaic_0001>

<llo_original>
// kernel: model_forward.1
$region0: #{model_forward.1}
  #allocation0 [shape = 'u32[]', space=smem, size = 0x4, offset = 0x4, fixed_abs, tag = 'smem constant byte address 0x4 - core index']
  #allocation1 [shape = 'u32[144,128]{1,0:T(1,128)}', space=vmem, size = 0x12000, scoped, tag = 'internal scratch']
  #allocation2 [shape = 'f32[16,512]{1,0:T(8,128)}', space=vmem, size = 0x8000, scoped, tag = 'scratch operand']
  #allocation3 [shape = 'f32[16,128]{1,0:T(8,128)}', space=vmem, size = 0x2000, scoped, tag = 'scratch operand']
  #allocation4 [shape = 'f32[16,128]{1,0:T(8,128)}', space=vmem, size = 0x2000, scoped, tag = 'scratch operand']
  #allocation5 [shape = 'f32[2,128]{1,0:T(2,128)}', space=vmem, size = 0x400, scoped, tag = 'scratch operand']
  #allocation6 [shape = 'f32[2,128]{1,0:T(2,128)}', space=vmem, size = 0x400, scoped, tag = 'scratch operand']
  %s0 = inlined_call_operand.vmem [shape: f32[16,1792], index: 0, kind: input, shape index: {}]
  %s1 = inlined_call_operand.vmem [shape: f32[1792,512], index: 1, kind: input, shape index: {}]
  %s2 = inlined_call_operand.vmem [shape: f32[1,512], index: 2, kind: input, shape index: {}]
  %s3 = inlined_call_operand.vmem [shape: f32[128,512], index: 3, kind: input, shape index: {}]
  %s4 = inlined_call_operand.vmem [shape: f32[128,32], index: 4, kind: input, shape index: {}]
  %s5 = inlined_call_operand.vmem [shape: f32[1,32], index: 5, kind: input, shape index: {}]
  %s6 = inlined_call_operand.vmem [shape: f32[1,32], index: 6, kind: input, shape index: {}]
  %s7 = inlined_call_operand.vmem [shape: f32[1,32], index: 7, kind: input, shape index: {}]
  %s8 = inlined_call_operand.vmem [shape: f32[32,4], index: 8, kind: input, shape index: {}]
  %s9 = inlined_call_operand.vmem [shape: f32[1,4], index: 9, kind: input, shape index: {}]
  %s10 = inlined_call_operand.vmem [shape: f32[16,4], index: 10, kind: output, shape index: {}]
  %s11 = sld [smem:[#allocation0]]
  $region50: #{model_forward.1} parent=0
    _
  %s13 = ssub.s32 1, %s11
  %s14 = scalar_select 0, %s13, %s11
  // Predicated region
  $region2: #{model_forward.1} parent=0 // pred_check
    _
  $region3: #{model_forward.1} parent=0 // pred_check_branch
    %16 = sbr.rel (0) target = $region5
  $region4: #{model_forward.1} parent=0 // pred_region
    _
  $region5: #{model_forward.1} parent=0 // pred_fallthru
    _
  // Predicated region
  $region6: #{model_forward.1} parent=0 // pred_check
    _
  $region7: #{model_forward.1} parent=0 // pred_check_branch
    %18 = sbr.rel (0) target = $region9
  $region8: #{model_forward.1} parent=0 // pred_region
    _
  $region9: #{model_forward.1} parent=0 // pred_fallthru
    _
  // Predicated region
  $region10: #{model_forward.1} parent=0 // pred_check
    _
  $region11: #{model_forward.1} parent=0 // pred_check_branch
    %20 = sbr.rel (0) target = $region13
  $region12: #{model_forward.1} parent=0 // pred_region
    _
  $region13: #{model_forward.1} parent=0 // pred_fallthru
    _
  // Predicated region
  $region14: #{model_forward.1} parent=0 // pred_check
    _
  $region15: #{model_forward.1} parent=0 // pred_check_branch
    %22 = sbr.rel (0) target = $region17
  $region16: #{model_forward.1} parent=0 // pred_region
    _
  $region17: #{model_forward.1} parent=0 // pred_fallthru
    _
  // Predicated region
  $region18: #{model_forward.1} parent=0 // pred_check
    _
  $region19: #{model_forward.1} parent=0 // pred_check_branch
    %24 = sbr.rel (0) target = $region21
  $region20: #{model_forward.1} parent=0 // pred_region
    _
  $region21: #{model_forward.1} parent=0 // pred_fallthru
    _
  // Predicated region
  $region22: #{model_forward.1} parent=0 // pred_check
    _
  $region23: #{model_forward.1} parent=0 // pred_check_branch
    %26 = sbr.rel (0) target = $region25
  $region24: #{model_forward.1} parent=0 // pred_region
    _
  $region25: #{model_forward.1} parent=0 // pred_fallthru
    _
  // Predicated region
  $region26: #{model_forward.1} parent=0 // pred_check
    _
  $region27: #{model_forward.1} parent=0 // pred_check_branch
    %28 = sbr.rel (0) target = $region29
  $region28: #{model_forward.1} parent=0 // pred_region
    _
  $region29: #{model_forward.1} parent=0 // pred_fallthru
    _
  // Predicated region
  $region30: #{model_forward.1} parent=0 // pred_check
    _
  $region31: #{model_forward.1} parent=0 // pred_check_branch
    %30 = sbr.rel (0) target = $region33
  $region32: #{model_forward.1} parent=0 // pred_region
    _
  $region33: #{model_forward.1} parent=0 // pred_fallthru
    _
  // Predicated region
  $region34: #{model_forward.1} parent=0 // pred_check
    _
  $region35: #{model_forward.1} parent=0 // pred_check_branch
    %32 = sbr.rel (0) target = $region37
  $region36: #{model_forward.1} parent=0 // pred_region
    _
  $region37: #{model_forward.1} parent=0 // pred_fallthru
    _
  // Predicated region
  $region38: #{model_forward.1} parent=0 // pred_check
    _
  $region39: #{model_forward.1} parent=0 // pred_check_branch
    %34 = sbr.rel (0) target = $region41
  $region40: #{model_forward.1} parent=0 // pred_region
    _
  $region41: #{model_forward.1} parent=0 // pred_fallthru
    _
  %v35 = vld [vmem:[%s0] sm:$0xff]
  %v36 = vld [vmem:[%s0 + $0x8] sm:$0xff]
  %v37 = vld [vmem:[%s0 + $0x10] sm:$0xff]
  %v38 = vld [vmem:[%s0 + $0x18] sm:$0xff]
  %v39 = vld [vmem:[%s0 + $0x20] sm:$0xff]
  %v40 = vld [vmem:[%s0 + $0x28] sm:$0xff]
  %v41 = vld [vmem:[%s0 + $0x30] sm:$0xff]
  %v42 = vld [vmem:[%s0 + $0x38] sm:$0xff]
  %v43 = vld [vmem:[%s0 + $0x40] sm:$0xff]
  %v44 = vld [vmem:[%s0 + $0x48] sm:$0xff]
  %v45 = vld [vmem:[%s0 + $0x50] sm:$0xff]
  %v46 = vld [vmem:[%s0 + $0x58] sm:$0xff]
  %v47 = vld [vmem:[%s0 + $0x60] sm:$0xff]
  %v48 = vld [vmem:[%s0 + $0x68] sm:$0xff]
  %v49 = vld [vmem:[%s0 + $0x70] sm:$0xff]
  %v50 = vld [vmem:[%s0 + $0x78] sm:$0xff]
  %v51 = vld [vmem:[%s0 + $0x80] sm:$0xff]
  %v52 = vld [vmem:[%s0 + $0x88] sm:$0xff]
  %v53 = vld [vmem:[%s0 + $0x90] sm:$0xff]
  %v54 = vld [vmem:[%s0 + $0x98] sm:$0xff]
  %v55 = vld [vmem:[%s0 + $0xa0] sm:$0xff]
  %v56 = vld [vmem:[%s0 + $0xa8] sm:$0xff]
  %v57 = vld [vmem:[%s0 + $0xb0] sm:$0xff]
  %v58 = vld [vmem:[%s0 + $0xb8] sm:$0xff]
  %v59 = vld [vmem:[%s0 + $0xc0] sm:$0xff]
  %v60 = vld [vmem:[%s0 + $0xc8] sm:$0xff]
  %v61 = vld [vmem:[%s0 + $0xd0] sm:$0xff]
  %v62 = vld [vmem:[%s0 + $0xd8] sm:$0xff]
  %v63 = vld [vmem:[%s1] sm:$0xff]
  %v64 = vld [vmem:[%s1 + $0x8] sm:$0xff]
  %v65 = vld [vmem:[%s1 + $0x10] sm:$0xff]
  %v66 = vld [vmem:[%s1 + $0x18] sm:$0xff]
  %v67 = vld [vmem:[%s1 + $0x20] sm:$0xff]
  %v68 = vld [vmem:[%s1 + $0x28] sm:$0xff]
  %v69 = vld [vmem:[%s1 + $0x30] sm:$0xff]
  %v70 = vld [vmem:[%s1 + $0x38] sm:$0xff]
  %v71 = vld [vmem:[%s1 + $0x40] sm:$0xff]
  %v72 = vld [vmem:[%s1 + $0x48] sm:$0xff]
  %v73 = vld [vmem:[%s1 + $0x50] sm:$0xff]
  %v74 = vld [vmem:[%s1 + $0x58] sm:$0xff]
  %v75 = vld [vmem:[%s1 + $0x60] sm:$0xff]
  %v76 = vld [vmem:[%s1 + $0x68] sm:$0xff]
  %v77 = vld [vmem:[%s1 + $0x70] sm:$0xff]
  %v78 = vld [vmem:[%s1 + $0x78] sm:$0xff]
  %v79 = vld [vmem:[%s1 + $0x80] sm:$0xff]
  %v80 = vld [vmem:[%s1 + $0x88] sm:$0xff]
  %v81 = vld [vmem:[%s1 + $0x90] sm:$0xff]
  %v82 = vld [vmem:[%s1 + $0x98] sm:$0xff]
  %v83 = vld [vmem:[%s1 + $0xa0] sm:$0xff]
  %v84 = vld [vmem:[%s1 + $0xa8] sm:$0xff]
  %v85 = vld [vmem:[%s1 + $0xb0] sm:$0xff]
  %v86 = vld [vmem:[%s1 + $0xb8] sm:$0xff]
  %v87 = vld [vmem:[%s1 + $0xc0] sm:$0xff]
  %v88 = vld [vmem:[%s1 + $0xc8] sm:$0xff]
  %v89 = vld [vmem:[%s1 + $0xd0] sm:$0xff]
  %v90 = vld [vmem:[%s1 + $0xd8] sm:$0xff]
  %v91 = vld [vmem:[%s1 + $0xe0] sm:$0xff]
  %v92 = vld [vmem:[%s1 + $0xe8] sm:$0xff]
  %v93 = vld [vmem:[%s1 + $0xf0] sm:$0xff]
  %v94 = vld [vmem:[%s1 + $0xf8] sm:$0xff]
  %v95 = vld [vmem:[%s1 + $0x100] sm:$0xff]
  %v96 = vld [vmem:[%s1 + $0x108] sm:$0xff]
  %v97 = vld [vmem:[%s1 + $0x110] sm:$0xff]
  %v98 = vld [vmem:[%s1 + $0x118] sm:$0xff]
  %v99 = vld [vmem:[%s1 + $0x120] sm:$0xff]
  %v100 = vld [vmem:[%s1 + $0x128] sm:$0xff]
  %v101 = vld [vmem:[%s1 + $0x130] sm:$0xff]
  %v102 = vld [vmem:[%s1 + $0x138] sm:$0xff]
  %v103 = vld [vmem:[%s1 + $0x140] sm:$0xff]
  %v104 = vld [vmem:[%s1 + $0x148] sm:$0xff]
  %v105 = vld [vmem:[%s1 + $0x150] sm:$0xff]
  %v106 = vld [vmem:[%s1 + $0x158] sm:$0xff]
  %v107 = vld [vmem:[%s1 + $0x160] sm:$0xff]
  %v108 = vld [vmem:[%s1 + $0x168] sm:$0xff]
  %v109 = vld [vmem:[%s1 + $0x170] sm:$0xff]
  %v110 = vld [vmem:[%s1 + $0x178] sm:$0xff]
  %v111 = vld [vmem:[%s1 + $0x180] sm:$0xff]
  %v112 = vld [vmem:[%s1 + $0x188] sm:$0xff]
  %v113 = vld [vmem:[%s1 + $0x190] sm:$0xff]
  %v114 = vld [vmem:[%s1 + $0x198] sm:$0xff]
  %v115 = vld [vmem:[%s1 + $0x1a0] sm:$0xff]
  %v116 = vld [vmem:[%s1 + $0x1a8] sm:$0xff]
  %v117 = vld [vmem:[%s1 + $0x1b0] sm:$0xff]
  %v118 = vld [vmem:[%s1 + $0x1b8] sm:$0xff]
  %v119 = vld [vmem:[%s1 + $0x1c0] sm:$0xff]
  %v120 = vld [vmem:[%s1 + $0x1c8] sm:$0xff]
  %v121 = vld [vmem:[%s1 + $0x1d0] sm:$0xff]
  %v122 = vld [vmem:[%s1 + $0x1d8] sm:$0xff]
  %v123 = vld [vmem:[%s1 + $0x1e0] sm:$0xff]
  %v124 = vld [vmem:[%s1 + $0x1e8] sm:$0xff]
  %v125 = vld [vmem:[%s1 + $0x1f0] sm:$0xff]
  %v126 = vld [vmem:[%s1 + $0x1f8] sm:$0xff]
  %v127 = vld [vmem:[%s1 + $0x200] sm:$0xff]
  %v128 = vld [vmem:[%s1 + $0x208] sm:$0xff]
  %v129 = vld [vmem:[%s1 + $0x210] sm:$0xff]
  %v130 = vld [vmem:[%s1 + $0x218] sm:$0xff]
  %v131 = vld [vmem:[%s1 + $0x220] sm:$0xff]
  %v132 = vld [vmem:[%s1 + $0x228] sm:$0xff]
  %v133 = vld [vmem:[%s1 + $0x230] sm:$0xff]
  %v134 = vld [vmem:[%s1 + $0x238] sm:$0xff]
  %v135 = vld [vmem:[%s1 + $0x240] sm:$0xff]
  %v136 = vld [vmem:[%s1 + $0x248] sm:$0xff]
  %v137 = vld [vmem:[%s1 + $0x250] sm:$0xff]
  %v138 = vld [vmem:[%s1 + $0x258] sm:$0xff]
  %v139 = vld [vmem:[%s1 + $0x260] sm:$0xff]
  %v140 = vld [vmem:[%s1 + $0x268] sm:$0xff]
  %v141 = vld [vmem:[%s1 + $0x270] sm:$0xff]
  %v142 = vld [vmem:[%s1 + $0x278] sm:$0xff]
  %v143 = vld [vmem:[%s1 + $0x280] sm:$0xff]
  %v144 = vld [vmem:[%s1 + $0x288] sm:$0xff]
  %v145 = vld [vmem:[%s1 + $0x290] sm:$0xff]
  %v146 = vld [vmem:[%s1 + $0x298] sm:$0xff]
  %v147 = vld [vmem:[%s1 + $0x2a0] sm:$0xff]
  %v148 = vld [vmem:[%s1 + $0x2a8] sm:$0xff]
  %v149 = vld [vmem:[%s1 + $0x2b0] sm:$0xff]
  %v150 = vld [vmem:[%s1 + $0x2b8] sm:$0xff]
  %v151 = vld [vmem:[%s1 + $0x2c0] sm:$0xff]
  %v152 = vld [vmem:[%s1 + $0x2c8] sm:$0xff]
  %v153 = vld [vmem:[%s1 + $0x2d0] sm:$0xff]
  %v154 = vld [vmem:[%s1 + $0x2d8] sm:$0xff]
  %v155 = vld [vmem:[%s1 + $0x2e0] sm:$0xff]
  %v156 = vld [vmem:[%s1 + $0x2e8] sm:$0xff]
  %v157 = vld [vmem:[%s1 + $0x2f0] sm:$0xff]
  %v158 = vld [vmem:[%s1 + $0x2f8] sm:$0xff]
  %v159 = vld [vmem:[%s1 + $0x300] sm:$0xff]
  %v160 = vld [vmem:[%s1 + $0x308] sm:$0xff]
  %v161 = vld [vmem:[%s1 + $0x310] sm:$0xff]
  %v162 = vld [vmem:[%s1 + $0x318] sm:$0xff]
  %v163 = vld [vmem:[%s1 + $0x320] sm:$0xff]
  %v164 = vld [vmem:[%s1 + $0x328] sm:$0xff]
  %v165 = vld [vmem:[%s1 + $0x330] sm:$0xff]
  %v166 = vld [vmem:[%s1 + $0x338] sm:$0xff]
  %v167 = vld [vmem:[%s1 + $0x340] sm:$0xff]
  %v168 = vld [vmem:[%s1 + $0x348] sm:$0xff]
  %v169 = vld [vmem:[%s1 + $0x350] sm:$0xff]
  %v170 = vld [vmem:[%s1 + $0x358] sm:$0xff]
  %v171 = vld [vmem:[%s1 + $0x360] sm:$0xff]
  %v172 = vld [vmem:[%s1 + $0x368] sm:$0xff]
  %v173 = vld [vmem:[%s1 + $0x370] sm:$0xff]
  %v174 = vld [vmem:[%s1 + $0x378] sm:$0xff]
  %v175 = vld [vmem:[%s1 + $0x380] sm:$0xff]
  %v176 = vld [vmem:[%s1 + $0x388] sm:$0xff]
  %v177 = vld [vmem:[%s1 + $0x390] sm:$0xff]
  %v178 = vld [vmem:[%s1 + $0x398] sm:$0xff]
  %v179 = vld [vmem:[%s1 + $0x3a0] sm:$0xff]
  %v180 = vld [vmem:[%s1 + $0x3a8] sm:$0xff]
  %v181 = vld [vmem:[%s1 + $0x3b0] sm:$0xff]
  %v182 = vld [vmem:[%s1 + $0x3b8] sm:$0xff]
  %v183 = vld [vmem:[%s1 + $0x3c0] sm:$0xff]
  %v184 = vld [vmem:[%s1 + $0x3c8] sm:$0xff]
  %v185 = vld [vmem:[%s1 + $0x3d0] sm:$0xff]
  %v186 = vld [vmem:[%s1 + $0x3d8] sm:$0xff]
  %v187 = vld [vmem:[%s1 + $0x3e0] sm:$0xff]
  %v188 = vld [vmem:[%s1 + $0x3e8] sm:$0xff]
  %v189 = vld [vmem:[%s1 + $0x3f0] sm:$0xff]
  %v190 = vld [vmem:[%s1 + $0x3f8] sm:$0xff]
  %v191 = vld [vmem:[%s1 + $0x400] sm:$0xff]
  %v192 = vld [vmem:[%s1 + $0x408] sm:$0xff]
  %v193 = vld [vmem:[%s1 + $0x410] sm:$0xff]
  %v194 = vld [vmem:[%s1 + $0x418] sm:$0xff]
  %v195 = vld [vmem:[%s1 + $0x420] sm:$0xff]
  %v196 = vld [vmem:[%s1 + $0x428] sm:$0xff]
  %v197 = vld [vmem:[%s1 + $0x430] sm:$0xff]
  %v198 = vld [vmem:[%s1 + $0x438] sm:$0xff]
  %v199 = vld [vmem:[%s1 + $0x440] sm:$0xff]
  %v200 = vld [vmem:[%s1 + $0x448] sm:$0xff]
  %v201 = vld [vmem:[%s1 + $0x450] sm:$0xff]
  %v202 = vld [vmem:[%s1 + $0x458] sm:$0xff]
  %v203 = vld [vmem:[%s1 + $0x460] sm:$0xff]
  %v204 = vld [vmem:[%s1 + $0x468] sm:$0xff]
  %v205 = vld [vmem:[%s1 + $0x470] sm:$0xff]
  %v206 = vld [vmem:[%s1 + $0x478] sm:$0xff]
  %v207 = vld [vmem:[%s1 + $0x480] sm:$0xff]
  %v208 = vld [vmem:[%s1 + $0x488] sm:$0xff]
  %v209 = vld [vmem:[%s1 + $0x490] sm:$0xff]
  %v210 = vld [vmem:[%s1 + $0x498] sm:$0xff]
  %v211 = vld [vmem:[%s1 + $0x4a0] sm:$0xff]
  %v212 = vld [vmem:[%s1 + $0x4a8] sm:$0xff]
  %v213 = vld [vmem:[%s1 + $0x4b0] sm:$0xff]
  %v214 = vld [vmem:[%s1 + $0x4b8] sm:$0xff]
  %v215 = vld [vmem:[%s1 + $0x4c0] sm:$0xff]
  %v216 = vld [vmem:[%s1 + $0x4c8] sm:$0xff]
  %v217 = vld [vmem:[%s1 + $0x4d0] sm:$0xff]
  %v218 = vld [vmem:[%s1 + $0x4d8] sm:$0xff]
  %v219 = vld [vmem:[%s1 + $0x4e0] sm:$0xff]
  %v220 = vld [vmem:[%s1 + $0x4e8] sm:$0xff]
  %v221 = vld [vmem:[%s1 + $0x4f0] sm:$0xff]
  %v222 = vld [vmem:[%s1 + $0x4f8] sm:$0xff]
  %v223 = vld [vmem:[%s1 + $0x500] sm:$0xff]
  %v224 = vld [vmem:[%s1 + $0x508] sm:$0xff]
  %v225 = vld [vmem:[%s1 + $0x510] sm:$0xff]
  %v226 = vld [vmem:[%s1 + $0x518] sm:$0xff]
  %v227 = vld [vmem:[%s1 + $0x520] sm:$0xff]
  %v228 = vld [vmem:[%s1 + $0x528] sm:$0xff]
  %v229 = vld [vmem:[%s1 + $0x530] sm:$0xff]
  %v230 = vld [vmem:[%s1 + $0x538] sm:$0xff]
  %v231 = vld [vmem:[%s1 + $0x540] sm:$0xff]
  %v232 = vld [vmem:[%s1 + $0x548] sm:$0xff]
  %v233 = vld [vmem:[%s1 + $0x550] sm:$0xff]
  %v234 = vld [vmem:[%s1 + $0x558] sm:$0xff]
  %v235 = vld [vmem:[%s1 + $0x560] sm:$0xff]
  %v236 = vld [vmem:[%s1 + $0x568] sm:$0xff]
  %v237 = vld [vmem:[%s1 + $0x570] sm:$0xff]
  %v238 = vld [vmem:[%s1 + $0x578] sm:$0xff]
  %v239 = vld [vmem:[%s1 + $0x580] sm:$0xff]
  %v240 = vld [vmem:[%s1 + $0x588] sm:$0xff]
  %v241 = vld [vmem:[%s1 + $0x590] sm:$0xff]
  %v242 = vld [vmem:[%s1 + $0x598] sm:$0xff]
  %v243 = vld [vmem:[%s1 + $0x5a0] sm:$0xff]
  %v244 = vld [vmem:[%s1 + $0x5a8] sm:$0xff]
  %v245 = vld [vmem:[%s1 + $0x5b0] sm:$0xff]
  %v246 = vld [vmem:[%s1 + $0x5b8] sm:$0xff]
  %v247 = vld [vmem:[%s1 + $0x5c0] sm:$0xff]
  %v248 = vld [vmem:[%s1 + $0x5c8] sm:$0xff]
  %v249 = vld [vmem:[%s1 + $0x5d0] sm:$0xff]
  %v250 = vld [vmem:[%s1 + $0x5d8] sm:$0xff]
  %v251 = vld [vmem:[%s1 + $0x5e0] sm:$0xff]
  %v252 = vld [vmem:[%s1 + $0x5e8] sm:$0xff]
  %v253 = vld [vmem:[%s1 + $0x5f0] sm:$0xff]
  %v254 = vld [vmem:[%s1 + $0x5f8] sm:$0xff]
  %v255 = vld [vmem:[%s1 + $0x600] sm:$0xff]
  %v256 = vld [vmem:[%s1 + $0x608] sm:$0xff]
  %v257 = vld [vmem:[%s1 + $0x610] sm:$0xff]
  %v258 = vld [vmem:[%s1 + $0x618] sm:$0xff]
  %v259 = vld [vmem:[%s1 + $0x620] sm:$0xff]
  %v260 = vld [vmem:[%s1 + $0x628] sm:$0xff]
  %v261 = vld [vmem:[%s1 + $0x630] sm:$0xff]
  %v262 = vld [vmem:[%s1 + $0x638] sm:$0xff]
  %v263 = vld [vmem:[%s1 + $0x640] sm:$0xff]
  %v264 = vld [vmem:[%s1 + $0x648] sm:$0xff]
  %v265 = vld [vmem:[%s1 + $0x650] sm:$0xff]
  %v266 = vld [vmem:[%s1 + $0x658] sm:$0xff]
  %v267 = vld [vmem:[%s1 + $0x660] sm:$0xff]
  %v268 = vld [vmem:[%s1 + $0x668] sm:$0xff]
  %v269 = vld [vmem:[%s1 + $0x670] sm:$0xff]
  %v270 = vld [vmem:[%s1 + $0x678] sm:$0xff]
  %v271 = vld [vmem:[%s1 + $0x680] sm:$0xff]
  %v272 = vld [vmem:[%s1 + $0x688] sm:$0xff]
  %v273 = vld [vmem:[%s1 + $0x690] sm:$0xff]
  %v274 = vld [vmem:[%s1 + $0x698] sm:$0xff]
  %v275 = vld [vmem:[%s1 + $0x6a0] sm:$0xff]
  %v276 = vld [vmem:[%s1 + $0x6a8] sm:$0xff]
  %v277 = vld [vmem:[%s1 + $0x6b0] sm:$0xff]
  %v278 = vld [vmem:[%s1 + $0x6b8] sm:$0xff]
  %v279 = vld [vmem:[%s1 + $0x6c0] sm:$0xff]
  %v280 = vld [vmem:[%s1 + $0x6c8] sm:$0xff]
  %v281 = vld [vmem:[%s1 + $0x6d0] sm:$0xff]
  %v282 = vld [vmem:[%s1 + $0x6d8] sm:$0xff]
  %v283 = vld [vmem:[%s1 + $0x6e0] sm:$0xff]
  %v284 = vld [vmem:[%s1 + $0x6e8] sm:$0xff]
  %v285 = vld [vmem:[%s1 + $0x6f0] sm:$0xff]
  %v286 = vld [vmem:[%s1 + $0x6f8] sm:$0xff]
  %v287 = vld [vmem:[%s1 + $0x700] sm:$0xff]
  %v288 = vld [vmem:[%s1 + $0x708] sm:$0xff]
  %v289 = vld [vmem:[%s1 + $0x710] sm:$0xff]
  %v290 = vld [vmem:[%s1 + $0x718] sm:$0xff]
  %v291 = vld [vmem:[%s1 + $0x720] sm:$0xff]
  %v292 = vld [vmem:[%s1 + $0x728] sm:$0xff]
  %v293 = vld [vmem:[%s1 + $0x730] sm:$0xff]
  %v294 = vld [vmem:[%s1 + $0x738] sm:$0xff]
  %v295 = vld [vmem:[%s1 + $0x740] sm:$0xff]
  %v296 = vld [vmem:[%s1 + $0x748] sm:$0xff]
  %v297 = vld [vmem:[%s1 + $0x750] sm:$0xff]
  %v298 = vld [vmem:[%s1 + $0x758] sm:$0xff]
  %v299 = vld [vmem:[%s1 + $0x760] sm:$0xff]
  %v300 = vld [vmem:[%s1 + $0x768] sm:$0xff]
  %v301 = vld [vmem:[%s1 + $0x770] sm:$0xff]
  %v302 = vld [vmem:[%s1 + $0x778] sm:$0xff]
  %v303 = vld [vmem:[%s1 + $0x780] sm:$0xff]
  %v304 = vld [vmem:[%s1 + $0x788] sm:$0xff]
  %v305 = vld [vmem:[%s1 + $0x790] sm:$0xff]
  %v306 = vld [vmem:[%s1 + $0x798] sm:$0xff]
  %v307 = vld [vmem:[%s1 + $0x7a0] sm:$0xff]
  %v308 = vld [vmem:[%s1 + $0x7a8] sm:$0xff]
  %v309 = vld [vmem:[%s1 + $0x7b0] sm:$0xff]
  %v310 = vld [vmem:[%s1 + $0x7b8] sm:$0xff]
  %v311 = vld [vmem:[%s1 + $0x7c0] sm:$0xff]
  %v312 = vld [vmem:[%s1 + $0x7c8] sm:$0xff]
  %v313 = vld [vmem:[%s1 + $0x7d0] sm:$0xff]
  %v314 = vld [vmem:[%s1 + $0x7d8] sm:$0xff]
  %v315 = vld [vmem:[%s1 + $0x7e0] sm:$0xff]
  %v316 = vld [vmem:[%s1 + $0x7e8] sm:$0xff]
  %v317 = vld [vmem:[%s1 + $0x7f0] sm:$0xff]
  %v318 = vld [vmem:[%s1 + $0x7f8] sm:$0xff]
  %v319 = vld [vmem:[%s1 + $0x800] sm:$0xff]
  %v320 = vld [vmem:[%s1 + $0x808] sm:$0xff]
  %v321 = vld [vmem:[%s1 + $0x810] sm:$0xff]
  %v322 = vld [vmem:[%s1 + $0x818] sm:$0xff]
  %v323 = vld [vmem:[%s1 + $0x820] sm:$0xff]
  %v324 = vld [vmem:[%s1 + $0x828] sm:$0xff]
  %v325 = vld [vmem:[%s1 + $0x830] sm:$0xff]
  %v326 = vld [vmem:[%s1 + $0x838] sm:$0xff]
  %v327 = vld [vmem:[%s1 + $0x840] sm:$0xff]
  %v328 = vld [vmem:[%s1 + $0x848] sm:$0xff]
  %v329 = vld [vmem:[%s1 + $0x850] sm:$0xff]
  %v330 = vld [vmem:[%s1 + $0x858] sm:$0xff]
  %v331 = vld [vmem:[%s1 + $0x860] sm:$0xff]
  %v332 = vld [vmem:[%s1 + $0x868] sm:$0xff]
  %v333 = vld [vmem:[%s1 + $0x870] sm:$0xff]
  %v334 = vld [vmem:[%s1 + $0x878] sm:$0xff]
  %v335 = vld [vmem:[%s1 + $0x880] sm:$0xff]
  %v336 = vld [vmem:[%s1 + $0x888] sm:$0xff]
  %v337 = vld [vmem:[%s1 + $0x890] sm:$0xff]
  %v338 = vld [vmem:[%s1 + $0x898] sm:$0xff]
  %v339 = vld [vmem:[%s1 + $0x8a0] sm:$0xff]
  %v340 = vld [vmem:[%s1 + $0x8a8] sm:$0xff]
  %v341 = vld [vmem:[%s1 + $0x8b0] sm:$0xff]
  %v342 = vld [vmem:[%s1 + $0x8b8] sm:$0xff]
  %v343 = vld [vmem:[%s1 + $0x8c0] sm:$0xff]
  %v344 = vld [vmem:[%s1 + $0x8c8] sm:$0xff]
  %v345 = vld [vmem:[%s1 + $0x8d0] sm:$0xff]
  %v346 = vld [vmem:[%s1 + $0x8d8] sm:$0xff]
  %v347 = vld [vmem:[%s1 + $0x8e0] sm:$0xff]
  %v348 = vld [vmem:[%s1 + $0x8e8] sm:$0xff]
  %v349 = vld [vmem:[%s1 + $0x8f0] sm:$0xff]
  %v350 = vld [vmem:[%s1 + $0x8f8] sm:$0xff]
  %v351 = vld [vmem:[%s1 + $0x900] sm:$0xff]
  %v352 = vld [vmem:[%s1 + $0x908] sm:$0xff]
  %v353 = vld [vmem:[%s1 + $0x910] sm:$0xff]
  %v354 = vld [vmem:[%s1 + $0x918] sm:$0xff]
  %v355 = vld [vmem:[%s1 + $0x920] sm:$0xff]
  %v356 = vld [vmem:[%s1 + $0x928] sm:$0xff]
  %v357 = vld [vmem:[%s1 + $0x930] sm:$0xff]
  %v358 = vld [vmem:[%s1 + $0x938] sm:$0xff]
  %v359 = vld [vmem:[%s1 + $0x940] sm:$0xff]
  %v360 = vld [vmem:[%s1 + $0x948] sm:$0xff]
  %v361 = vld [vmem:[%s1 + $0x950] sm:$0xff]
  %v362 = vld [vmem:[%s1 + $0x958] sm:$0xff]
  %v363 = vld [vmem:[%s1 + $0x960] sm:$0xff]
  %v364 = vld [vmem:[%s1 + $0x968] sm:$0xff]
  %v365 = vld [vmem:[%s1 + $0x970] sm:$0xff]
  %v366 = vld [vmem:[%s1 + $0x978] sm:$0xff]
  %v367 = vld [vmem:[%s1 + $0x980] sm:$0xff]
  %v368 = vld [vmem:[%s1 + $0x988] sm:$0xff]
  %v369 = vld [vmem:[%s1 + $0x990] sm:$0xff]
  %v370 = vld [vmem:[%s1 + $0x998] sm:$0xff]
  %v371 = vld [vmem:[%s1 + $0x9a0] sm:$0xff]
  %v372 = vld [vmem:[%s1 + $0x9a8] sm:$0xff]
  %v373 = vld [vmem:[%s1 + $0x9b0] sm:$0xff]
  %v374 = vld [vmem:[%s1 + $0x9b8] sm:$0xff]
  %v375 = vld [vmem:[%s1 + $0x9c0] sm:$0xff]
  %v376 = vld [vmem:[%s1 + $0x9c8] sm:$0xff]
  %v377 = vld [vmem:[%s1 + $0x9d0] sm:$0xff]
  %v378 = vld [vmem:[%s1 + $0x9d8] sm:$0xff]
  %v379 = vld [vmem:[%s1 + $0x9e0] sm:$0xff]
  %v380 = vld [vmem:[%s1 + $0x9e8] sm:$0xff]
  %v381 = vld [vmem:[%s1 + $0x9f0] sm:$0xff]
  %v382 = vld [vmem:[%s1 + $0x9f8] sm:$0xff]
  %v383 = vld [vmem:[%s1 + $0xa00] sm:$0xff]
  %v384 = vld [vmem:[%s1 + $0xa08] sm:$0xff]
  %v385 = vld [vmem:[%s1 + $0xa10] sm:$0xff]
  %v386 = vld [vmem:[%s1 + $0xa18] sm:$0xff]
  %v387 = vld [vmem:[%s1 + $0xa20] sm:$0xff]
  %v388 = vld [vmem:[%s1 + $0xa28] sm:$0xff]
  %v389 = vld [vmem:[%s1 + $0xa30] sm:$0xff]
  %v390 = vld [vmem:[%s1 + $0xa38] sm:$0xff]
  %v391 = vld [vmem:[%s1 + $0xa40] sm:$0xff]
  %v392 = vld [vmem:[%s1 + $0xa48] sm:$0xff]
  %v393 = vld [vmem:[%s1 + $0xa50] sm:$0xff]
  %v394 = vld [vmem:[%s1 + $0xa58] sm:$0xff]
  %v395 = vld [vmem:[%s1 + $0xa60] sm:$0xff]
  %v396 = vld [vmem:[%s1 + $0xa68] sm:$0xff]
  %v397 = vld [vmem:[%s1 + $0xa70] sm:$0xff]
  %v398 = vld [vmem:[%s1 + $0xa78] sm:$0xff]
  %v399 = vld [vmem:[%s1 + $0xa80] sm:$0xff]
  %v400 = vld [vmem:[%s1 + $0xa88] sm:$0xff]
  %v401 = vld [vmem:[%s1 + $0xa90] sm:$0xff]
  %v402 = vld [vmem:[%s1 + $0xa98] sm:$0xff]
  %v403 = vld [vmem:[%s1 + $0xaa0] sm:$0xff]
  %v404 = vld [vmem:[%s1 + $0xaa8] sm:$0xff]
  %v405 = vld [vmem:[%s1 + $0xab0] sm:$0xff]
  %v406 = vld [vmem:[%s1 + $0xab8] sm:$0xff]
  %v407 = vld [vmem:[%s1 + $0xac0] sm:$0xff]
  %v408 = vld [vmem:[%s1 + $0xac8] sm:$0xff]
  %v409 = vld [vmem:[%s1 + $0xad0] sm:$0xff]
  %v410 = vld [vmem:[%s1 + $0xad8] sm:$0xff]
  %v411 = vld [vmem:[%s1 + $0xae0] sm:$0xff]
  %v412 = vld [vmem:[%s1 + $0xae8] sm:$0xff]
  %v413 = vld [vmem:[%s1 + $0xaf0] sm:$0xff]
  %v414 = vld [vmem:[%s1 + $0xaf8] sm:$0xff]
  %v415 = vld [vmem:[%s1 + $0xb00] sm:$0xff]
  %v416 = vld [vmem:[%s1 + $0xb08] sm:$0xff]
  %v417 = vld [vmem:[%s1 + $0xb10] sm:$0xff]
  %v418 = vld [vmem:[%s1 + $0xb18] sm:$0xff]
  %v419 = vld [vmem:[%s1 + $0xb20] sm:$0xff]
  %v420 = vld [vmem:[%s1 + $0xb28] sm:$0xff]
  %v421 = vld [vmem:[%s1 + $0xb30] sm:$0xff]
  %v422 = vld [vmem:[%s1 + $0xb38] sm:$0xff]
  %v423 = vld [vmem:[%s1 + $0xb40] sm:$0xff]
  %v424 = vld [vmem:[%s1 + $0xb48] sm:$0xff]
  %v425 = vld [vmem:[%s1 + $0xb50] sm:$0xff]
  %v426 = vld [vmem:[%s1 + $0xb58] sm:$0xff]
  %v427 = vld [vmem:[%s1 + $0xb60] sm:$0xff]
  %v428 = vld [vmem:[%s1 + $0xb68] sm:$0xff]
  %v429 = vld [vmem:[%s1 + $0xb70] sm:$0xff]
  %v430 = vld [vmem:[%s1 + $0xb78] sm:$0xff]
  %v431 = vld [vmem:[%s1 + $0xb80] sm:$0xff]
  %v432 = vld [vmem:[%s1 + $0xb88] sm:$0xff]
  %v433 = vld [vmem:[%s1 + $0xb90] sm:$0xff]
  %v434 = vld [vmem:[%s1 + $0xb98] sm:$0xff]
  %v435 = vld [vmem:[%s1 + $0xba0] sm:$0xff]
  %v436 = vld [vmem:[%s1 + $0xba8] sm:$0xff]
  %v437 = vld [vmem:[%s1 + $0xbb0] sm:$0xff]
  %v438 = vld [vmem:[%s1 + $0xbb8] sm:$0xff]
  %v439 = vld [vmem:[%s1 + $0xbc0] sm:$0xff]
  %v440 = vld [vmem:[%s1 + $0xbc8] sm:$0xff]
  %v441 = vld [vmem:[%s1 + $0xbd0] sm:$0xff]
  %v442 = vld [vmem:[%s1 + $0xbd8] sm:$0xff]
  %v443 = vld [vmem:[%s1 + $0xbe0] sm:$0xff]
  %v444 = vld [vmem:[%s1 + $0xbe8] sm:$0xff]
  %v445 = vld [vmem:[%s1 + $0xbf0] sm:$0xff]
  %v446 = vld [vmem:[%s1 + $0xbf8] sm:$0xff]
  %v447 = vld [vmem:[%s1 + $0xc00] sm:$0xff]
  %v448 = vld [vmem:[%s1 + $0xc08] sm:$0xff]
  %v449 = vld [vmem:[%s1 + $0xc10] sm:$0xff]
  %v450 = vld [vmem:[%s1 + $0xc18] sm:$0xff]
  %v451 = vld [vmem:[%s1 + $0xc20] sm:$0xff]
  %v452 = vld [vmem:[%s1 + $0xc28] sm:$0xff]
  %v453 = vld [vmem:[%s1 + $0xc30] sm:$0xff]
  %v454 = vld [vmem:[%s1 + $0xc38] sm:$0xff]
  %v455 = vld [vmem:[%s1 + $0xc40] sm:$0xff]
  %v456 = vld [vmem:[%s1 + $0xc48] sm:$0xff]
  %v457 = vld [vmem:[%s1 + $0xc50] sm:$0xff]
  %v458 = vld [vmem:[%s1 + $0xc58] sm:$0xff]
  %v459 = vld [vmem:[%s1 + $0xc60] sm:$0xff]
  %v460 = vld [vmem:[%s1 + $0xc68] sm:$0xff]
  %v461 = vld [vmem:[%s1 + $0xc70] sm:$0xff]
  %v462 = vld [vmem:[%s1 + $0xc78] sm:$0xff]
  %v463 = vld [vmem:[%s1 + $0xc80] sm:$0xff]
  %v464 = vld [vmem:[%s1 + $0xc88] sm:$0xff]
  %v465 = vld [vmem:[%s1 + $0xc90] sm:$0xff]
  %v466 = vld [vmem:[%s1 + $0xc98] sm:$0xff]
  %v467 = vld [vmem:[%s1 + $0xca0] sm:$0xff]
  %v468 = vld [vmem:[%s1 + $0xca8] sm:$0xff]
  %v469 = vld [vmem:[%s1 + $0xcb0] sm:$0xff]
  %v470 = vld [vmem:[%s1 + $0xcb8] sm:$0xff]
  %v471 = vld [vmem:[%s1 + $0xcc0] sm:$0xff]
  %v472 = vld [vmem:[%s1 + $0xcc8] sm:$0xff]
  %v473 = vld [vmem:[%s1 + $0xcd0] sm:$0xff]
  %v474 = vld [vmem:[%s1 + $0xcd8] sm:$0xff]
  %v475 = vld [vmem:[%s1 + $0xce0] sm:$0xff]
  %v476 = vld [vmem:[%s1 + $0xce8] sm:$0xff]
  %v477 = vld [vmem:[%s1 + $0xcf0] sm:$0xff]
  %v478 = vld [vmem:[%s1 + $0xcf8] sm:$0xff]
  %v479 = vld [vmem:[%s1 + $0xd00] sm:$0xff]
  %v480 = vld [vmem:[%s1 + $0xd08] sm:$0xff]
  %v481 = vld [vmem:[%s1 + $0xd10] sm:$0xff]
  %v482 = vld [vmem:[%s1 + $0xd18] sm:$0xff]
  %v483 = vld [vmem:[%s1 + $0xd20] sm:$0xff]
  %v484 = vld [vmem:[%s1 + $0xd28] sm:$0xff]
  %v485 = vld [vmem:[%s1 + $0xd30] sm:$0xff]
  %v486 = vld [vmem:[%s1 + $0xd38] sm:$0xff]
  %v487 = vld [vmem:[%s1 + $0xd40] sm:$0xff]
  %v488 = vld [vmem:[%s1 + $0xd48] sm:$0xff]
  %v489 = vld [vmem:[%s1 + $0xd50] sm:$0xff]
  %v490 = vld [vmem:[%s1 + $0xd58] sm:$0xff]
  %v491 = vld [vmem:[%s1 + $0xd60] sm:$0xff]
  %v492 = vld [vmem:[%s1 + $0xd68] sm:$0xff]
  %v493 = vld [vmem:[%s1 + $0xd70] sm:$0xff]
  %v494 = vld [vmem:[%s1 + $0xd78] sm:$0xff]
  %v495 = vld [vmem:[%s1 + $0xd80] sm:$0xff]
  %v496 = vld [vmem:[%s1 + $0xd88] sm:$0xff]
  %v497 = vld [vmem:[%s1 + $0xd90] sm:$0xff]
  %v498 = vld [vmem:[%s1 + $0xd98] sm:$0xff]
  %v499 = vld [vmem:[%s1 + $0xda0] sm:$0xff]
  %v500 = vld [vmem:[%s1 + $0xda8] sm:$0xff]
  %v501 = vld [vmem:[%s1 + $0xdb0] sm:$0xff]
  %v502 = vld [vmem:[%s1 + $0xdb8] sm:$0xff]
  %v503 = vld [vmem:[%s1 + $0xdc0] sm:$0xff]
  %v504 = vld [vmem:[%s1 + $0xdc8] sm:$0xff]
  %v505 = vld [vmem:[%s1 + $0xdd0] sm:$0xff]
  %v506 = vld [vmem:[%s1 + $0xdd8] sm:$0xff]
  %v507 = vld [vmem:[%s1 + $0xde0] sm:$0xff]
  %v508 = vld [vmem:[%s1 + $0xde8] sm:$0xff]
  %v509 = vld [vmem:[%s1 + $0xdf0] sm:$0xff]
  %v510 = vld [vmem:[%s1 + $0xdf8] sm:$0xff]
  %v511 = vld [vmem:[%s1 + $0xe00] sm:$0xff]
  %v512 = vld [vmem:[%s1 + $0xe08] sm:$0xff]
  %v513 = vld [vmem:[%s1 + $0xe10] sm:$0xff]
  %v514 = vld [vmem:[%s1 + $0xe18] sm:$0xff]
  %v515 = vld [vmem:[%s1 + $0xe20] sm:$0xff]
  %v516 = vld [vmem:[%s1 + $0xe28] sm:$0xff]
  %v517 = vld [vmem:[%s1 + $0xe30] sm:$0xff]
  %v518 = vld [vmem:[%s1 + $0xe38] sm:$0xff]
  %v519 = vld [vmem:[%s1 + $0xe40] sm:$0xff]
  %v520 = vld [vmem:[%s1 + $0xe48] sm:$0xff]
  %v521 = vld [vmem:[%s1 + $0xe50] sm:$0xff]
  %v522 = vld [vmem:[%s1 + $0xe58] sm:$0xff]
  %v523 = vld [vmem:[%s1 + $0xe60] sm:$0xff]
  %v524 = vld [vmem:[%s1 + $0xe68] sm:$0xff]
  %v525 = vld [vmem:[%s1 + $0xe70] sm:$0xff]
  %v526 = vld [vmem:[%s1 + $0xe78] sm:$0xff]
  %v527 = vld [vmem:[%s1 + $0xe80] sm:$0xff]
  %v528 = vld [vmem:[%s1 + $0xe88] sm:$0xff]
  %v529 = vld [vmem:[%s1 + $0xe90] sm:$0xff]
  %v530 = vld [vmem:[%s1 + $0xe98] sm:$0xff]
  %v531 = vld [vmem:[%s1 + $0xea0] sm:$0xff]
  %v532 = vld [vmem:[%s1 + $0xea8] sm:$0xff]
  %v533 = vld [vmem:[%s1 + $0xeb0] sm:$0xff]
  %v534 = vld [vmem:[%s1 + $0xeb8] sm:$0xff]
  %v535 = vld [vmem:[%s1 + $0xec0] sm:$0xff]
  %v536 = vld [vmem:[%s1 + $0xec8] sm:$0xff]
  %v537 = vld [vmem:[%s1 + $0xed0] sm:$0xff]
  %v538 = vld [vmem:[%s1 + $0xed8] sm:$0xff]
  %v539 = vld [vmem:[%s1 + $0xee0] sm:$0xff]
  %v540 = vld [vmem:[%s1 + $0xee8] sm:$0xff]
  %v541 = vld [vmem:[%s1 + $0xef0] sm:$0xff]
  %v542 = vld [vmem:[%s1 + $0xef8] sm:$0xff]
  %v543 = vld [vmem:[%s1 + $0xf00] sm:$0xff]
  %v544 = vld [vmem:[%s1 + $0xf08] sm:$0xff]
  %v545 = vld [vmem:[%s1 + $0xf10] sm:$0xff]
  %v546 = vld [vmem:[%s1 + $0xf18] sm:$0xff]
  %v547 = vld [vmem:[%s1 + $0xf20] sm:$0xff]
  %v548 = vld [vmem:[%s1 + $0xf28] sm:$0xff]
  %v549 = vld [vmem:[%s1 + $0xf30] sm:$0xff]
  %v550 = vld [vmem:[%s1 + $0xf38] sm:$0xff]
  %v551 = vld [vmem:[%s1 + $0xf40] sm:$0xff]
  %v552 = vld [vmem:[%s1 + $0xf48] sm:$0xff]
  %v553 = vld [vmem:[%s1 + $0xf50] sm:$0xff]
  %v554 = vld [vmem:[%s1 + $0xf58] sm:$0xff]
  %v555 = vld [vmem:[%s1 + $0xf60] sm:$0xff]
  %v556 = vld [vmem:[%s1 + $0xf68] sm:$0xff]
  %v557 = vld [vmem:[%s1 + $0xf70] sm:$0xff]
  %v558 = vld [vmem:[%s1 + $0xf78] sm:$0xff]
  %v559 = vld [vmem:[%s1 + $0xf80] sm:$0xff]
  %v560 = vld [vmem:[%s1 + $0xf88] sm:$0xff]
  %v561 = vld [vmem:[%s1 + $0xf90] sm:$0xff]
  %v562 = vld [vmem:[%s1 + $0xf98] sm:$0xff]
  %v563 = vld [vmem:[%s1 + $0xfa0] sm:$0xff]
  %v564 = vld [vmem:[%s1 + $0xfa8] sm:$0xff]
  %v565 = vld [vmem:[%s1 + $0xfb0] sm:$0xff]
  %v566 = vld [vmem:[%s1 + $0xfb8] sm:$0xff]
  %v567 = vld [vmem:[%s1 + $0xfc0] sm:$0xff]
  %v568 = vld [vmem:[%s1 + $0xfc8] sm:$0xff]
  %v569 = vld [vmem:[%s1 + $0xfd0] sm:$0xff]
  %v570 = vld [vmem:[%s1 + $0xfd8] sm:$0xff]
  %v571 = vld [vmem:[%s1 + $0xfe0] sm:$0xff]
  %v572 = vld [vmem:[%s1 + $0xfe8] sm:$0xff]
  %v573 = vld [vmem:[%s1 + $0xff0] sm:$0xff]
  %v574 = vld [vmem:[%s1 + $0xff8] sm:$0xff]
  %v575 = vld [vmem:[%s1 + $0x1000] sm:$0xff]
  %v576 = vld [vmem:[%s1 + $0x1008] sm:$0xff]
  %v577 = vld [vmem:[%s1 + $0x1010] sm:$0xff]
  %v578 = vld [vmem:[%s1 + $0x1018] sm:$0xff]
  %v579 = vld [vmem:[%s1 + $0x1020] sm:$0xff]
  %v580 = vld [vmem:[%s1 + $0x1028] sm:$0xff]
  %v581 = vld [vmem:[%s1 + $0x1030] sm:$0xff]
  %v582 = vld [vmem:[%s1 + $0x1038] sm:$0xff]
  %v583 = vld [vmem:[%s1 + $0x1040] sm:$0xff]
  %v584 = vld [vmem:[%s1 + $0x1048] sm:$0xff]
  %v585 = vld [vmem:[%s1 + $0x1050] sm:$0xff]
  %v586 = vld [vmem:[%s1 + $0x1058] sm:$0xff]
  %v587 = vld [vmem:[%s1 + $0x1060] sm:$0xff]
  %v588 = vld [vmem:[%s1 + $0x1068] sm:$0xff]
  %v589 = vld [vmem:[%s1 + $0x1070] sm:$0xff]
  %v590 = vld [vmem:[%s1 + $0x1078] sm:$0xff]
  %v591 = vld [vmem:[%s1 + $0x1080] sm:$0xff]
  %v592 = vld [vmem:[%s1 + $0x1088] sm:$0xff]
  %v593 = vld [vmem:[%s1 + $0x1090] sm:$0xff]
  %v594 = vld [vmem:[%s1 + $0x1098] sm:$0xff]
  %v595 = vld [vmem:[%s1 + $0x10a0] sm:$0xff]
  %v596 = vld [vmem:[%s1 + $0x10a8] sm:$0xff]
  %v597 = vld [vmem:[%s1 + $0x10b0] sm:$0xff]
  %v598 = vld [vmem:[%s1 + $0x10b8] sm:$0xff]
  %v599 = vld [vmem:[%s1 + $0x10c0] sm:$0xff]
  %v600 = vld [vmem:[%s1 + $0x10c8] sm:$0xff]
  %v601 = vld [vmem:[%s1 + $0x10d0] sm:$0xff]
  %v602 = vld [vmem:[%s1 + $0x10d8] sm:$0xff]
  %v603 = vld [vmem:[%s1 + $0x10e0] sm:$0xff]
  %v604 = vld [vmem:[%s1 + $0x10e8] sm:$0xff]
  %v605 = vld [vmem:[%s1 + $0x10f0] sm:$0xff]
  %v606 = vld [vmem:[%s1 + $0x10f8] sm:$0xff]
  %v607 = vld [vmem:[%s1 + $0x1100] sm:$0xff]
  %v608 = vld [vmem:[%s1 + $0x1108] sm:$0xff]
  %v609 = vld [vmem:[%s1 + $0x1110] sm:$0xff]
  %v610 = vld [vmem:[%s1 + $0x1118] sm:$0xff]
  %v611 = vld [vmem:[%s1 + $0x1120] sm:$0xff]
  %v612 = vld [vmem:[%s1 + $0x1128] sm:$0xff]
  %v613 = vld [vmem:[%s1 + $0x1130] sm:$0xff]
  %v614 = vld [vmem:[%s1 + $0x1138] sm:$0xff]
  %v615 = vld [vmem:[%s1 + $0x1140] sm:$0xff]
  %v616 = vld [vmem:[%s1 + $0x1148] sm:$0xff]
  %v617 = vld [vmem:[%s1 + $0x1150] sm:$0xff]
  %v618 = vld [vmem:[%s1 + $0x1158] sm:$0xff]
  %v619 = vld [vmem:[%s1 + $0x1160] sm:$0xff]
  %v620 = vld [vmem:[%s1 + $0x1168] sm:$0xff]
  %v621 = vld [vmem:[%s1 + $0x1170] sm:$0xff]
  %v622 = vld [vmem:[%s1 + $0x1178] sm:$0xff]
  %v623 = vld [vmem:[%s1 + $0x1180] sm:$0xff]
  %v624 = vld [vmem:[%s1 + $0x1188] sm:$0xff]
  %v625 = vld [vmem:[%s1 + $0x1190] sm:$0xff]
  %v626 = vld [vmem:[%s1 + $0x1198] sm:$0xff]
  %v627 = vld [vmem:[%s1 + $0x11a0] sm:$0xff]
  %v628 = vld [vmem:[%s1 + $0x11a8] sm:$0xff]
  %v629 = vld [vmem:[%s1 + $0x11b0] sm:$0xff]
  %v630 = vld [vmem:[%s1 + $0x11b8] sm:$0xff]
  %v631 = vld [vmem:[%s1 + $0x11c0] sm:$0xff]
  %v632 = vld [vmem:[%s1 + $0x11c8] sm:$0xff]
  %v633 = vld [vmem:[%s1 + $0x11d0] sm:$0xff]
  %v634 = vld [vmem:[%s1 + $0x11d8] sm:$0xff]
  %v635 = vld [vmem:[%s1 + $0x11e0] sm:$0xff]
  %v636 = vld [vmem:[%s1 + $0x11e8] sm:$0xff]
  %v637 = vld [vmem:[%s1 + $0x11f0] sm:$0xff]
  %v638 = vld [vmem:[%s1 + $0x11f8] sm:$0xff]
  %v639 = vld [vmem:[%s1 + $0x1200] sm:$0xff]
  %v640 = vld [vmem:[%s1 + $0x1208] sm:$0xff]
  %v641 = vld [vmem:[%s1 + $0x1210] sm:$0xff]
  %v642 = vld [vmem:[%s1 + $0x1218] sm:$0xff]
  %v643 = vld [vmem:[%s1 + $0x1220] sm:$0xff]
  %v644 = vld [vmem:[%s1 + $0x1228] sm:$0xff]
  %v645 = vld [vmem:[%s1 + $0x1230] sm:$0xff]
  %v646 = vld [vmem:[%s1 + $0x1238] sm:$0xff]
  %v647 = vld [vmem:[%s1 + $0x1240] sm:$0xff]
  %v648 = vld [vmem:[%s1 + $0x1248] sm:$0xff]
  %v649 = vld [vmem:[%s1 + $0x1250] sm:$0xff]
  %v650 = vld [vmem:[%s1 + $0x1258] sm:$0xff]
  %v651 = vld [vmem:[%s1 + $0x1260] sm:$0xff]
  %v652 = vld [vmem:[%s1 + $0x1268] sm:$0xff]
  %v653 = vld [vmem:[%s1 + $0x1270] sm:$0xff]
  %v654 = vld [vmem:[%s1 + $0x1278] sm:$0xff]
  %v655 = vld [vmem:[%s1 + $0x1280] sm:$0xff]
  %v656 = vld [vmem:[%s1 + $0x1288] sm:$0xff]
  %v657 = vld [vmem:[%s1 + $0x1290] sm:$0xff]
  %v658 = vld [vmem:[%s1 + $0x1298] sm:$0xff]
  %v659 = vld [vmem:[%s1 + $0x12a0] sm:$0xff]
  %v660 = vld [vmem:[%s1 + $0x12a8] sm:$0xff]
  %v661 = vld [vmem:[%s1 + $0x12b0] sm:$0xff]
  %v662 = vld [vmem:[%s1 + $0x12b8] sm:$0xff]
  %v663 = vld [vmem:[%s1 + $0x12c0] sm:$0xff]
  %v664 = vld [vmem:[%s1 + $0x12c8] sm:$0xff]
  %v665 = vld [vmem:[%s1 + $0x12d0] sm:$0xff]
  %v666 = vld [vmem:[%s1 + $0x12d8] sm:$0xff]
  %v667 = vld [vmem:[%s1 + $0x12e0] sm:$0xff]
  %v668 = vld [vmem:[%s1 + $0x12e8] sm:$0xff]
  %v669 = vld [vmem:[%s1 + $0x12f0] sm:$0xff]
  %v670 = vld [vmem:[%s1 + $0x12f8] sm:$0xff]
  %v671 = vld [vmem:[%s1 + $0x1300] sm:$0xff]
  %v672 = vld [vmem:[%s1 + $0x1308] sm:$0xff]
  %v673 = vld [vmem:[%s1 + $0x1310] sm:$0xff]
  %v674 = vld [vmem:[%s1 + $0x1318] sm:$0xff]
  %v675 = vld [vmem:[%s1 + $0x1320] sm:$0xff]
  %v676 = vld [vmem:[%s1 + $0x1328] sm:$0xff]
  %v677 = vld [vmem:[%s1 + $0x1330] sm:$0xff]
  %v678 = vld [vmem:[%s1 + $0x1338] sm:$0xff]
  %v679 = vld [vmem:[%s1 + $0x1340] sm:$0xff]
  %v680 = vld [vmem:[%s1 + $0x1348] sm:$0xff]
  %v681 = vld [vmem:[%s1 + $0x1350] sm:$0xff]
  %v682 = vld [vmem:[%s1 + $0x1358] sm:$0xff]
  %v683 = vld [vmem:[%s1 + $0x1360] sm:$0xff]
  %v684 = vld [vmem:[%s1 + $0x1368] sm:$0xff]
  %v685 = vld [vmem:[%s1 + $0x1370] sm:$0xff]
  %v686 = vld [vmem:[%s1 + $0x1378] sm:$0xff]
  %v687 = vld [vmem:[%s1 + $0x1380] sm:$0xff]
  %v688 = vld [vmem:[%s1 + $0x1388] sm:$0xff]
  %v689 = vld [vmem:[%s1 + $0x1390] sm:$0xff]
  %v690 = vld [vmem:[%s1 + $0x1398] sm:$0xff]
  %v691 = vld [vmem:[%s1 + $0x13a0] sm:$0xff]
  %v692 = vld [vmem:[%s1 + $0x13a8] sm:$0xff]
  %v693 = vld [vmem:[%s1 + $0x13b0] sm:$0xff]
  %v694 = vld [vmem:[%s1 + $0x13b8] sm:$0xff]
  %v695 = vld [vmem:[%s1 + $0x13c0] sm:$0xff]
  %v696 = vld [vmem:[%s1 + $0x13c8] sm:$0xff]
  %v697 = vld [vmem:[%s1 + $0x13d0] sm:$0xff]
  %v698 = vld [vmem:[%s1 + $0x13d8] sm:$0xff]
  %v699 = vld [vmem:[%s1 + $0x13e0] sm:$0xff]
  %v700 = vld [vmem:[%s1 + $0x13e8] sm:$0xff]
  %v701 = vld [vmem:[%s1 + $0x13f0] sm:$0xff]
  %v702 = vld [vmem:[%s1 + $0x13f8] sm:$0xff]
  %v703 = vld [vmem:[%s1 + $0x1400] sm:$0xff]
  %v704 = vld [vmem:[%s1 + $0x1408] sm:$0xff]
  %v705 = vld [vmem:[%s1 + $0x1410] sm:$0xff]
  %v706 = vld [vmem:[%s1 + $0x1418] sm:$0xff]
  %v707 = vld [vmem:[%s1 + $0x1420] sm:$0xff]
  %v708 = vld [vmem:[%s1 + $0x1428] sm:$0xff]
  %v709 = vld [vmem:[%s1 + $0x1430] sm:$0xff]
  %v710 = vld [vmem:[%s1 + $0x1438] sm:$0xff]
  %v711 = vld [vmem:[%s1 + $0x1440] sm:$0xff]
  %v712 = vld [vmem:[%s1 + $0x1448] sm:$0xff]
  %v713 = vld [vmem:[%s1 + $0x1450] sm:$0xff]
  %v714 = vld [vmem:[%s1 + $0x1458] sm:$0xff]
  %v715 = vld [vmem:[%s1 + $0x1460] sm:$0xff]
  %v716 = vld [vmem:[%s1 + $0x1468] sm:$0xff]
  %v717 = vld [vmem:[%s1 + $0x1470] sm:$0xff]
  %v718 = vld [vmem:[%s1 + $0x1478] sm:$0xff]
  %v719 = vld [vmem:[%s1 + $0x1480] sm:$0xff]
  %v720 = vld [vmem:[%s1 + $0x1488] sm:$0xff]
  %v721 = vld [vmem:[%s1 + $0x1490] sm:$0xff]
  %v722 = vld [vmem:[%s1 + $0x1498] sm:$0xff]
  %v723 = vld [vmem:[%s1 + $0x14a0] sm:$0xff]
  %v724 = vld [vmem:[%s1 + $0x14a8] sm:$0xff]
  %v725 = vld [vmem:[%s1 + $0x14b0] sm:$0xff]
  %v726 = vld [vmem:[%s1 + $0x14b8] sm:$0xff]
  %v727 = vld [vmem:[%s1 + $0x14c0] sm:$0xff]
  %v728 = vld [vmem:[%s1 + $0x14c8] sm:$0xff]
  %v729 = vld [vmem:[%s1 + $0x14d0] sm:$0xff]
  %v730 = vld [vmem:[%s1 + $0x14d8] sm:$0xff]
  %v731 = vld [vmem:[%s1 + $0x14e0] sm:$0xff]
  %v732 = vld [vmem:[%s1 + $0x14e8] sm:$0xff]
  %v733 = vld [vmem:[%s1 + $0x14f0] sm:$0xff]
  %v734 = vld [vmem:[%s1 + $0x14f8] sm:$0xff]
  %v735 = vld [vmem:[%s1 + $0x1500] sm:$0xff]
  %v736 = vld [vmem:[%s1 + $0x1508] sm:$0xff]
  %v737 = vld [vmem:[%s1 + $0x1510] sm:$0xff]
  %v738 = vld [vmem:[%s1 + $0x1518] sm:$0xff]
  %v739 = vld [vmem:[%s1 + $0x1520] sm:$0xff]
  %v740 = vld [vmem:[%s1 + $0x1528] sm:$0xff]
  %v741 = vld [vmem:[%s1 + $0x1530] sm:$0xff]
  %v742 = vld [vmem:[%s1 + $0x1538] sm:$0xff]
  %v743 = vld [vmem:[%s1 + $0x1540] sm:$0xff]
  %v744 = vld [vmem:[%s1 + $0x1548] sm:$0xff]
  %v745 = vld [vmem:[%s1 + $0x1550] sm:$0xff]
  %v746 = vld [vmem:[%s1 + $0x1558] sm:$0xff]
  %v747 = vld [vmem:[%s1 + $0x1560] sm:$0xff]
  %v748 = vld [vmem:[%s1 + $0x1568] sm:$0xff]
  %v749 = vld [vmem:[%s1 + $0x1570] sm:$0xff]
  %v750 = vld [vmem:[%s1 + $0x1578] sm:$0xff]
  %v751 = vld [vmem:[%s1 + $0x1580] sm:$0xff]
  %v752 = vld [vmem:[%s1 + $0x1588] sm:$0xff]
  %v753 = vld [vmem:[%s1 + $0x1590] sm:$0xff]
  %v754 = vld [vmem:[%s1 + $0x1598] sm:$0xff]
  %v755 = vld [vmem:[%s1 + $0x15a0] sm:$0xff]
  %v756 = vld [vmem:[%s1 + $0x15a8] sm:$0xff]
  %v757 = vld [vmem:[%s1 + $0x15b0] sm:$0xff]
  %v758 = vld [vmem:[%s1 + $0x15b8] sm:$0xff]
  %v759 = vld [vmem:[%s1 + $0x15c0] sm:$0xff]
  %v760 = vld [vmem:[%s1 + $0x15c8] sm:$0xff]
  %v761 = vld [vmem:[%s1 + $0x15d0] sm:$0xff]
  %v762 = vld [vmem:[%s1 + $0x15d8] sm:$0xff]
  %v763 = vld [vmem:[%s1 + $0x15e0] sm:$0xff]
  %v764 = vld [vmem:[%s1 + $0x15e8] sm:$0xff]
  %v765 = vld [vmem:[%s1 + $0x15f0] sm:$0xff]
  %v766 = vld [vmem:[%s1 + $0x15f8] sm:$0xff]
  %v767 = vld [vmem:[%s1 + $0x1600] sm:$0xff]
  %v768 = vld [vmem:[%s1 + $0x1608] sm:$0xff]
  %v769 = vld [vmem:[%s1 + $0x1610] sm:$0xff]
  %v770 = vld [vmem:[%s1 + $0x1618] sm:$0xff]
  %v771 = vld [vmem:[%s1 + $0x1620] sm:$0xff]
  %v772 = vld [vmem:[%s1 + $0x1628] sm:$0xff]
  %v773 = vld [vmem:[%s1 + $0x1630] sm:$0xff]
  %v774 = vld [vmem:[%s1 + $0x1638] sm:$0xff]
  %v775 = vld [vmem:[%s1 + $0x1640] sm:$0xff]
  %v776 = vld [vmem:[%s1 + $0x1648] sm:$0xff]
  %v777 = vld [vmem:[%s1 + $0x1650] sm:$0xff]
  %v778 = vld [vmem:[%s1 + $0x1658] sm:$0xff]
  %v779 = vld [vmem:[%s1 + $0x1660] sm:$0xff]
  %v780 = vld [vmem:[%s1 + $0x1668] sm:$0xff]
  %v781 = vld [vmem:[%s1 + $0x1670] sm:$0xff]
  %v782 = vld [vmem:[%s1 + $0x1678] sm:$0xff]
  %v783 = vld [vmem:[%s1 + $0x1680] sm:$0xff]
  %v784 = vld [vmem:[%s1 + $0x1688] sm:$0xff]
  %v785 = vld [vmem:[%s1 + $0x1690] sm:$0xff]
  %v786 = vld [vmem:[%s1 + $0x1698] sm:$0xff]
  %v787 = vld [vmem:[%s1 + $0x16a0] sm:$0xff]
  %v788 = vld [vmem:[%s1 + $0x16a8] sm:$0xff]
  %v789 = vld [vmem:[%s1 + $0x16b0] sm:$0xff]
  %v790 = vld [vmem:[%s1 + $0x16b8] sm:$0xff]
  %v791 = vld [vmem:[%s1 + $0x16c0] sm:$0xff]
  %v792 = vld [vmem:[%s1 + $0x16c8] sm:$0xff]
  %v793 = vld [vmem:[%s1 + $0x16d0] sm:$0xff]
  %v794 = vld [vmem:[%s1 + $0x16d8] sm:$0xff]
  %v795 = vld [vmem:[%s1 + $0x16e0] sm:$0xff]
  %v796 = vld [vmem:[%s1 + $0x16e8] sm:$0xff]
  %v797 = vld [vmem:[%s1 + $0x16f0] sm:$0xff]
  %v798 = vld [vmem:[%s1 + $0x16f8] sm:$0xff]
  %v799 = vld [vmem:[%s1 + $0x1700] sm:$0xff]
  %v800 = vld [vmem:[%s1 + $0x1708] sm:$0xff]
  %v801 = vld [vmem:[%s1 + $0x1710] sm:$0xff]
  %v802 = vld [vmem:[%s1 + $0x1718] sm:$0xff]
  %v803 = vld [vmem:[%s1 + $0x1720] sm:$0xff]
  %v804 = vld [vmem:[%s1 + $0x1728] sm:$0xff]
  %v805 = vld [vmem:[%s1 + $0x1730] sm:$0xff]
  %v806 = vld [vmem:[%s1 + $0x1738] sm:$0xff]
  %v807 = vld [vmem:[%s1 + $0x1740] sm:$0xff]
  %v808 = vld [vmem:[%s1 + $0x1748] sm:$0xff]
  %v809 = vld [vmem:[%s1 + $0x1750] sm:$0xff]
  %v810 = vld [vmem:[%s1 + $0x1758] sm:$0xff]
  %v811 = vld [vmem:[%s1 + $0x1760] sm:$0xff]
  %v812 = vld [vmem:[%s1 + $0x1768] sm:$0xff]
  %v813 = vld [vmem:[%s1 + $0x1770] sm:$0xff]
  %v814 = vld [vmem:[%s1 + $0x1778] sm:$0xff]
  %v815 = vld [vmem:[%s1 + $0x1780] sm:$0xff]
  %v816 = vld [vmem:[%s1 + $0x1788] sm:$0xff]
  %v817 = vld [vmem:[%s1 + $0x1790] sm:$0xff]
  %v818 = vld [vmem:[%s1 + $0x1798] sm:$0xff]
  %v819 = vld [vmem:[%s1 + $0x17a0] sm:$0xff]
  %v820 = vld [vmem:[%s1 + $0x17a8] sm:$0xff]
  %v821 = vld [vmem:[%s1 + $0x17b0] sm:$0xff]
  %v822 = vld [vmem:[%s1 + $0x17b8] sm:$0xff]
  %v823 = vld [vmem:[%s1 + $0x17c0] sm:$0xff]
  %v824 = vld [vmem:[%s1 + $0x17c8] sm:$0xff]
  %v825 = vld [vmem:[%s1 + $0x17d0] sm:$0xff]
  %v826 = vld [vmem:[%s1 + $0x17d8] sm:$0xff]
  %v827 = vld [vmem:[%s1 + $0x17e0] sm:$0xff]
  %v828 = vld [vmem:[%s1 + $0x17e8] sm:$0xff]
  %v829 = vld [vmem:[%s1 + $0x17f0] sm:$0xff]
  %v830 = vld [vmem:[%s1 + $0x17f8] sm:$0xff]
  %v831 = vld [vmem:[%s1 + $0x1800] sm:$0xff]
  %v832 = vld [vmem:[%s1 + $0x1808] sm:$0xff]
  %v833 = vld [vmem:[%s1 + $0x1810] sm:$0xff]
  %v834 = vld [vmem:[%s1 + $0x1818] sm:$0xff]
  %v835 = vld [vmem:[%s1 + $0x1820] sm:$0xff]
  %v836 = vld [vmem:[%s1 + $0x1828] sm:$0xff]
  %v837 = vld [vmem:[%s1 + $0x1830] sm:$0xff]
  %v838 = vld [vmem:[%s1 + $0x1838] sm:$0xff]
  %v839 = vld [vmem:[%s1 + $0x1840] sm:$0xff]
  %v840 = vld [vmem:[%s1 + $0x1848] sm:$0xff]
  %v841 = vld [vmem:[%s1 + $0x1850] sm:$0xff]
  %v842 = vld [vmem:[%s1 + $0x1858] sm:$0xff]
  %v843 = vld [vmem:[%s1 + $0x1860] sm:$0xff]
  %v844 = vld [vmem:[%s1 + $0x1868] sm:$0xff]
  %v845 = vld [vmem:[%s1 + $0x1870] sm:$0xff]
  %v846 = vld [vmem:[%s1 + $0x1878] sm:$0xff]
  %v847 = vld [vmem:[%s1 + $0x1880] sm:$0xff]
  %v848 = vld [vmem:[%s1 + $0x1888] sm:$0xff]
  %v849 = vld [vmem:[%s1 + $0x1890] sm:$0xff]
  %v850 = vld [vmem:[%s1 + $0x1898] sm:$0xff]
  %v851 = vld [vmem:[%s1 + $0x18a0] sm:$0xff]
  %v852 = vld [vmem:[%s1 + $0x18a8] sm:$0xff]
  %v853 = vld [vmem:[%s1 + $0x18b0] sm:$0xff]
  %v854 = vld [vmem:[%s1 + $0x18b8] sm:$0xff]
  %v855 = vld [vmem:[%s1 + $0x18c0] sm:$0xff]
  %v856 = vld [vmem:[%s1 + $0x18c8] sm:$0xff]
  %v857 = vld [vmem:[%s1 + $0x18d0] sm:$0xff]
  %v858 = vld [vmem:[%s1 + $0x18d8] sm:$0xff]
  %v859 = vld [vmem:[%s1 + $0x18e0] sm:$0xff]
  %v860 = vld [vmem:[%s1 + $0x18e8] sm:$0xff]
  %v861 = vld [vmem:[%s1 + $0x18f0] sm:$0xff]
  %v862 = vld [vmem:[%s1 + $0x18f8] sm:$0xff]
  %v863 = vld [vmem:[%s1 + $0x1900] sm:$0xff]
  %v864 = vld [vmem:[%s1 + $0x1908] sm:$0xff]
  %v865 = vld [vmem:[%s1 + $0x1910] sm:$0xff]
  %v866 = vld [vmem:[%s1 + $0x1918] sm:$0xff]
  %v867 = vld [vmem:[%s1 + $0x1920] sm:$0xff]
  %v868 = vld [vmem:[%s1 + $0x1928] sm:$0xff]
  %v869 = vld [vmem:[%s1 + $0x1930] sm:$0xff]
  %v870 = vld [vmem:[%s1 + $0x1938] sm:$0xff]
  %v871 = vld [vmem:[%s1 + $0x1940] sm:$0xff]
  %v872 = vld [vmem:[%s1 + $0x1948] sm:$0xff]
  %v873 = vld [vmem:[%s1 + $0x1950] sm:$0xff]
  %v874 = vld [vmem:[%s1 + $0x1958] sm:$0xff]
  %v875 = vld [vmem:[%s1 + $0x1960] sm:$0xff]
  %v876 = vld [vmem:[%s1 + $0x1968] sm:$0xff]
  %v877 = vld [vmem:[%s1 + $0x1970] sm:$0xff]
  %v878 = vld [vmem:[%s1 + $0x1978] sm:$0xff]
  %v879 = vld [vmem:[%s1 + $0x1980] sm:$0xff]
  %v880 = vld [vmem:[%s1 + $0x1988] sm:$0xff]
  %v881 = vld [vmem:[%s1 + $0x1990] sm:$0xff]
  %v882 = vld [vmem:[%s1 + $0x1998] sm:$0xff]
  %v883 = vld [vmem:[%s1 + $0x19a0] sm:$0xff]
  %v884 = vld [vmem:[%s1 + $0x19a8] sm:$0xff]
  %v885 = vld [vmem:[%s1 + $0x19b0] sm:$0xff]
  %v886 = vld [vmem:[%s1 + $0x19b8] sm:$0xff]
  %v887 = vld [vmem:[%s1 + $0x19c0] sm:$0xff]
  %v888 = vld [vmem:[%s1 + $0x19c8] sm:$0xff]
  %v889 = vld [vmem:[%s1 + $0x19d0] sm:$0xff]
  %v890 = vld [vmem:[%s1 + $0x19d8] sm:$0xff]
  %v891 = vld [vmem:[%s1 + $0x19e0] sm:$0xff]
  %v892 = vld [vmem:[%s1 + $0x19e8] sm:$0xff]
  %v893 = vld [vmem:[%s1 + $0x19f0] sm:$0xff]
  %v894 = vld [vmem:[%s1 + $0x19f8] sm:$0xff]
  %v895 = vld [vmem:[%s1 + $0x1a00] sm:$0xff]
  %v896 = vld [vmem:[%s1 + $0x1a08] sm:$0xff]
  %v897 = vld [vmem:[%s1 + $0x1a10] sm:$0xff]
  %v898 = vld [vmem:[%s1 + $0x1a18] sm:$0xff]
  %v899 = vld [vmem:[%s1 + $0x1a20] sm:$0xff]
  %v900 = vld [vmem:[%s1 + $0x1a28] sm:$0xff]
  %v901 = vld [vmem:[%s1 + $0x1a30] sm:$0xff]
  %v902 = vld [vmem:[%s1 + $0x1a38] sm:$0xff]
  %v903 = vld [vmem:[%s1 + $0x1a40] sm:$0xff]
  %v904 = vld [vmem:[%s1 + $0x1a48] sm:$0xff]
  %v905 = vld [vmem:[%s1 + $0x1a50] sm:$0xff]
  %v906 = vld [vmem:[%s1 + $0x1a58] sm:$0xff]
  %v907 = vld [vmem:[%s1 + $0x1a60] sm:$0xff]
  %v908 = vld [vmem:[%s1 + $0x1a68] sm:$0xff]
  %v909 = vld [vmem:[%s1 + $0x1a70] sm:$0xff]
  %v910 = vld [vmem:[%s1 + $0x1a78] sm:$0xff]
  %v911 = vld [vmem:[%s1 + $0x1a80] sm:$0xff]
  %v912 = vld [vmem:[%s1 + $0x1a88] sm:$0xff]
  %v913 = vld [vmem:[%s1 + $0x1a90] sm:$0xff]
  %v914 = vld [vmem:[%s1 + $0x1a98] sm:$0xff]
  %v915 = vld [vmem:[%s1 + $0x1aa0] sm:$0xff]
  %v916 = vld [vmem:[%s1 + $0x1aa8] sm:$0xff]
  %v917 = vld [vmem:[%s1 + $0x1ab0] sm:$0xff]
  %v918 = vld [vmem:[%s1 + $0x1ab8] sm:$0xff]
  %v919 = vld [vmem:[%s1 + $0x1ac0] sm:$0xff]
  %v920 = vld [vmem:[%s1 + $0x1ac8] sm:$0xff]
  %v921 = vld [vmem:[%s1 + $0x1ad0] sm:$0xff]
  %v922 = vld [vmem:[%s1 + $0x1ad8] sm:$0xff]
  %v923 = vld [vmem:[%s1 + $0x1ae0] sm:$0xff]
  %v924 = vld [vmem:[%s1 + $0x1ae8] sm:$0xff]
  %v925 = vld [vmem:[%s1 + $0x1af0] sm:$0xff]
  %v926 = vld [vmem:[%s1 + $0x1af8] sm:$0xff]
  %v927 = vld [vmem:[%s1 + $0x1b00] sm:$0xff]
  %v928 = vld [vmem:[%s1 + $0x1b08] sm:$0xff]
  %v929 = vld [vmem:[%s1 + $0x1b10] sm:$0xff]
  %v930 = vld [vmem:[%s1 + $0x1b18] sm:$0xff]
  %v931 = vld [vmem:[%s1 + $0x1b20] sm:$0xff]
  %v932 = vld [vmem:[%s1 + $0x1b28] sm:$0xff]
  %v933 = vld [vmem:[%s1 + $0x1b30] sm:$0xff]
  %v934 = vld [vmem:[%s1 + $0x1b38] sm:$0xff]
  %v935 = vld [vmem:[%s1 + $0x1b40] sm:$0xff]
  %v936 = vld [vmem:[%s1 + $0x1b48] sm:$0xff]
  %v937 = vld [vmem:[%s1 + $0x1b50] sm:$0xff]
  %v938 = vld [vmem:[%s1 + $0x1b58] sm:$0xff]
  %v939 = vld [vmem:[%s1 + $0x1b60] sm:$0xff]
  %v940 = vld [vmem:[%s1 + $0x1b68] sm:$0xff]
  %v941 = vld [vmem:[%s1 + $0x1b70] sm:$0xff]
  %v942 = vld [vmem:[%s1 + $0x1b78] sm:$0xff]
  %v943 = vld [vmem:[%s1 + $0x1b80] sm:$0xff]
  %v944 = vld [vmem:[%s1 + $0x1b88] sm:$0xff]
  %v945 = vld [vmem:[%s1 + $0x1b90] sm:$0xff]
  %v946 = vld [vmem:[%s1 + $0x1b98] sm:$0xff]
  %v947 = vld [vmem:[%s1 + $0x1ba0] sm:$0xff]
  %v948 = vld [vmem:[%s1 + $0x1ba8] sm:$0xff]
  %v949 = vld [vmem:[%s1 + $0x1bb0] sm:$0xff]
  %v950 = vld [vmem:[%s1 + $0x1bb8] sm:$0xff]
  %v951 = vld [vmem:[%s1 + $0x1bc0] sm:$0xff]
  %v952 = vld [vmem:[%s1 + $0x1bc8] sm:$0xff]
  %v953 = vld [vmem:[%s1 + $0x1bd0] sm:$0xff]
  %v954 = vld [vmem:[%s1 + $0x1bd8] sm:$0xff]
  %v955 = vld [vmem:[%s1 + $0x1be0] sm:$0xff]
  %v956 = vld [vmem:[%s1 + $0x1be8] sm:$0xff]
  %v957 = vld [vmem:[%s1 + $0x1bf0] sm:$0xff]
  %v958 = vld [vmem:[%s1 + $0x1bf8] sm:$0xff]
  %v959 = vld [vmem:[%s2] sm:$0xf]
  %v961 = vlaneseq
  %v962 = vshrl.u32 %v961, 7
  %v963 = vsub.s32 0, %v962
  %v964 = vrot.slane %v959, %v963
  %v965 = vlaneseq
  %v966 = vshrl.u32 %v965, 7
  %v967 = vsub.s32 1, %v966
  %v968 = vrot.slane %v959, %v967
  %v969 = vlaneseq
  %v970 = vshrl.u32 %v969, 7
  %v971 = vsub.s32 2, %v970
  %v972 = vrot.slane %v959, %v971
  %v973 = vlaneseq
  %v974 = vshrl.u32 %v973, 7
  %v975 = vsub.s32 3, %v974
  %v976 = vrot.slane %v959, %v975
  %981 = vmatprep.subr.mxu0 %v64
  %982 = vmatpush1.msra.mxu0 %v63
  %983 = vmatprep.subr.mxu0 %v68
  %984 = vmatpush1.msra.mxu0 %v67
  %985 = vmatprep.subr.mxu0 %v72
  %986 = vmatpush1.msra.mxu0 %v71
  %987 = vmatprep.subr.mxu0 %v76
  %988 = vmatpush1.msra.mxu0 %v75
  %989 = vmatprep.subr.mxu0 %v80
  %990 = vmatpush1.msra.mxu0 %v79
  %991 = vmatprep.subr.mxu0 %v84
  %992 = vmatpush1.msra.mxu0 %v83
  %993 = vmatprep.subr.mxu0 %v88
  %994 = vmatpush1.msra.mxu0 %v87
  %995 = vmatprep.subr.mxu0 %v92
  %996 = vmatpush1.msra.mxu0 %v91
  %997 = vmatprep.subr.mxu0 %v96
  %998 = vmatpush1.msra.mxu0 %v95
  %999 = vmatprep.subr.mxu0 %v100
  %1000 = vmatpush1.msra.mxu0 %v99
  %1001 = vmatprep.subr.mxu0 %v104
  %1002 = vmatpush1.msra.mxu0 %v103
  %1003 = vmatprep.subr.mxu0 %v108
  %1004 = vmatpush1.msra.mxu0 %v107
  %1005 = vmatprep.subr.mxu0 %v112
  %1006 = vmatpush1.msra.mxu0 %v111
  %1007 = vmatprep.subr.mxu0 %v116
  %1008 = vmatpush1.msra.mxu0 %v115
  %1009 = vmatprep.subr.mxu0 %v120
  %1010 = vmatpush1.msra.mxu0 %v119
  %1011 = vmatprep.subr.mxu0 %v124
  %1012 = vmatpush1.msra.mxu0 %v123
  %1013 = vmatprep.subr.mxu0 %v128
  %1014 = vmatpush1.msra.mxu0 %v127
  %1015 = vmatprep.subr.mxu0 %v132
  %1016 = vmatpush1.msra.mxu0 %v131
  %1017 = vmatprep.subr.mxu0 %v136
  %1018 = vmatpush1.msra.mxu0 %v135
  %1019 = vmatprep.subr.mxu0 %v140
  %1020 = vmatpush1.msra.mxu0 %v139
  %1021 = vmatprep.subr.mxu0 %v144
  %1022 = vmatpush1.msra.mxu0 %v143
  %1023 = vmatprep.subr.mxu0 %v148
  %1024 = vmatpush1.msra.mxu0 %v147
  %1025 = vmatprep.subr.mxu0 %v152
  %1026 = vmatpush1.msra.mxu0 %v151
  %1027 = vmatprep.subr.mxu0 %v156
  %1028 = vmatpush1.msra.mxu0 %v155
  %1029 = vmatprep.subr.mxu0 %v160
  %1030 = vmatpush1.msra.mxu0 %v159
  %1031 = vmatprep.subr.mxu0 %v164
  %1032 = vmatpush1.msra.mxu0 %v163
  %1033 = vmatprep.subr.mxu0 %v168
  %1034 = vmatpush1.msra.mxu0 %v167
  %1035 = vmatprep.subr.mxu0 %v172
  %1036 = vmatpush1.msra.mxu0 %v171
  %1037 = vmatprep.subr.mxu0 %v176
  %1038 = vmatpush1.msra.mxu0 %v175
  %1039 = vmatprep.subr.mxu0 %v180
  %1040 = vmatpush1.msra.mxu0 %v179
  %1041 = vmatprep.subr.mxu0 %v184
  %1042 = vmatpush1.msra.mxu0 %v183
  %1043 = vmatprep.subr.mxu0 %v188
  %1044 = vmatpush1.msra.mxu0 %v187
  %1045 = vmatprep.mubr.f32.mxu0 %v36
  %1046 = vmatmul.mubr.f32.gmra.mrb[0].mxu0 %v35
  %v1047 = vpop.f32.mrb[0].mxu0
  %v1048 = vadd.f32 %v964, %v1047
  %v1049 = vpop.f32.mrb[0].mxu0
  %v1050 = vadd.f32 %v968, %v1049
  %1051 = vmatprep.mubr.f32.mxu0 %v50
  %1052 = vmatmul.mubr.f32.gmra.mrb[0].mxu0 %v49
  %v1053 = vpop.f32.mrb[0].mxu0
  %v1054 = vadd.f32 %v964, %v1053
  %v1055 = vpop.f32.mrb[0].mxu0
  %v1056 = vadd.f32 %v968, %v1055
  %1057 = vdwg.mxu0
  %1058 = vmatprep.subr.mxu0 %v192
  %1059 = vmatpush1.msra.mxu0 %v191
  %1060 = vmatprep.subr.mxu0 %v196
  %1061 = vmatpush1.msra.mxu0 %v195
  %1062 = vmatprep.subr.mxu0 %v200
  %1063 = vmatpush1.msra.mxu0 %v199
  %1064 = vmatprep.subr.mxu0 %v204
  %1065 = vmatpush1.msra.mxu0 %v203
  %1066 = vmatprep.subr.mxu0 %v208
  %1067 = vmatpush1.msra.mxu0 %v207
  %1068 = vmatprep.subr.mxu0 %v212
  %1069 = vmatpush1.msra.mxu0 %v211
  %1070 = vmatprep.subr.mxu0 %v216
  %1071 = vmatpush1.msra.mxu0 %v215
  %1072 = vmatprep.subr.mxu0 %v220
  %1073 = vmatpush1.msra.mxu0 %v219
  %1074 = vmatprep.subr.mxu0 %v224
  %1075 = vmatpush1.msra.mxu0 %v223
  %1076 = vmatprep.subr.mxu0 %v228
  %1077 = vmatpush1.msra.mxu0 %v227
  %1078 = vmatprep.subr.mxu0 %v232
  %1079 = vmatpush1.msra.mxu0 %v231
  %1080 = vmatprep.subr.mxu0 %v236
  %1081 = vmatpush1.msra.mxu0 %v235
  %1082 = vmatprep.subr.mxu0 %v240
  %1083 = vmatpush1.msra.mxu0 %v239
  %1084 = vmatprep.subr.mxu0 %v244
  %1085 = vmatpush1.msra.mxu0 %v243
  %1086 = vmatprep.subr.mxu0 %v248
  %1087 = vmatpush1.msra.mxu0 %v247
  %1088 = vmatprep.subr.mxu0 %v252
  %1089 = vmatpush1.msra.mxu0 %v251
  %1090 = vmatprep.subr.mxu0 %v256
  %1091 = vmatpush1.msra.mxu0 %v255
  %1092 = vmatprep.subr.mxu0 %v260
  %1093 = vmatpush1.msra.mxu0 %v259
  %1094 = vmatprep.subr.mxu0 %v264
  %1095 = vmatpush1.msra.mxu0 %v263
  %1096 = vmatprep.subr.mxu0 %v268
  %1097 = vmatpush1.msra.mxu0 %v267
  %1098 = vmatprep.subr.mxu0 %v272
  %1099 = vmatpush1.msra.mxu0 %v271
  %1100 = vmatprep.subr.mxu0 %v276
  %1101 = vmatpush1.msra.mxu0 %v275
  %1102 = vmatprep.subr.mxu0 %v280
  %1103 = vmatpush1.msra.mxu0 %v279
  %1104 = vmatprep.subr.mxu0 %v284
  %1105 = vmatpush1.msra.mxu0 %v283
  %1106 = vmatprep.subr.mxu0 %v288
  %1107 = vmatpush1.msra.mxu0 %v287
  %1108 = vmatprep.subr.mxu0 %v292
  %1109 = vmatpush1.msra.mxu0 %v291
  %1110 = vmatprep.subr.mxu0 %v296
  %1111 = vmatpush1.msra.mxu0 %v295
  %1112 = vmatprep.subr.mxu0 %v300
  %1113 = vmatpush1.msra.mxu0 %v299
  %1114 = vmatprep.subr.mxu0 %v304
  %1115 = vmatpush1.msra.mxu0 %v303
  %1116 = vmatprep.subr.mxu0 %v308
  %1117 = vmatpush1.msra.mxu0 %v307
  %1118 = vmatprep.subr.mxu0 %v312
  %1119 = vmatpush1.msra.mxu0 %v311
  %1120 = vmatprep.subr.mxu0 %v316
  %1121 = vmatpush1.msra.mxu0 %v315
  %1122 = vmatprep.mubr.f32.mxu0 %v38
  %1123 = vmatmul.mubr.f32.gmra.mrb[0].mxu0 %v37
  %v1124 = vpop.f32.mrb[0].mxu0
  %v1125 = vadd.f32 %v1048, %v1124
  %v1126 = vpop.f32.mrb[0].mxu0
  %v1127 = vadd.f32 %v1050, %v1126
  %1128 = vmatprep.mubr.f32.mxu0 %v52
  %1129 = vmatmul.mubr.f32.gmra.mrb[0].mxu0 %v51
  %v1130 = vpop.f32.mrb[0].mxu0
  %v1131 = vadd.f32 %v1054, %v1130
  %v1132 = vpop.f32.mrb[0].mxu0
  %v1133 = vadd.f32 %v1056, %v1132
  %1134 = vdwg.mxu0
  %1135 = vmatprep.subr.mxu0 %v320
  %1136 = vmatpush1.msra.mxu0 %v319
  %1137 = vmatprep.subr.mxu0 %v324
  %1138 = vmatpush1.msra.mxu0 %v323
  %1139 = vmatprep.subr.mxu0 %v328
  %1140 = vmatpush1.msra.mxu0 %v327
  %1141 = vmatprep.subr.mxu0 %v332
  %1142 = vmatpush1.msra.mxu0 %v331
  %1143 = vmatprep.subr.mxu0 %v336
  %1144 = vmatpush1.msra.mxu0 %v335
  %1145 = vmatprep.subr.mxu0 %v340
  %1146 = vmatpush1.msra.mxu0 %v339
  %1147 = vmatprep.subr.mxu0 %v344
  %1148 = vmatpush1.msra.mxu0 %v343
  %1149 = vmatprep.subr.mxu0 %v348
  %1150 = vmatpush1.msra.mxu0 %v347
  %1151 = vmatprep.subr.mxu0 %v352
  %1152 = vmatpush1.msra.mxu0 %v351
  %1153 = vmatprep.subr.mxu0 %v356
  %1154 = vmatpush1.msra.mxu0 %v355
  %1155 = vmatprep.subr.mxu0 %v360
  %1156 = vmatpush1.msra.mxu0 %v359
  %1157 = vmatprep.subr.mxu0 %v364
  %1158 = vmatpush1.msra.mxu0 %v363
  %1159 = vmatprep.subr.mxu0 %v368
  %1160 = vmatpush1.msra.mxu0 %v367
  %1161 = vmatprep.subr.mxu0 %v372
  %1162 = vmatpush1.msra.mxu0 %v371
  %1163 = vmatprep.subr.mxu0 %v376
  %1164 = vmatpush1.msra.mxu0 %v375
  %1165 = vmatprep.subr.mxu0 %v380
  %1166 = vmatpush1.msra.mxu0 %v379
  %1167 = vmatprep.subr.mxu0 %v384
  %1168 = vmatpush1.msra.mxu0 %v383
  %1169 = vmatprep.subr.mxu0 %v388
  %1170 = vmatpush1.msra.mxu0 %v387
  %1171 = vmatprep.subr.mxu0 %v392
  %1172 = vmatpush1.msra.mxu0 %v391
  %1173 = vmatprep.subr.mxu0 %v396
  %1174 = vmatpush1.msra.mxu0 %v395
  %1175 = vmatprep.subr.mxu0 %v400
  %1176 = vmatpush1.msra.mxu0 %v399
  %1177 = vmatprep.subr.mxu0 %v404
  %1178 = vmatpush1.msra.mxu0 %v403
  %1179 = vmatprep.subr.mxu0 %v408
  %1180 = vmatpush1.msra.mxu0 %v407
  %1181 = vmatprep.subr.mxu0 %v412
  %1182 = vmatpush1.msra.mxu0 %v411
  %1183 = vmatprep.subr.mxu0 %v416
  %1184 = vmatpush1.msra.mxu0 %v415
  %1185 = vmatprep.subr.mxu0 %v420
  %1186 = vmatpush1.msra.mxu0 %v419
  %1187 = vmatprep.subr.mxu0 %v424
  %1188 = vmatpush1.msra.mxu0 %v423
  %1189 = vmatprep.subr.mxu0 %v428
  %1190 = vmatpush1.msra.mxu0 %v427
  %1191 = vmatprep.subr.mxu0 %v432
  %1192 = vmatpush1.msra.mxu0 %v431
  %1193 = vmatprep.subr.mxu0 %v436
  %1194 = vmatpush1.msra.mxu0 %v435
  %1195 = vmatprep.subr.mxu0 %v440
  %1196 = vmatpush1.msra.mxu0 %v439
  %1197 = vmatprep.subr.mxu0 %v444
  %1198 = vmatpush1.msra.mxu0 %v443
  %1199 = vmatprep.mubr.f32.mxu0 %v40
  %1200 = vmatmul.mubr.f32.gmra.mrb[0].mxu0 %v39
  %v1201 = vpop.f32.mrb[0].mxu0
  %v1202 = vadd.f32 %v1125, %v1201
  %v1203 = vpop.f32.mrb[0].mxu0
  %v1204 = vadd.f32 %v1127, %v1203
  %1205 = vmatprep.mubr.f32.mxu0 %v54
  %1206 = vmatmul.mubr.f32.gmra.mrb[0].mxu0 %v53
  %v1207 = vpop.f32.mrb[0].mxu0
  %v1208 = vadd.f32 %v1131, %v1207
  %v1209 = vpop.f32.mrb[0].mxu0
  %v1210 = vadd.f32 %v1133, %v1209
  %1211 = vdwg.mxu0
  %1212 = vmatprep.subr.mxu0 %v448
  %1213 = vmatpush1.msra.mxu0 %v447
  %1214 = vmatprep.subr.mxu0 %v452
  %1215 = vmatpush1.msra.mxu0 %v451
  %1216 = vmatprep.subr.mxu0 %v456
  %1217 = vmatpush1.msra.mxu0 %v455
  %1218 = vmatprep.subr.mxu0 %v460
  %1219 = vmatpush1.msra.mxu0 %v459
  %1220 = vmatprep.subr.mxu0 %v464
  %1221 = vmatpush1.msra.mxu0 %v463
  %1222 = vmatprep.subr.mxu0 %v468
  %1223 = vmatpush1.msra.mxu0 %v467
  %1224 = vmatprep.subr.mxu0 %v472
  %1225 = vmatpush1.msra.mxu0 %v471
  %1226 = vmatprep.subr.mxu0 %v476
  %1227 = vmatpush1.msra.mxu0 %v475
  %1228 = vmatprep.subr.mxu0 %v480
  %1229 = vmatpush1.msra.mxu0 %v479
  %1230 = vmatprep.subr.mxu0 %v484
  %1231 = vmatpush1.msra.mxu0 %v483
  %1232 = vmatprep.subr.mxu0 %v488
  %1233 = vmatpush1.msra.mxu0 %v487
  %1234 = vmatprep.subr.mxu0 %v492
  %1235 = vmatpush1.msra.mxu0 %v491
  %1236 = vmatprep.subr.mxu0 %v496
  %1237 = vmatpush1.msra.mxu0 %v495
  %1238 = vmatprep.subr.mxu0 %v500
  %1239 = vmatpush1.msra.mxu0 %v499
  %1240 = vmatprep.subr.mxu0 %v504
  %1241 = vmatpush1.msra.mxu0 %v503
  %1242 = vmatprep.subr.mxu0 %v508
  %1243 = vmatpush1.msra.mxu0 %v507
  %1244 = vmatprep.subr.mxu0 %v512
  %1245 = vmatpush1.msra.mxu0 %v511
  %1246 = vmatprep.subr.mxu0 %v516
  %1247 = vmatpush1.msra.mxu0 %v515
  %1248 = vmatprep.subr.mxu0 %v520
  %1249 = vmatpush1.msra.mxu0 %v519
  %1250 = vmatprep.subr.mxu0 %v524
  %1251 = vmatpush1.msra.mxu0 %v523
  %1252 = vmatprep.subr.mxu0 %v528
  %1253 = vmatpush1.msra.mxu0 %v527
  %1254 = vmatprep.subr.mxu0 %v532
  %1255 = vmatpush1.msra.mxu0 %v531
  %1256 = vmatprep.subr.mxu0 %v536
  %1257 = vmatpush1.msra.mxu0 %v535
  %1258 = vmatprep.subr.mxu0 %v540
  %1259 = vmatpush1.msra.mxu0 %v539
  %1260 = vmatprep.subr.mxu0 %v544
  %1261 = vmatpush1.msra.mxu0 %v543
  %1262 = vmatprep.subr.mxu0 %v548
  %1263 = vmatpush1.msra.mxu0 %v547
  %1264 = vmatprep.subr.mxu0 %v552
  %1265 = vmatpush1.msra.mxu0 %v551
  %1266 = vmatprep.subr.mxu0 %v556
  %1267 = vmatpush1.msra.mxu0 %v555
  %1268 = vmatprep.subr.mxu0 %v560
  %1269 = vmatpush1.msra.mxu0 %v559
  %1270 = vmatprep.subr.mxu0 %v564
  %1271 = vmatpush1.msra.mxu0 %v563
  %1272 = vmatprep.subr.mxu0 %v568
  %1273 = vmatpush1.msra.mxu0 %v567
  %1274 = vmatprep.subr.mxu0 %v572
  %1275 = vmatpush1.msra.mxu0 %v571
  %1276 = vmatprep.mubr.f32.mxu0 %v42
  %1277 = vmatmul.mubr.f32.gmra.mrb[0].mxu0 %v41
  %v1278 = vpop.f32.mrb[0].mxu0
  %v1279 = vadd.f32 %v1202, %v1278
  %v1280 = vpop.f32.mrb[0].mxu0
  %v1281 = vadd.f32 %v1204, %v1280
  %1282 = vmatprep.mubr.f32.mxu0 %v56
  %1283 = vmatmul.mubr.f32.gmra.mrb[0].mxu0 %v55
  %v1284 = vpop.f32.mrb[0].mxu0
  %v1285 = vadd.f32 %v1208, %v1284
  %v1286 = vpop.f32.mrb[0].mxu0
  %v1287 = vadd.f32 %v1210, %v1286
  %1288 = vdwg.mxu0
  %1289 = vmatprep.subr.mxu0 %v576
  %1290 = vmatpush1.msra.mxu0 %v575
  %1291 = vmatprep.subr.mxu0 %v580
  %1292 = vmatpush1.msra.mxu0 %v579
  %1293 = vmatprep.subr.mxu0 %v584
  %1294 = vmatpush1.msra.mxu0 %v583
  %1295 = vmatprep.subr.mxu0 %v588
  %1296 = vmatpush1.msra.mxu0 %v587
  %1297 = vmatprep.subr.mxu0 %v592
  %1298 = vmatpush1.msra.mxu0 %v591
  %1299 = vmatprep.subr.mxu0 %v596
  %1300 = vmatpush1.msra.mxu0 %v595
  %1301 = vmatprep.subr.mxu0 %v600
  %1302 = vmatpush1.msra.mxu0 %v599
  %1303 = vmatprep.subr.mxu0 %v604
  %1304 = vmatpush1.msra.mxu0 %v603
  %1305 = vmatprep.subr.mxu0 %v608
  %1306 = vmatpush1.msra.mxu0 %v607
  %1307 = vmatprep.subr.mxu0 %v612
  %1308 = vmatpush1.msra.mxu0 %v611
  %1309 = vmatprep.subr.mxu0 %v616
  %1310 = vmatpush1.msra.mxu0 %v615
  %1311 = vmatprep.subr.mxu0 %v620
  %1312 = vmatpush1.msra.mxu0 %v619
  %1313 = vmatprep.subr.mxu0 %v624
  %1314 = vmatpush1.msra.mxu0 %v623
  %1315 = vmatprep.subr.mxu0 %v628
  %1316 = vmatpush1.msra.mxu0 %v627
  %1317 = vmatprep.subr.mxu0 %v632
  %1318 = vmatpush1.msra.mxu0 %v631
  %1319 = vmatprep.subr.mxu0 %v636
  %1320 = vmatpush1.msra.mxu0 %v635
  %1321 = vmatprep.subr.mxu0 %v640
  %1322 = vmatpush1.msra.mxu0 %v639
  %1323 = vmatprep.subr.mxu0 %v644
  %1324 = vmatpush1.msra.mxu0 %v643
  %1325 = vmatprep.subr.mxu0 %v648
  %1326 = vmatpush1.msra.mxu0 %v647
  %1327 = vmatprep.subr.mxu0 %v652
  %1328 = vmatpush1.msra.mxu0 %v651
  %1329 = vmatprep.subr.mxu0 %v656
  %1330 = vmatpush1.msra.mxu0 %v655
  %1331 = vmatprep.subr.mxu0 %v660
  %1332 = vmatpush1.msra.mxu0 %v659
  %1333 = vmatprep.subr.mxu0 %v664
  %1334 = vmatpush1.msra.mxu0 %v663
  %1335 = vmatprep.subr.mxu0 %v668
  %1336 = vmatpush1.msra.mxu0 %v667
  %1337 = vmatprep.subr.mxu0 %v672
  %1338 = vmatpush1.msra.mxu0 %v671
  %1339 = vmatprep.subr.mxu0 %v676
  %1340 = vmatpush1.msra.mxu0 %v675
  %1341 = vmatprep.subr.mxu0 %v680
  %1342 = vmatpush1.msra.mxu0 %v679
  %1343 = vmatprep.subr.mxu0 %v684
  %1344 = vmatpush1.msra.mxu0 %v683
  %1345 = vmatprep.subr.mxu0 %v688
  %1346 = vmatpush1.msra.mxu0 %v687
  %1347 = vmatprep.subr.mxu0 %v692
  %1348 = vmatpush1.msra.mxu0 %v691
  %1349 = vmatprep.subr.mxu0 %v696
  %1350 = vmatpush1.msra.mxu0 %v695
  %1351 = vmatprep.subr.mxu0 %v700
  %1352 = vmatpush1.msra.mxu0 %v699
  %1353 = vmatprep.mubr.f32.mxu0 %v44
  %1354 = vmatmul.mubr.f32.gmra.mrb[0].mxu0 %v43
  %v1355 = vpop.f32.mrb[0].mxu0
  %v1356 = vadd.f32 %v1279, %v1355
  %v1357 = vpop.f32.mrb[0].mxu0
  %v1358 = vadd.f32 %v1281, %v1357
  %1359 = vmatprep.mubr.f32.mxu0 %v58
  %1360 = vmatmul.mubr.f32.gmra.mrb[0].mxu0 %v57
  %v1361 = vpop.f32.mrb[0].mxu0
  %v1362 = vadd.f32 %v1285, %v1361
  %v1363 = vpop.f32.mrb[0].mxu0
  %v1364 = vadd.f32 %v1287, %v1363
  %1365 = vdwg.mxu0
  %1366 = vmatprep.subr.mxu0 %v704
  %1367 = vmatpush1.msra.mxu0 %v703
  %1368 = vmatprep.subr.mxu0 %v708
  %1369 = vmatpush1.msra.mxu0 %v707
  %1370 = vmatprep.subr.mxu0 %v712
  %1371 = vmatpush1.msra.mxu0 %v711
  %1372 = vmatprep.subr.mxu0 %v716
  %1373 = vmatpush1.msra.mxu0 %v715
  %1374 = vmatprep.subr.mxu0 %v720
  %1375 = vmatpush1.msra.mxu0 %v719
  %1376 = vmatprep.subr.mxu0 %v724
  %1377 = vmatpush1.msra.mxu0 %v723
  %1378 = vmatprep.subr.mxu0 %v728
  %1379 = vmatpush1.msra.mxu0 %v727
  %1380 = vmatprep.subr.mxu0 %v732
  %1381 = vmatpush1.msra.mxu0 %v731
  %1382 = vmatprep.subr.mxu0 %v736
  %1383 = vmatpush1.msra.mxu0 %v735
  %1384 = vmatprep.subr.mxu0 %v740
  %1385 = vmatpush1.msra.mxu0 %v739
  %1386 = vmatprep.subr.mxu0 %v744
  %1387 = vmatpush1.msra.mxu0 %v743
  %1388 = vmatprep.subr.mxu0 %v748
  %1389 = vmatpush1.msra.mxu0 %v747
  %1390 = vmatprep.subr.mxu0 %v752
  %1391 = vmatpush1.msra.mxu0 %v751
  %1392 = vmatprep.subr.mxu0 %v756
  %1393 = vmatpush1.msra.mxu0 %v755
  %1394 = vmatprep.subr.mxu0 %v760
  %1395 = vmatpush1.msra.mxu0 %v759
  %1396 = vmatprep.subr.mxu0 %v764
  %1397 = vmatpush1.msra.mxu0 %v763
  %1398 = vmatprep.subr.mxu0 %v768
  %1399 = vmatpush1.msra.mxu0 %v767
  %1400 = vmatprep.subr.mxu0 %v772
  %1401 = vmatpush1.msra.mxu0 %v771
  %1402 = vmatprep.subr.mxu0 %v776
  %1403 = vmatpush1.msra.mxu0 %v775
  %1404 = vmatprep.subr.mxu0 %v780
  %1405 = vmatpush1.msra.mxu0 %v779
  %1406 = vmatprep.subr.mxu0 %v784
  %1407 = vmatpush1.msra.mxu0 %v783
  %1408 = vmatprep.subr.mxu0 %v788
  %1409 = vmatpush1.msra.mxu0 %v787
  %1410 = vmatprep.subr.mxu0 %v792
  %1411 = vmatpush1.msra.mxu0 %v791
  %1412 = vmatprep.subr.mxu0 %v796
  %1413 = vmatpush1.msra.mxu0 %v795
  %1414 = vmatprep.subr.mxu0 %v800
  %1415 = vmatpush1.msra.mxu0 %v799
  %1416 = vmatprep.subr.mxu0 %v804
  %1417 = vmatpush1.msra.mxu0 %v803
  %1418 = vmatprep.subr.mxu0 %v808
  %1419 = vmatpush1.msra.mxu0 %v807
  %1420 = vmatprep.subr.mxu0 %v812
  %1421 = vmatpush1.msra.mxu0 %v811
  %1422 = vmatprep.subr.mxu0 %v816
  %1423 = vmatpush1.msra.mxu0 %v815
  %1424 = vmatprep.subr.mxu0 %v820
  %1425 = vmatpush1.msra.mxu0 %v819
  %1426 = vmatprep.subr.mxu0 %v824
  %1427 = vmatpush1.msra.mxu0 %v823
  %1428 = vmatprep.subr.mxu0 %v828
  %1429 = vmatpush1.msra.mxu0 %v827
  %1430 = vmatprep.mubr.f32.mxu0 %v46
  %1431 = vmatmul.mubr.f32.gmra.mrb[0].mxu0 %v45
  %v1432 = vpop.f32.mrb[0].mxu0
  %v1433 = vadd.f32 %v1356, %v1432
  %v1434 = vpop.f32.mrb[0].mxu0
  %v1435 = vadd.f32 %v1358, %v1434
  %1436 = vmatprep.mubr.f32.mxu0 %v60
  %1437 = vmatmul.mubr.f32.gmra.mrb[0].mxu0 %v59
  %v1438 = vpop.f32.mrb[0].mxu0
  %v1439 = vadd.f32 %v1362, %v1438
  %v1440 = vpop.f32.mrb[0].mxu0
  %v1441 = vadd.f32 %v1364, %v1440
  %1442 = vdwg.mxu0
  %1443 = vmatprep.subr.mxu0 %v832
  %1444 = vmatpush1.msra.mxu0 %v831
  %1445 = vmatprep.subr.mxu0 %v836
  %1446 = vmatpush1.msra.mxu0 %v835
  %1447 = vmatprep.subr.mxu0 %v840
  %1448 = vmatpush1.msra.mxu0 %v839
  %1449 = vmatprep.subr.mxu0 %v844
  %1450 = vmatpush1.msra.mxu0 %v843
  %1451 = vmatprep.subr.mxu0 %v848
  %1452 = vmatpush1.msra.mxu0 %v847
  %1453 = vmatprep.subr.mxu0 %v852
  %1454 = vmatpush1.msra.mxu0 %v851
  %1455 = vmatprep.subr.mxu0 %v856
  %1456 = vmatpush1.msra.mxu0 %v855
  %1457 = vmatprep.subr.mxu0 %v860
  %1458 = vmatpush1.msra.mxu0 %v859
  %1459 = vmatprep.subr.mxu0 %v864
  %1460 = vmatpush1.msra.mxu0 %v863
  %1461 = vmatprep.subr.mxu0 %v868
  %1462 = vmatpush1.msra.mxu0 %v867
  %1463 = vmatprep.subr.mxu0 %v872
  %1464 = vmatpush1.msra.mxu0 %v871
  %1465 = vmatprep.subr.mxu0 %v876
  %1466 = vmatpush1.msra.mxu0 %v875
  %1467 = vmatprep.subr.mxu0 %v880
  %1468 = vmatpush1.msra.mxu0 %v879
  %1469 = vmatprep.subr.mxu0 %v884
  %1470 = vmatpush1.msra.mxu0 %v883
  %1471 = vmatprep.subr.mxu0 %v888
  %1472 = vmatpush1.msra.mxu0 %v887
  %1473 = vmatprep.subr.mxu0 %v892
  %1474 = vmatpush1.msra.mxu0 %v891
  %1475 = vmatprep.subr.mxu0 %v896
  %1476 = vmatpush1.msra.mxu0 %v895
  %1477 = vmatprep.subr.mxu0 %v900
  %1478 = vmatpush1.msra.mxu0 %v899
  %1479 = vmatprep.subr.mxu0 %v904
  %1480 = vmatpush1.msra.mxu0 %v903
  %1481 = vmatprep.subr.mxu0 %v908
  %1482 = vmatpush1.msra.mxu0 %v907
  %1483 = vmatprep.subr.mxu0 %v912
  %1484 = vmatpush1.msra.mxu0 %v911
  %1485 = vmatprep.subr.mxu0 %v916
  %1486 = vmatpush1.msra.mxu0 %v915
  %1487 = vmatprep.subr.mxu0 %v920
  %1488 = vmatpush1.msra.mxu0 %v919
  %1489 = vmatprep.subr.mxu0 %v924
  %1490 = vmatpush1.msra.mxu0 %v923
  %1491 = vmatprep.subr.mxu0 %v928
  %1492 = vmatpush1.msra.mxu0 %v927
  %1493 = vmatprep.subr.mxu0 %v932
  %1494 = vmatpush1.msra.mxu0 %v931
  %1495 = vmatprep.subr.mxu0 %v936
  %1496 = vmatpush1.msra.mxu0 %v935
  %1497 = vmatprep.subr.mxu0 %v940
  %1498 = vmatpush1.msra.mxu0 %v939
  %1499 = vmatprep.subr.mxu0 %v944
  %1500 = vmatpush1.msra.mxu0 %v943
  %1501 = vmatprep.subr.mxu0 %v948
  %1502 = vmatpush1.msra.mxu0 %v947
  %1503 = vmatprep.subr.mxu0 %v952
  %1504 = vmatpush1.msra.mxu0 %v951
  %1505 = vmatprep.subr.mxu0 %v956
  %1506 = vmatpush1.msra.mxu0 %v955
  %1507 = vmatprep.mubr.f32.mxu0 %v48
  %1508 = vmatmul.mubr.f32.gmra.mrb[0].mxu0 %v47
  %v1509 = vpop.f32.mrb[0].mxu0
  %v1510 = vadd.f32 %v1433, %v1509
  %v1511 = vpop.f32.mrb[0].mxu0
  %v1512 = vadd.f32 %v1435, %v1511
  %1513 = vmatprep.mubr.f32.mxu0 %v62
  %1514 = vmatmul.mubr.f32.gmra.mrb[0].mxu0 %v61
  %v1515 = vpop.f32.mrb[0].mxu0
  %v1516 = vadd.f32 %v1439, %v1515
  %v1517 = vpop.f32.mrb[0].mxu0
  %v1518 = vadd.f32 %v1441, %v1517
  %1519 = vdwg.mxu0
  %1520 = vmatprep.subr.mxu0 %v66
  %1521 = vmatpush1.msra.mxu0 %v65
  %1522 = vmatprep.subr.mxu0 %v70
  %1523 = vmatpush1.msra.mxu0 %v69
  %1524 = vmatprep.subr.mxu0 %v74
  %1525 = vmatpush1.msra.mxu0 %v73
  %1526 = vmatprep.subr.mxu0 %v78
  %1527 = vmatpush1.msra.mxu0 %v77
  %1528 = vmatprep.subr.mxu0 %v82
  %1529 = vmatpush1.msra.mxu0 %v81
  %1530 = vmatprep.subr.mxu0 %v86
  %1531 = vmatpush1.msra.mxu0 %v85
  %1532 = vmatprep.subr.mxu0 %v90
  %1533 = vmatpush1.msra.mxu0 %v89
  %1534 = vmatprep.subr.mxu0 %v94
  %1535 = vmatpush1.msra.mxu0 %v93
  %1536 = vmatprep.subr.mxu0 %v98
  %1537 = vmatpush1.msra.mxu0 %v97
  %1538 = vmatprep.subr.mxu0 %v102
  %1539 = vmatpush1.msra.mxu0 %v101
  %1540 = vmatprep.subr.mxu0 %v106
  %1541 = vmatpush1.msra.mxu0 %v105
  %1542 = vmatprep.subr.mxu0 %v110
  %1543 = vmatpush1.msra.mxu0 %v109
  %1544 = vmatprep.subr.mxu0 %v114
  %1545 = vmatpush1.msra.mxu0 %v113
  %1546 = vmatprep.subr.mxu0 %v118
  %1547 = vmatpush1.msra.mxu0 %v117
  %1548 = vmatprep.subr.mxu0 %v122
  %1549 = vmatpush1.msra.mxu0 %v121
  %1550 = vmatprep.subr.mxu0 %v126
  %1551 = vmatpush1.msra.mxu0 %v125
  %1552 = vmatprep.subr.mxu0 %v130
  %1553 = vmatpush1.msra.mxu0 %v129
  %1554 = vmatprep.subr.mxu0 %v134
  %1555 = vmatpush1.msra.mxu0 %v133
  %1556 = vmatprep.subr.mxu0 %v138
  %1557 = vmatpush1.msra.mxu0 %v137
  %1558 = vmatprep.subr.mxu0 %v142
  %1559 = vmatpush1.msra.mxu0 %v141
  %1560 = vmatprep.subr.mxu0 %v146
  %1561 = vmatpush1.msra.mxu0 %v145
  %1562 = vmatprep.subr.mxu0 %v150
  %1563 = vmatpush1.msra.mxu0 %v149
  %1564 = vmatprep.subr.mxu0 %v154
  %1565 = vmatpush1.msra.mxu0 %v153
  %1566 = vmatprep.subr.mxu0 %v158
  %1567 = vmatpush1.msra.mxu0 %v157
  %1568 = vmatprep.subr.mxu0 %v162
  %1569 = vmatpush1.msra.mxu0 %v161
  %1570 = vmatprep.subr.mxu0 %v166
  %1571 = vmatpush1.msra.mxu0 %v165
  %1572 = vmatprep.subr.mxu0 %v170
  %1573 = vmatpush1.msra.mxu0 %v169
  %1574 = vmatprep.subr.mxu0 %v174
  %1575 = vmatpush1.msra.mxu0 %v173
  %1576 = vmatprep.subr.mxu0 %v178
  %1577 = vmatpush1.msra.mxu0 %v177
  %1578 = vmatprep.subr.mxu0 %v182
  %1579 = vmatpush1.msra.mxu0 %v181
  %1580 = vmatprep.subr.mxu0 %v186
  %1581 = vmatpush1.msra.mxu0 %v185
  %1582 = vmatprep.subr.mxu0 %v190
  %1583 = vmatpush1.msra.mxu0 %v189
  %1584 = vmatprep.mubr.f32.mxu0 %v36
  %1585 = vmatmul.mubr.f32.gmra.mrb[0].mxu0 %v35
  %v1586 = vpop.f32.mrb[0].mxu0
  %v1587 = vadd.f32 %v972, %v1586
  %v1588 = vpop.f32.mrb[0].mxu0
  %v1589 = vadd.f32 %v976, %v1588
  %1590 = vmatprep.mubr.f32.mxu0 %v50
  %1591 = vmatmul.mubr.f32.gmra.mrb[0].mxu0 %v49
  %v1592 = vpop.f32.mrb[0].mxu0
  %v1593 = vadd.f32 %v972, %v1592
  %v1594 = vpop.f32.mrb[0].mxu0
  %v1595 = vadd.f32 %v976, %v1594
  %1596 = vdwg.mxu0
  %1597 = vmatprep.subr.mxu0 %v194
  %1598 = vmatpush1.msra.mxu0 %v193
  %1599 = vmatprep.subr.mxu0 %v198
  %1600 = vmatpush1.msra.mxu0 %v197
  %1601 = vmatprep.subr.mxu0 %v202
  %1602 = vmatpush1.msra.mxu0 %v201
  %1603 = vmatprep.subr.mxu0 %v206
  %1604 = vmatpush1.msra.mxu0 %v205
  %1605 = vmatprep.subr.mxu0 %v210
  %1606 = vmatpush1.msra.mxu0 %v209
  %1607 = vmatprep.subr.mxu0 %v214
  %1608 = vmatpush1.msra.mxu0 %v213
  %1609 = vmatprep.subr.mxu0 %v218
  %1610 = vmatpush1.msra.mxu0 %v217
  %1611 = vmatprep.subr.mxu0 %v222
  %1612 = vmatpush1.msra.mxu0 %v221
  %1613 = vmatprep.subr.mxu0 %v226
  %1614 = vmatpush1.msra.mxu0 %v225
  %1615 = vmatprep.subr.mxu0 %v230
  %1616 = vmatpush1.msra.mxu0 %v229
  %1617 = vmatprep.subr.mxu0 %v234
  %1618 = vmatpush1.msra.mxu0 %v233
  %1619 = vmatprep.subr.mxu0 %v238
  %1620 = vmatpush1.msra.mxu0 %v237
  %1621 = vmatprep.subr.mxu0 %v242
  %1622 = vmatpush1.msra.mxu0 %v241
  %1623 = vmatprep.subr.mxu0 %v246
  %1624 = vmatpush1.msra.mxu0 %v245
  %1625 = vmatprep.subr.mxu0 %v250
  %1626 = vmatpush1.msra.mxu0 %v249
  %1627 = vmatprep.subr.mxu0 %v254
  %1628 = vmatpush1.msra.mxu0 %v253
  %1629 = vmatprep.subr.mxu0 %v258
  %1630 = vmatpush1.msra.mxu0 %v257
  %1631 = vmatprep.subr.mxu0 %v262
  %1632 = vmatpush1.msra.mxu0 %v261
  %1633 = vmatprep.subr.mxu0 %v266
  %1634 = vmatpush1.msra.mxu0 %v265
  %1635 = vmatprep.subr.mxu0 %v270
  %1636 = vmatpush1.msra.mxu0 %v269
  %1637 = vmatprep.subr.mxu0 %v274
  %1638 = vmatpush1.msra.mxu0 %v273
  %1639 = vmatprep.subr.mxu0 %v278
  %1640 = vmatpush1.msra.mxu0 %v277
  %1641 = vmatprep.subr.mxu0 %v282
  %1642 = vmatpush1.msra.mxu0 %v281
  %1643 = vmatprep.subr.mxu0 %v286
  %1644 = vmatpush1.msra.mxu0 %v285
  %1645 = vmatprep.subr.mxu0 %v290
  %1646 = vmatpush1.msra.mxu0 %v289
  %1647 = vmatprep.subr.mxu0 %v294
  %1648 = vmatpush1.msra.mxu0 %v293
  %1649 = vmatprep.subr.mxu0 %v298
  %1650 = vmatpush1.msra.mxu0 %v297
  %1651 = vmatprep.subr.mxu0 %v302
  %1652 = vmatpush1.msra.mxu0 %v301
  %1653 = vmatprep.subr.mxu0 %v306
  %1654 = vmatpush1.msra.mxu0 %v305
  %1655 = vmatprep.subr.mxu0 %v310
  %1656 = vmatpush1.msra.mxu0 %v309
  %1657 = vmatprep.subr.mxu0 %v314
  %1658 = vmatpush1.msra.mxu0 %v313
  %1659 = vmatprep.subr.mxu0 %v318
  %1660 = vmatpush1.msra.mxu0 %v317
  %1661 = vmatprep.mubr.f32.mxu0 %v38
  %1662 = vmatmul.mubr.f32.gmra.mrb[0].mxu0 %v37
  %v1663 = vpop.f32.mrb[0].mxu0
  %v1664 = vadd.f32 %v1587, %v1663
  %v1665 = vpop.f32.mrb[0].mxu0
  %v1666 = vadd.f32 %v1589, %v1665
  %1667 = vmatprep.mubr.f32.mxu0 %v52
  %1668 = vmatmul.mubr.f32.gmra.mrb[0].mxu0 %v51
  %v1669 = vpop.f32.mrb[0].mxu0
  %v1670 = vadd.f32 %v1593, %v1669
  %v1671 = vpop.f32.mrb[0].mxu0
  %v1672 = vadd.f32 %v1595, %v1671
  %1673 = vdwg.mxu0
  %1674 = vmatprep.subr.mxu0 %v322
  %1675 = vmatpush1.msra.mxu0 %v321
  %1676 = vmatprep.subr.mxu0 %v326
  %1677 = vmatpush1.msra.mxu0 %v325
  %1678 = vmatprep.subr.mxu0 %v330
  %1679 = vmatpush1.msra.mxu0 %v329
  %1680 = vmatprep.subr.mxu0 %v334
  %1681 = vmatpush1.msra.mxu0 %v333
  %1682 = vmatprep.subr.mxu0 %v338
  %1683 = vmatpush1.msra.mxu0 %v337
  %1684 = vmatprep.subr.mxu0 %v342
  %1685 = vmatpush1.msra.mxu0 %v341
  %1686 = vmatprep.subr.mxu0 %v346
  %1687 = vmatpush1.msra.mxu0 %v345
  %1688 = vmatprep.subr.mxu0 %v350
  %1689 = vmatpush1.msra.mxu0 %v349
  %1690 = vmatprep.subr.mxu0 %v354
  %1691 = vmatpush1.msra.mxu0 %v353
  %1692 = vmatprep.subr.mxu0 %v358
  %1693 = vmatpush1.msra.mxu0 %v357
  %1694 = vmatprep.subr.mxu0 %v362
  %1695 = vmatpush1.msra.mxu0 %v361
  %1696 = vmatprep.subr.mxu0 %v366
  %1697 = vmatpush1.msra.mxu0 %v365
  %1698 = vmatprep.subr.mxu0 %v370
  %1699 = vmatpush1.msra.mxu0 %v369
  %1700 = vmatprep.subr.mxu0 %v374
  %1701 = vmatpush1.msra.mxu0 %v373
  %1702 = vmatprep.subr.mxu0 %v378
  %1703 = vmatpush1.msra.mxu0 %v377
  %1704 = vmatprep.subr.mxu0 %v382
  %1705 = vmatpush1.msra.mxu0 %v381
  %1706 = vmatprep.subr.mxu0 %v386
  %1707 = vmatpush1.msra.mxu0 %v385
  %1708 = vmatprep.subr.mxu0 %v390
  %1709 = vmatpush1.msra.mxu0 %v389
  %1710 = vmatprep.subr.mxu0 %v394
  %1711 = vmatpush1.msra.mxu0 %v393
  %1712 = vmatprep.subr.mxu0 %v398
  %1713 = vmatpush1.msra.mxu0 %v397
  %1714 = vmatprep.subr.mxu0 %v402
  %1715 = vmatpush1.msra.mxu0 %v401
  %1716 = vmatprep.subr.mxu0 %v406
  %1717 = vmatpush1.msra.mxu0 %v405
  %1718 = vmatprep.subr.mxu0 %v410
  %1719 = vmatpush1.msra.mxu0 %v409
  %1720 = vmatprep.subr.mxu0 %v414
  %1721 = vmatpush1.msra.mxu0 %v413
  %1722 = vmatprep.subr.mxu0 %v418
  %1723 = vmatpush1.msra.mxu0 %v417
  %1724 = vmatprep.subr.mxu0 %v422
  %1725 = vmatpush1.msra.mxu0 %v421
  %1726 = vmatprep.subr.mxu0 %v426
  %1727 = vmatpush1.msra.mxu0 %v425
  %1728 = vmatprep.subr.mxu0 %v430
  %1729 = vmatpush1.msra.mxu0 %v429
  %1730 = vmatprep.subr.mxu0 %v434
  %1731 = vmatpush1.msra.mxu0 %v433
  %1732 = vmatprep.subr.mxu0 %v438
  %1733 = vmatpush1.msra.mxu0 %v437
  %1734 = vmatprep.subr.mxu0 %v442
  %1735 = vmatpush1.msra.mxu0 %v441
  %1736 = vmatprep.subr.mxu0 %v446
  %1737 = vmatpush1.msra.mxu0 %v445
  %1738 = vmatprep.mubr.f32.mxu0 %v40
  %1739 = vmatmul.mubr.f32.gmra.mrb[0].mxu0 %v39
  %v1740 = vpop.f32.mrb[0].mxu0
  %v1741 = vadd.f32 %v1664, %v1740
  %v1742 = vpop.f32.mrb[0].mxu0
  %v1743 = vadd.f32 %v1666, %v1742
  %1744 = vmatprep.mubr.f32.mxu0 %v54
  %1745 = vmatmul.mubr.f32.gmra.mrb[0].mxu0 %v53
  %v1746 = vpop.f32.mrb[0].mxu0
  %v1747 = vadd.f32 %v1670, %v1746
  %v1748 = vpop.f32.mrb[0].mxu0
  %v1749 = vadd.f32 %v1672, %v1748
  %1750 = vdwg.mxu0
  %1751 = vmatprep.subr.mxu0 %v450
  %1752 = vmatpush1.msra.mxu0 %v449
  %1753 = vmatprep.subr.mxu0 %v454
  %1754 = vmatpush1.msra.mxu0 %v453
  %1755 = vmatprep.subr.mxu0 %v458
  %1756 = vmatpush1.msra.mxu0 %v457
  %1757 = vmatprep.subr.mxu0 %v462
  %1758 = vmatpush1.msra.mxu0 %v461
  %1759 = vmatprep.subr.mxu0 %v466
  %1760 = vmatpush1.msra.mxu0 %v465
  %1761 = vmatprep.subr.mxu0 %v470
  %1762 = vmatpush1.msra.mxu0 %v469
  %1763 = vmatprep.subr.mxu0 %v474
  %1764 = vmatpush1.msra.mxu0 %v473
  %1765 = vmatprep.subr.mxu0 %v478
  %1766 = vmatpush1.msra.mxu0 %v477
  %1767 = vmatprep.subr.mxu0 %v482
  %1768 = vmatpush1.msra.mxu0 %v481
  %1769 = vmatprep.subr.mxu0 %v486
  %1770 = vmatpush1.msra.mxu0 %v485
  %1771 = vmatprep.subr.mxu0 %v490
  %1772 = vmatpush1.msra.mxu0 %v489
  %1773 = vmatprep.subr.mxu0 %v494
  %1774 = vmatpush1.msra.mxu0 %v493
  %1775 = vmatprep.subr.mxu0 %v498
  %1776 = vmatpush1.msra.mxu0 %v497
  %1777 = vmatprep.subr.mxu0 %v502
  %1778 = vmatpush1.msra.mxu0 %v501
  %1779 = vmatprep.subr.mxu0 %v506
  %1780 = vmatpush1.msra.mxu0 %v505
  %1781 = vmatprep.subr.mxu0 %v510
  %1782 = vmatpush1.msra.mxu0 %v509
  %1783 = vmatprep.subr.mxu0 %v514
  %1784 = vmatpush1.msra.mxu0 %v513
  %1785 = vmatprep.subr.mxu0 %v518
  %1786 = vmatpush1.msra.mxu0 %v517
  %1787 = vmatprep.subr.mxu0 %v522
  %1788 = vmatpush1.msra.mxu0 %v521
  %1789 = vmatprep.subr.mxu0 %v526
  %1790 = vmatpush1.msra.mxu0 %v525
  %1791 = vmatprep.subr.mxu0 %v530
  %1792 = vmatpush1.msra.mxu0 %v529
  %1793 = vmatprep.subr.mxu0 %v534
  %1794 = vmatpush1.msra.mxu0 %v533
  %1795 = vmatprep.subr.mxu0 %v538
  %1796 = vmatpush1.msra.mxu0 %v537
  %1797 = vmatprep.subr.mxu0 %v542
  %1798 = vmatpush1.msra.mxu0 %v541
  %1799 = vmatprep.subr.mxu0 %v546
  %1800 = vmatpush1.msra.mxu0 %v545
  %1801 = vmatprep.subr.mxu0 %v550
  %1802 = vmatpush1.msra.mxu0 %v549
  %1803 = vmatprep.subr.mxu0 %v554
  %1804 = vmatpush1.msra.mxu0 %v553
  %1805 = vmatprep.subr.mxu0 %v558
  %1806 = vmatpush1.msra.mxu0 %v557
  %1807 = vmatprep.subr.mxu0 %v562
  %1808 = vmatpush1.msra.mxu0 %v561
  %1809 = vmatprep.subr.mxu0 %v566
  %1810 = vmatpush1.msra.mxu0 %v565
  %1811 = vmatprep.subr.mxu0 %v570
  %1812 = vmatpush1.msra.mxu0 %v569
  %1813 = vmatprep.subr.mxu0 %v574
  %1814 = vmatpush1.msra.mxu0 %v573
  %1815 = vmatprep.mubr.f32.mxu0 %v42
  %1816 = vmatmul.mubr.f32.gmra.mrb[0].mxu0 %v41
  %v1817 = vpop.f32.mrb[0].mxu0
  %v1818 = vadd.f32 %v1741, %v1817
  %v1819 = vpop.f32.mrb[0].mxu0
  %v1820 = vadd.f32 %v1743, %v1819
  %1821 = vmatprep.mubr.f32.mxu0 %v56
  %1822 = vmatmul.mubr.f32.gmra.mrb[0].mxu0 %v55
  %v1823 = vpop.f32.mrb[0].mxu0
  %v1824 = vadd.f32 %v1747, %v1823
  %v1825 = vpop.f32.mrb[0].mxu0
  %v1826 = vadd.f32 %v1749, %v1825
  %1827 = vdwg.mxu0
  %1828 = vmatprep.subr.mxu0 %v578
  %1829 = vmatpush1.msra.mxu0 %v577
  %1830 = vmatprep.subr.mxu0 %v582
  %1831 = vmatpush1.msra.mxu0 %v581
  %1832 = vmatprep.subr.mxu0 %v586
  %1833 = vmatpush1.msra.mxu0 %v585
  %1834 = vmatprep.subr.mxu0 %v590
  %1835 = vmatpush1.msra.mxu0 %v589
  %1836 = vmatprep.subr.mxu0 %v594
  %1837 = vmatpush1.msra.mxu0 %v593
  %1838 = vmatprep.subr.mxu0 %v598
  %1839 = vmatpush1.msra.mxu0 %v597
  %1840 = vmatprep.subr.mxu0 %v602
  %1841 = vmatpush1.msra.mxu0 %v601
  %1842 = vmatprep.subr.mxu0 %v606
  %1843 = vmatpush1.msra.mxu0 %v605
  %1844 = vmatprep.subr.mxu0 %v610
  %1845 = vmatpush1.msra.mxu0 %v609
  %1846 = vmatprep.subr.mxu0 %v614
  %1847 = vmatpush1.msra.mxu0 %v613
  %1848 = vmatprep.subr.mxu0 %v618
  %1849 = vmatpush1.msra.mxu0 %v617
  %1850 = vmatprep.subr.mxu0 %v622
  %1851 = vmatpush1.msra.mxu0 %v621
  %1852 = vmatprep.subr.mxu0 %v626
  %1853 = vmatpush1.msra.mxu0 %v625
  %1854 = vmatprep.subr.mxu0 %v630
  %1855 = vmatpush1.msra.mxu0 %v629
  %1856 = vmatprep.subr.mxu0 %v634
  %1857 = vmatpush1.msra.mxu0 %v633
  %1858 = vmatprep.subr.mxu0 %v638
  %1859 = vmatpush1.msra.mxu0 %v637
  %1860 = vmatprep.subr.mxu0 %v642
  %1861 = vmatpush1.msra.mxu0 %v641
  %1862 = vmatprep.subr.mxu0 %v646
  %1863 = vmatpush1.msra.mxu0 %v645
  %1864 = vmatprep.subr.mxu0 %v650
  %1865 = vmatpush1.msra.mxu0 %v649
  %1866 = vmatprep.subr.mxu0 %v654
  %1867 = vmatpush1.msra.mxu0 %v653
  %1868 = vmatprep.subr.mxu0 %v658
  %1869 = vmatpush1.msra.mxu0 %v657
  %1870 = vmatprep.subr.mxu0 %v662
  %1871 = vmatpush1.msra.mxu0 %v661
  %1872 = vmatprep.subr.mxu0 %v666
  %1873 = vmatpush1.msra.mxu0 %v665
  %1874 = vmatprep.subr.mxu0 %v670
  %1875 = vmatpush1.msra.mxu0 %v669
  %1876 = vmatprep.subr.mxu0 %v674
  %1877 = vmatpush1.msra.mxu0 %v673
  %1878 = vmatprep.subr.mxu0 %v678
  %1879 = vmatpush1.msra.mxu0 %v677
  %1880 = vmatprep.subr.mxu0 %v682
  %1881 = vmatpush1.msra.mxu0 %v681
  %1882 = vmatprep.subr.mxu0 %v686
  %1883 = vmatpush1.msra.mxu0 %v685
  %1884 = vmatprep.subr.mxu0 %v690
  %1885 = vmatpush1.msra.mxu0 %v689
  %1886 = vmatprep.subr.mxu0 %v694
  %1887 = vmatpush1.msra.mxu0 %v693
  %1888 = vmatprep.subr.mxu0 %v698
  %1889 = vmatpush1.msra.mxu0 %v697
  %1890 = vmatprep.subr.mxu0 %v702
  %1891 = vmatpush1.msra.mxu0 %v701
  %1892 = vmatprep.mubr.f32.mxu0 %v44
  %1893 = vmatmul.mubr.f32.gmra.mrb[0].mxu0 %v43
  %v1894 = vpop.f32.mrb[0].mxu0
  %v1895 = vadd.f32 %v1818, %v1894
  %v1896 = vpop.f32.mrb[0].mxu0
  %v1897 = vadd.f32 %v1820, %v1896
  %1898 = vmatprep.mubr.f32.mxu0 %v58
  %1899 = vmatmul.mubr.f32.gmra.mrb[0].mxu0 %v57
  %v1900 = vpop.f32.mrb[0].mxu0
  %v1901 = vadd.f32 %v1824, %v1900
  %v1902 = vpop.f32.mrb[0].mxu0
  %v1903 = vadd.f32 %v1826, %v1902
  %1904 = vdwg.mxu0
  %1905 = vmatprep.subr.mxu0 %v706
  %1906 = vmatpush1.msra.mxu0 %v705
  %1907 = vmatprep.subr.mxu0 %v710
  %1908 = vmatpush1.msra.mxu0 %v709
  %1909 = vmatprep.subr.mxu0 %v714
  %1910 = vmatpush1.msra.mxu0 %v713
  %1911 = vmatprep.subr.mxu0 %v718
  %1912 = vmatpush1.msra.mxu0 %v717
  %1913 = vmatprep.subr.mxu0 %v722
  %1914 = vmatpush1.msra.mxu0 %v721
  %1915 = vmatprep.subr.mxu0 %v726
  %1916 = vmatpush1.msra.mxu0 %v725
  %1917 = vmatprep.subr.mxu0 %v730
  %1918 = vmatpush1.msra.mxu0 %v729
  %1919 = vmatprep.subr.mxu0 %v734
  %1920 = vmatpush1.msra.mxu0 %v733
  %1921 = vmatprep.subr.mxu0 %v738
  %1922 = vmatpush1.msra.mxu0 %v737
  %1923 = vmatprep.subr.mxu0 %v742
  %1924 = vmatpush1.msra.mxu0 %v741
  %1925 = vmatprep.subr.mxu0 %v746
  %1926 = vmatpush1.msra.mxu0 %v745
  %1927 = vmatprep.subr.mxu0 %v750
  %1928 = vmatpush1.msra.mxu0 %v749
  %1929 = vmatprep.subr.mxu0 %v754
  %1930 = vmatpush1.msra.mxu0 %v753
  %1931 = vmatprep.subr.mxu0 %v758
  %1932 = vmatpush1.msra.mxu0 %v757
  %1933 = vmatprep.subr.mxu0 %v762
  %1934 = vmatpush1.msra.mxu0 %v761
  %1935 = vmatprep.subr.mxu0 %v766
  %1936 = vmatpush1.msra.mxu0 %v765
  %1937 = vmatprep.subr.mxu0 %v770
  %1938 = vmatpush1.msra.mxu0 %v769
  %1939 = vmatprep.subr.mxu0 %v774
  %1940 = vmatpush1.msra.mxu0 %v773
  %1941 = vmatprep.subr.mxu0 %v778
  %1942 = vmatpush1.msra.mxu0 %v777
  %1943 = vmatprep.subr.mxu0 %v782
  %1944 = vmatpush1.msra.mxu0 %v781
  %1945 = vmatprep.subr.mxu0 %v786
  %1946 = vmatpush1.msra.mxu0 %v785
  %1947 = vmatprep.subr.mxu0 %v790
  %1948 = vmatpush1.msra.mxu0 %v789
  %1949 = vmatprep.subr.mxu0 %v794
  %1950 = vmatpush1.msra.mxu0 %v793
  %1951 = vmatprep.subr.mxu0 %v798
  %1952 = vmatpush1.msra.mxu0 %v797
  %1953 = vmatprep.subr.mxu0 %v802
  %1954 = vmatpush1.msra.mxu0 %v801
  %1955 = vmatprep.subr.mxu0 %v806
  %1956 = vmatpush1.msra.mxu0 %v805
  %1957 = vmatprep.subr.mxu0 %v810
  %1958 = vmatpush1.msra.mxu0 %v809
  %1959 = vmatprep.subr.mxu0 %v814
  %1960 = vmatpush1.msra.mxu0 %v813
  %1961 = vmatprep.subr.mxu0 %v818
  %1962 = vmatpush1.msra.mxu0 %v817
  %1963 = vmatprep.subr.mxu0 %v822
  %1964 = vmatpush1.msra.mxu0 %v821
  %1965 = vmatprep.subr.mxu0 %v826
  %1966 = vmatpush1.msra.mxu0 %v825
  %1967 = vmatprep.subr.mxu0 %v830
  %1968 = vmatpush1.msra.mxu0 %v829
  %1969 = vmatprep.mubr.f32.mxu0 %v46
  %1970 = vmatmul.mubr.f32.gmra.mrb[0].mxu0 %v45
  %v1971 = vpop.f32.mrb[0].mxu0
  %v1972 = vadd.f32 %v1895, %v1971
  %v1973 = vpop.f32.mrb[0].mxu0
  %v1974 = vadd.f32 %v1897, %v1973
  %1975 = vmatprep.mubr.f32.mxu0 %v60
  %1976 = vmatmul.mubr.f32.gmra.mrb[0].mxu0 %v59
  %v1977 = vpop.f32.mrb[0].mxu0
  %v1978 = vadd.f32 %v1901, %v1977
  %v1979 = vpop.f32.mrb[0].mxu0
  %v1980 = vadd.f32 %v1903, %v1979
  %1981 = vdwg.mxu0
  %1982 = vmatprep.subr.mxu0 %v834
  %1983 = vmatpush1.msra.mxu0 %v833
  %1984 = vmatprep.subr.mxu0 %v838
  %1985 = vmatpush1.msra.mxu0 %v837
  %1986 = vmatprep.subr.mxu0 %v842
  %1987 = vmatpush1.msra.mxu0 %v841
  %1988 = vmatprep.subr.mxu0 %v846
  %1989 = vmatpush1.msra.mxu0 %v845
  %1990 = vmatprep.subr.mxu0 %v850
  %1991 = vmatpush1.msra.mxu0 %v849
  %1992 = vmatprep.subr.mxu0 %v854
  %1993 = vmatpush1.msra.mxu0 %v853
  %1994 = vmatprep.subr.mxu0 %v858
  %1995 = vmatpush1.msra.mxu0 %v857
  %1996 = vmatprep.subr.mxu0 %v862
  %1997 = vmatpush1.msra.mxu0 %v861
  %1998 = vmatprep.subr.mxu0 %v866
  %1999 = vmatpush1.msra.mxu0 %v865
  %2000 = vmatprep.subr.mxu0 %v870
  %2001 = vmatpush1.msra.mxu0 %v869
  %2002 = vmatprep.subr.mxu0 %v874
  %2003 = vmatpush1.msra.mxu0 %v873
  %2004 = vmatprep.subr.mxu0 %v878
  %2005 = vmatpush1.msra.mxu0 %v877
  %2006 = vmatprep.subr.mxu0 %v882
  %2007 = vmatpush1.msra.mxu0 %v881
  %2008 = vmatprep.subr.mxu0 %v886
  %2009 = vmatpush1.msra.mxu0 %v885
  %2010 = vmatprep.subr.mxu0 %v890
  %2011 = vmatpush1.msra.mxu0 %v889
  %2012 = vmatprep.subr.mxu0 %v894
  %2013 = vmatpush1.msra.mxu0 %v893
  %2014 = vmatprep.subr.mxu0 %v898
  %2015 = vmatpush1.msra.mxu0 %v897
  %2016 = vmatprep.subr.mxu0 %v902
  %2017 = vmatpush1.msra.mxu0 %v901
  %2018 = vmatprep.subr.mxu0 %v906
  %2019 = vmatpush1.msra.mxu0 %v905
  %2020 = vmatprep.subr.mxu0 %v910
  %2021 = vmatpush1.msra.mxu0 %v909
  %2022 = vmatprep.subr.mxu0 %v914
  %2023 = vmatpush1.msra.mxu0 %v913
  %2024 = vmatprep.subr.mxu0 %v918
  %2025 = vmatpush1.msra.mxu0 %v917
  %2026 = vmatprep.subr.mxu0 %v922
  %2027 = vmatpush1.msra.mxu0 %v921
  %2028 = vmatprep.subr.mxu0 %v926
  %2029 = vmatpush1.msra.mxu0 %v925
  %2030 = vmatprep.subr.mxu0 %v930
  %2031 = vmatpush1.msra.mxu0 %v929
  %2032 = vmatprep.subr.mxu0 %v934
  %2033 = vmatpush1.msra.mxu0 %v933
  %2034 = vmatprep.subr.mxu0 %v938
  %2035 = vmatpush1.msra.mxu0 %v937
  %2036 = vmatprep.subr.mxu0 %v942
  %2037 = vmatpush1.msra.mxu0 %v941
  %2038 = vmatprep.subr.mxu0 %v946
  %2039 = vmatpush1.msra.mxu0 %v945
  %2040 = vmatprep.subr.mxu0 %v950
  %2041 = vmatpush1.msra.mxu0 %v949
  %2042 = vmatprep.subr.mxu0 %v954
  %2043 = vmatpush1.msra.mxu0 %v953
  %2044 = vmatprep.subr.mxu0 %v958
  %2045 = vmatpush1.msra.mxu0 %v957
  %2046 = vmatprep.mubr.f32.mxu0 %v48
  %2047 = vmatmul.mubr.f32.gmra.mrb[0].mxu0 %v47
  %v2048 = vpop.f32.mrb[0].mxu0
  %v2049 = vadd.f32 %v1972, %v2048
  %v2050 = vpop.f32.mrb[0].mxu0
  %v2051 = vadd.f32 %v1974, %v2050
  %2052 = vmatprep.mubr.f32.mxu0 %v62
  %2053 = vmatmul.mubr.f32.gmra.mrb[0].mxu0 %v61
  %v2054 = vpop.f32.mrb[0].mxu0
  %v2055 = vadd.f32 %v1978, %v2054
  %v2056 = vpop.f32.mrb[0].mxu0
  %v2057 = vadd.f32 %v1980, %v2056
  %2058 = vdwg.mxu0
  %2059 = vst [vmem:[#allocation2] sm:$0xff] %v1510
  %2060 = vst [vmem:[#allocation2 + $0x8] sm:$0xff] %v1512
  %2061 = vst [vmem:[#allocation2 + $0x10] sm:$0xff] %v2049
  %2062 = vst [vmem:[#allocation2 + $0x18] sm:$0xff] %v2051
  %2063 = vst [vmem:[#allocation2 + $0x20] sm:$0xff] %v1516
  %2064 = vst [vmem:[#allocation2 + $0x28] sm:$0xff] %v1518
  %2065 = vst [vmem:[#allocation2 + $0x30] sm:$0xff] %v2055
  %2066 = vst [vmem:[#allocation2 + $0x38] sm:$0xff] %v2057
  %2067 = vst [vmem:[#allocation5] sm:$0x3] 0.0
  %2068 = vst [vmem:[#allocation6] sm:$0x3] 0.0
  %v2069 = vld [vmem:[#allocation2] sm:$0x3]
  %v2070 = vld [vmem:[#allocation2 + $0x8] sm:$0x3]
  %v2071 = vld [vmem:[#allocation2 + $0x10] sm:$0x3]
  %v2072 = vld [vmem:[#allocation2 + $0x18] sm:$0x3]
  %v2073 = vld [vmem:[#allocation5] sm:$0x3]
  %v2074 = vld [vmem:[%s3] sm:$0xff]
  %v2075 = vld [vmem:[%s3 + $0x8] sm:$0xff]
  %v2076 = vld [vmem:[%s3 + $0x10] sm:$0xff]
  %v2077 = vld [vmem:[%s3 + $0x18] sm:$0xff]
  %v2078 = vld [vmem:[%s3 + $0x20] sm:$0xff]
  %v2079 = vld [vmem:[%s3 + $0x28] sm:$0xff]
  %v2080 = vld [vmem:[%s3 + $0x30] sm:$0xff]
  %v2081 = vld [vmem:[%s3 + $0x38] sm:$0xff]
  %v2082 = vld [vmem:[%s3 + $0x40] sm:$0xff]
  %v2083 = vld [vmem:[%s3 + $0x48] sm:$0xff]
  %v2084 = vld [vmem:[%s3 + $0x50] sm:$0xff]
  %v2085 = vld [vmem:[%s3 + $0x58] sm:$0xff]
  %v2086 = vld [vmem:[%s3 + $0x60] sm:$0xff]
  %v2087 = vld [vmem:[%s3 + $0x68] sm:$0xff]
  %v2088 = vld [vmem:[%s3 + $0x70] sm:$0xff]
  %v2089 = vld [vmem:[%s3 + $0x78] sm:$0xff]
  %v2090 = vld [vmem:[%s3 + $0x80] sm:$0xff]
  %v2091 = vld [vmem:[%s3 + $0x88] sm:$0xff]
  %v2092 = vld [vmem:[%s3 + $0x90] sm:$0xff]
  %v2093 = vld [vmem:[%s3 + $0x98] sm:$0xff]
  %v2094 = vld [vmem:[%s3 + $0xa0] sm:$0xff]
  %v2095 = vld [vmem:[%s3 + $0xa8] sm:$0xff]
  %v2096 = vld [vmem:[%s3 + $0xb0] sm:$0xff]
  %v2097 = vld [vmem:[%s3 + $0xb8] sm:$0xff]
  %v2098 = vld [vmem:[%s3 + $0xc0] sm:$0xff]
  %v2099 = vld [vmem:[%s3 + $0xc8] sm:$0xff]
  %v2100 = vld [vmem:[%s3 + $0xd0] sm:$0xff]
  %v2101 = vld [vmem:[%s3 + $0xd8] sm:$0xff]
  %v2102 = vld [vmem:[%s3 + $0xe0] sm:$0xff]
  %v2103 = vld [vmem:[%s3 + $0xe8] sm:$0xff]
  %v2104 = vld [vmem:[%s3 + $0xf0] sm:$0xff]
  %v2105 = vld [vmem:[%s3 + $0xf8] sm:$0xff]
  %v2106 = vld [vmem:[%s3 + $0x100] sm:$0xff]
  %v2107 = vld [vmem:[%s3 + $0x108] sm:$0xff]
  %v2108 = vld [vmem:[%s3 + $0x110] sm:$0xff]
  %v2109 = vld [vmem:[%s3 + $0x118] sm:$0xff]
  %v2110 = vld [vmem:[%s3 + $0x120] sm:$0xff]
  %v2111 = vld [vmem:[%s3 + $0x128] sm:$0xff]
  %v2112 = vld [vmem:[%s3 + $0x130] sm:$0xff]
  %v2113 = vld [vmem:[%s3 + $0x138] sm:$0xff]
  %v2114 = vld [vmem:[%s3 + $0x140] sm:$0xff]
  %v2115 = vld [vmem:[%s3 + $0x148] sm:$0xff]
  %v2116 = vld [vmem:[%s3 + $0x150] sm:$0xff]
  %v2117 = vld [vmem:[%s3 + $0x158] sm:$0xff]
  %v2118 = vld [vmem:[%s3 + $0x160] sm:$0xff]
  %v2119 = vld [vmem:[%s3 + $0x168] sm:$0xff]
  %v2120 = vld [vmem:[%s3 + $0x170] sm:$0xff]
  %v2121 = vld [vmem:[%s3 + $0x178] sm:$0xff]
  %v2122 = vld [vmem:[%s3 + $0x180] sm:$0xff]
  %v2123 = vld [vmem:[%s3 + $0x188] sm:$0xff]
  %v2124 = vld [vmem:[%s3 + $0x190] sm:$0xff]
  %v2125 = vld [vmem:[%s3 + $0x198] sm:$0xff]
  %v2126 = vld [vmem:[%s3 + $0x1a0] sm:$0xff]
  %v2127 = vld [vmem:[%s3 + $0x1a8] sm:$0xff]
  %v2128 = vld [vmem:[%s3 + $0x1b0] sm:$0xff]
  %v2129 = vld [vmem:[%s3 + $0x1b8] sm:$0xff]
  %v2130 = vld [vmem:[%s3 + $0x1c0] sm:$0xff]
  %v2131 = vld [vmem:[%s3 + $0x1c8] sm:$0xff]
  %v2132 = vld [vmem:[%s3 + $0x1d0] sm:$0xff]
  %v2133 = vld [vmem:[%s3 + $0x1d8] sm:$0xff]
  %v2134 = vld [vmem:[%s3 + $0x1e0] sm:$0xff]
  %v2135 = vld [vmem:[%s3 + $0x1e8] sm:$0xff]
  %v2136 = vld [vmem:[%s3 + $0x1f0] sm:$0xff]
  %v2137 = vld [vmem:[%s3 + $0x1f8] sm:$0xff]
  %2138 = vmatprep.subr.mxu0 %v2075
  %2139 = vmatpush1.msra.mxu0 %v2074
  %2140 = vmatprep.subr.mxu0 %v2079
  %2141 = vmatpush1.msra.mxu0 %v2078
  %2142 = vmatprep.subr.mxu0 %v2083
  %2143 = vmatpush1.msra.mxu0 %v2082
  %2144 = vmatprep.subr.mxu0 %v2087
  %2145 = vmatpush1.msra.mxu0 %v2086
  %2146 = vmatprep.subr.mxu0 %v2091
  %2147 = vmatpush1.msra.mxu0 %v2090
  %2148 = vmatprep.subr.mxu0 %v2095
  %2149 = vmatpush1.msra.mxu0 %v2094
  %2150 = vmatprep.subr.mxu0 %v2099
  %2151 = vmatpush1.msra.mxu0 %v2098
  %2152 = vmatprep.subr.mxu0 %v2103
  %2153 = vmatpush1.msra.mxu0 %v2102
  %2154 = vmatprep.subr.mxu0 %v2107
  %2155 = vmatpush1.msra.mxu0 %v2106
  %2156 = vmatprep.subr.mxu0 %v2111
  %2157 = vmatpush1.msra.mxu0 %v2110
  %2158 = vmatprep.subr.mxu0 %v2115
  %2159 = vmatpush1.msra.mxu0 %v2114
  %2160 = vmatprep.subr.mxu0 %v2119
  %2161 = vmatpush1.msra.mxu0 %v2118
  %2162 = vmatprep.subr.mxu0 %v2123
  %2163 = vmatpush1.msra.mxu0 %v2122
  %2164 = vmatprep.subr.mxu0 %v2127
  %2165 = vmatpush1.msra.mxu0 %v2126
  %2166 = vmatprep.subr.mxu0 %v2131
  %2167 = vmatpush1.msra.mxu0 %v2130
  %2168 = vmatprep.subr.mxu0 %v2135
  %2169 = vmatpush1.msra.mxu0 %v2134
  %2170 = vmatprep.subr.mxu0 0.0
  %2171 = vmatpush1.msra.mxu0 0.0
  %2172 = vmatprep.subr.mxu0 0.0
  %2173 = vmatpush1.msra.mxu0 0.0
  %2174 = vmatprep.subr.mxu0 0.0
  %2175 = vmatpush1.msra.mxu0 0.0
  %2176 = vmatprep.subr.mxu0 0.0
  %2177 = vmatpush1.msra.mxu0 0.0
  %2178 = vmatprep.subr.mxu0 0.0
  %2179 = vmatpush1.msra.mxu0 0.0
  %2180 = vmatprep.subr.mxu0 0.0
  %2181 = vmatpush1.msra.mxu0 0.0
  %2182 = vmatprep.subr.mxu0 0.0
  %2183 = vmatpush1.msra.mxu0 0.0
  %2184 = vmatprep.subr.mxu0 0.0
  %2185 = vmatpush1.msra.mxu0 0.0
  %2186 = vmatprep.subr.mxu0 0.0
  %2187 = vmatpush1.msra.mxu0 0.0
  %2188 = vmatprep.subr.mxu0 0.0
  %2189 = vmatpush1.msra.mxu0 0.0
  %2190 = vmatprep.subr.mxu0 0.0
  %2191 = vmatpush1.msra.mxu0 0.0
  %2192 = vmatprep.subr.mxu0 0.0
  %2193 = vmatpush1.msra.mxu0 0.0
  %2194 = vmatprep.subr.mxu0 0.0
  %2195 = vmatpush1.msra.mxu0 0.0
  %2196 = vmatprep.subr.mxu0 0.0
  %2197 = vmatpush1.msra.mxu0 0.0
  %2198 = vmatprep.subr.mxu0 0.0
  %2199 = vmatpush1.msra.mxu0 0.0
  %2200 = vmatprep.subr.mxu0 0.0
  %2201 = vmatpush1.msra.mxu0 0.0
  %2202 = vmatprep.mubr.f32.mxu0 0.0
  %2203 = vmatmul.mubr.f32.gmra.mrb[0].mxu0 %v2073
  %v2204 = vpop.f32.mrb[0].mxu0
  %v2205 = vadd.f32 0.0, %v2204
  %v2206 = vpop.f32.mrb[0].mxu0
  %v2207 = vadd.f32 0.0, %v2206
  %2208 = vdwg.mxu0
  %2209 = vmatprep.subr.mxu0 %v2077
  %2210 = vmatpush1.msra.mxu0 %v2076
  %2211 = vmatprep.subr.mxu0 %v2081
  %2212 = vmatpush1.msra.mxu0 %v2080
  %2213 = vmatprep.subr.mxu0 %v2085
  %2214 = vmatpush1.msra.mxu0 %v2084
  %2215 = vmatprep.subr.mxu0 %v2089
  %2216 = vmatpush1.msra.mxu0 %v2088
  %2217 = vmatprep.subr.mxu0 %v2093
  %2218 = vmatpush1.msra.mxu0 %v2092
  %2219 = vmatprep.subr.mxu0 %v2097
  %2220 = vmatpush1.msra.mxu0 %v2096
  %2221 = vmatprep.subr.mxu0 %v2101
  %2222 = vmatpush1.msra.mxu0 %v2100
  %2223 = vmatprep.subr.mxu0 %v2105
  %2224 = vmatpush1.msra.mxu0 %v2104
  %2225 = vmatprep.subr.mxu0 %v2109
  %2226 = vmatpush1.msra.mxu0 %v2108
  %2227 = vmatprep.subr.mxu0 %v2113
  %2228 = vmatpush1.msra.mxu0 %v2112
  %2229 = vmatprep.subr.mxu0 %v2117
  %2230 = vmatpush1.msra.mxu0 %v2116
  %2231 = vmatprep.subr.mxu0 %v2121
  %2232 = vmatpush1.msra.mxu0 %v2120
  %2233 = vmatprep.subr.mxu0 %v2125
  %2234 = vmatpush1.msra.mxu0 %v2124
  %2235 = vmatprep.subr.mxu0 %v2129
  %2236 = vmatpush1.msra.mxu0 %v2128
  %2237 = vmatprep.subr.mxu0 %v2133
  %2238 = vmatpush1.msra.mxu0 %v2132
  %2239 = vmatprep.subr.mxu0 %v2137
  %2240 = vmatpush1.msra.mxu0 %v2136
  %2241 = vmatprep.subr.mxu0 0.0
  %2242 = vmatpush1.msra.mxu0 0.0
  %2243 = vmatprep.subr.mxu0 0.0
  %2244 = vmatpush1.msra.mxu0 0.0
  %2245 = vmatprep.subr.mxu0 0.0
  %2246 = vmatpush1.msra.mxu0 0.0
  %2247 = vmatprep.subr.mxu0 0.0
  %2248 = vmatpush1.msra.mxu0 0.0
  %2249 = vmatprep.subr.mxu0 0.0
  %2250 = vmatpush1.msra.mxu0 0.0
  %2251 = vmatprep.subr.mxu0 0.0
  %2252 = vmatpush1.msra.mxu0 0.0
  %2253 = vmatprep.subr.mxu0 0.0
  %2254 = vmatpush1.msra.mxu0 0.0
  %2255 = vmatprep.subr.mxu0 0.0
  %2256 = vmatpush1.msra.mxu0 0.0
  %2257 = vmatprep.subr.mxu0 0.0
  %2258 = vmatpush1.msra.mxu0 0.0
  %2259 = vmatprep.subr.mxu0 0.0
  %2260 = vmatpush1.msra.mxu0 0.0
  %2261 = vmatprep.subr.mxu0 0.0
  %2262 = vmatpush1.msra.mxu0 0.0
  %2263 = vmatprep.subr.mxu0 0.0
  %2264 = vmatpush1.msra.mxu0 0.0
  %2265 = vmatprep.subr.mxu0 0.0
  %2266 = vmatpush1.msra.mxu0 0.0
  %2267 = vmatprep.subr.mxu0 0.0
  %2268 = vmatpush1.msra.mxu0 0.0
  %2269 = vmatprep.subr.mxu0 0.0
  %2270 = vmatpush1.msra.mxu0 0.0
  %2271 = vmatprep.subr.mxu0 0.0
  %2272 = vmatpush1.msra.mxu0 0.0
  %2273 = vmatprep.mubr.f32.mxu0 0.0
  %2274 = vmatmul.mubr.f32.gmra.mrb[0].mxu0 %v2073
  %v2275 = vpop.f32.mrb[0].mxu0
  %v2276 = vadd.f32 0.0, %v2275
  %v2277 = vpop.f32.mrb[0].mxu0
  %v2278 = vadd.f32 0.0, %v2277
  %2279 = vdwg.mxu0
  %v2280 = vadd.f32 %v2069, %v2205
  %v2281 = vadd.f32 %v2070, %v2207
  %v2282 = vadd.f32 %v2071, %v2276
  %v2283 = vadd.f32 %v2072, %v2278
  %v2284 = vxor.u32 %v2280, 2147483648
  %v2285 = vmul.f32 %v2284, 1.442695
  %v2286 = vpow.pop %v2285
  %v2287 = vadd.f32 %v2286, 1.0
  %v2288 = vrcp.pop %v2287
  %v2289 = vmul.f32 1.0, %v2288
  %v2290 = vxor.u32 %v2281, 2147483648
  %v2291 = vmul.f32 %v2290, 1.442695
  %v2292 = vpow.pop %v2291
  %v2293 = vadd.f32 %v2292, 1.0
  %v2294 = vrcp.pop %v2293
  %v2295 = vmul.f32 1.0, %v2294
  %v2296 = vtanh.pop %v2282
  %v2297 = vxor.u32 %v2283, 2147483648
  %v2298 = vmul.f32 %v2297, 1.442695
  %v2299 = vpow.pop %v2298
  %v2300 = vadd.f32 %v2299, 1.0
  %v2301 = vrcp.pop %v2300
  %v2302 = vmul.f32 1.0, %v2301
  %v2303 = vld [vmem:[#allocation6] sm:$0x3]
  %v2304 = vmul.f32 %v2295, %v2303
  %v2305 = vmul.f32 %v2289, %v2296
  %v2306 = vadd.f32 %v2304, %v2305
  %v2307 = vtanh.pop %v2306
  %v2308 = vmul.f32 %v2302, %v2307
  %2309 = vst [vmem:[#allocation6] sm:$0x3] %v2306
  %2310 = vst [vmem:[#allocation5] sm:$0x3] %v2308
  %2311 = vst [vmem:[#allocation3] sm:$0x3] %v2308
  %2312 = vst [vmem:[#allocation4 + $0xe] sm:$0x3] %v2308
  %v2313 = vld [vmem:[#allocation2] sm:$0xc]
  %v2314 = vld [vmem:[#allocation2 + $0x8] sm:$0xc]
  %v2315 = vld [vmem:[#allocation2 + $0x10] sm:$0xc]
  %v2316 = vld [vmem:[#allocation2 + $0x18] sm:$0xc]
  %v2317 = vld [vmem:[#allocation5] sm:$0x3]
  %v2318 = vld [vmem:[%s3] sm:$0xff]
  %v2319 = vld [vmem:[%s3 + $0x8] sm:$0xff]
  %v2320 = vld [vmem:[%s3 + $0x10] sm:$0xff]
  %v2321 = vld [vmem:[%s3 + $0x18] sm:$0xff]
  %v2322 = vld [vmem:[%s3 + $0x20] sm:$0xff]
  %v2323 = vld [vmem:[%s3 + $0x28] sm:$0xff]
  %v2324 = vld [vmem:[%s3 + $0x30] sm:$0xff]
  %v2325 = vld [vmem:[%s3 + $0x38] sm:$0xff]
  %v2326 = vld [vmem:[%s3 + $0x40] sm:$0xff]
  %v2327 = vld [vmem:[%s3 + $0x48] sm:$0xff]
  %v2328 = vld [vmem:[%s3 + $0x50] sm:$0xff]
  %v2329 = vld [vmem:[%s3 + $0x58] sm:$0xff]
  %v2330 = vld [vmem:[%s3 + $0x60] sm:$0xff]
  %v2331 = vld [vmem:[%s3 + $0x68] sm:$0xff]
  %v2332 = vld [vmem:[%s3 + $0x70] sm:$0xff]
  %v2333 = vld [vmem:[%s3 + $0x78] sm:$0xff]
  %v2334 = vld [vmem:[%s3 + $0x80] sm:$0xff]
  %v2335 = vld [vmem:[%s3 + $0x88] sm:$0xff]
  %v2336 = vld [vmem:[%s3 + $0x90] sm:$0xff]
  %v2337 = vld [vmem:[%s3 + $0x98] sm:$0xff]
  %v2338 = vld [vmem:[%s3 + $0xa0] sm:$0xff]
  %v2339 = vld [vmem:[%s3 + $0xa8] sm:$0xff]
  %v2340 = vld [vmem:[%s3 + $0xb0] sm:$0xff]
  %v2341 = vld [vmem:[%s3 + $0xb8] sm:$0xff]
  %v2342 = vld [vmem:[%s3 + $0xc0] sm:$0xff]
  %v2343 = vld [vmem:[%s3 + $0xc8] sm:$0xff]
  %v2344 = vld [vmem:[%s3 + $0xd0] sm:$0xff]
  %v2345 = vld [vmem:[%s3 + $0xd8] sm:$0xff]
  %v2346 = vld [vmem:[%s3 + $0xe0] sm:$0xff]
  %v2347 = vld [vmem:[%s3 + $0xe8] sm:$0xff]
  %v2348 = vld [vmem:[%s3 + $0xf0] sm:$0xff]
  %v2349 = vld [vmem:[%s3 + $0xf8] sm:$0xff]
  %v2350 = vld [vmem:[%s3 + $0x100] sm:$0xff]
  %v2351 = vld [vmem:[%s3 + $0x108] sm:$0xff]
  %v2352 = vld [vmem:[%s3 + $0x110] sm:$0xff]
  %v2353 = vld [vmem:[%s3 + $0x118] sm:$0xff]
  %v2354 = vld [vmem:[%s3 + $0x120] sm:$0xff]
  %v2355 = vld [vmem:[%s3 + $0x128] sm:$0xff]
  %v2356 = vld [vmem:[%s3 + $0x130] sm:$0xff]
  %v2357 = vld [vmem:[%s3 + $0x138] sm:$0xff]
  %v2358 = vld [vmem:[%s3 + $0x140] sm:$0xff]
  %v2359 = vld [vmem:[%s3 + $0x148] sm:$0xff]
  %v2360 = vld [vmem:[%s3 + $0x150] sm:$0xff]
  %v2361 = vld [vmem:[%s3 + $0x158] sm:$0xff]
  %v2362 = vld [vmem:[%s3 + $0x160] sm:$0xff]
  %v2363 = vld [vmem:[%s3 + $0x168] sm:$0xff]
  %v2364 = vld [vmem:[%s3 + $0x170] sm:$0xff]
  %v2365 = vld [vmem:[%s3 + $0x178] sm:$0xff]
  %v2366 = vld [vmem:[%s3 + $0x180] sm:$0xff]
  %v2367 = vld [vmem:[%s3 + $0x188] sm:$0xff]
  %v2368 = vld [vmem:[%s3 + $0x190] sm:$0xff]
  %v2369 = vld [vmem:[%s3 + $0x198] sm:$0xff]
  %v2370 = vld [vmem:[%s3 + $0x1a0] sm:$0xff]
  %v2371 = vld [vmem:[%s3 + $0x1a8] sm:$0xff]
  %v2372 = vld [vmem:[%s3 + $0x1b0] sm:$0xff]
  %v2373 = vld [vmem:[%s3 + $0x1b8] sm:$0xff]
  %v2374 = vld [vmem:[%s3 + $0x1c0] sm:$0xff]
  %v2375 = vld [vmem:[%s3 + $0x1c8] sm:$0xff]
  %v2376 = vld [vmem:[%s3 + $0x1d0] sm:$0xff]
  %v2377 = vld [vmem:[%s3 + $0x1d8] sm:$0xff]
  %v2378 = vld [vmem:[%s3 + $0x1e0] sm:$0xff]
  %v2379 = vld [vmem:[%s3 + $0x1e8] sm:$0xff]
  %v2380 = vld [vmem:[%s3 + $0x1f0] sm:$0xff]
  %v2381 = vld [vmem:[%s3 + $0x1f8] sm:$0xff]
  %2382 = vmatprep.subr.mxu0 %v2319
  %2383 = vmatpush1.msra.mxu0 %v2318
  %2384 = vmatprep.subr.mxu0 %v2323
  %2385 = vmatpush1.msra.mxu0 %v2322
  %2386 = vmatprep.subr.mxu0 %v2327
  %2387 = vmatpush1.msra.mxu0 %v2326
  %2388 = vmatprep.subr.mxu0 %v2331
  %2389 = vmatpush1.msra.mxu0 %v2330
  %2390 = vmatprep.subr.mxu0 %v2335
  %2391 = vmatpush1.msra.mxu0 %v2334
  %2392 = vmatprep.subr.mxu0 %v2339
  %2393 = vmatpush1.msra.mxu0 %v2338
  %2394 = vmatprep.subr.mxu0 %v2343
  %2395 = vmatpush1.msra.mxu0 %v2342
  %2396 = vmatprep.subr.mxu0 %v2347
  %2397 = vmatpush1.msra.mxu0 %v2346
  %2398 = vmatprep.subr.mxu0 %v2351
  %2399 = vmatpush1.msra.mxu0 %v2350
  %2400 = vmatprep.subr.mxu0 %v2355
  %2401 = vmatpush1.msra.mxu0 %v2354
  %2402 = vmatprep.subr.mxu0 %v2359
  %2403 = vmatpush1.msra.mxu0 %v2358
  %2404 = vmatprep.subr.mxu0 %v2363
  %2405 = vmatpush1.msra.mxu0 %v2362
  %2406 = vmatprep.subr.mxu0 %v2367
  %2407 = vmatpush1.msra.mxu0 %v2366
  %2408 = vmatprep.subr.mxu0 %v2371
  %2409 = vmatpush1.msra.mxu0 %v2370
  %2410 = vmatprep.subr.mxu0 %v2375
  %2411 = vmatpush1.msra.mxu0 %v2374
  %2412 = vmatprep.subr.mxu0 %v2379
  %2413 = vmatpush1.msra.mxu0 %v2378
  %2414 = vmatprep.subr.mxu0 0.0
  %2415 = vmatpush1.msra.mxu0 0.0
  %2416 = vmatprep.subr.mxu0 0.0
  %2417 = vmatpush1.msra.mxu0 0.0
  %2418 = vmatprep.subr.mxu0 0.0
  %2419 = vmatpush1.msra.mxu0 0.0
  %2420 = vmatprep.subr.mxu0 0.0
  %2421 = vmatpush1.msra.mxu0 0.0
  %2422 = vmatprep.subr.mxu0 0.0
  %2423 = vmatpush1.msra.mxu0 0.0
  %2424 = vmatprep.subr.mxu0 0.0
  %2425 = vmatpush1.msra.mxu0 0.0
  %2426 = vmatprep.subr.mxu0 0.0
  %2427 = vmatpush1.msra.mxu0 0.0
  %2428 = vmatprep.subr.mxu0 0.0
  %2429 = vmatpush1.msra.mxu0 0.0
  %2430 = vmatprep.subr.mxu0 0.0
  %2431 = vmatpush1.msra.mxu0 0.0
  %2432 = vmatprep.subr.mxu0 0.0
  %2433 = vmatpush1.msra.mxu0 0.0
  %2434 = vmatprep.subr.mxu0 0.0
  %2435 = vmatpush1.msra.mxu0 0.0
  %2436 = vmatprep.subr.mxu0 0.0
  %2437 = vmatpush1.msra.mxu0 0.0
  %2438 = vmatprep.subr.mxu0 0.0
  %2439 = vmatpush1.msra.mxu0 0.0
  %2440 = vmatprep.subr.mxu0 0.0
  %2441 = vmatpush1.msra.mxu0 0.0
  %2442 = vmatprep.subr.mxu0 0.0
  %2443 = vmatpush1.msra.mxu0 0.0
  %2444 = vmatprep.subr.mxu0 0.0
  %2445 = vmatpush1.msra.mxu0 0.0
  %2446 = vmatprep.mubr.f32.mxu0 0.0
  %2447 = vmatmul.mubr.f32.gmra.mrb[0].mxu0 %v2317
  %v2448 = vpop.f32.mrb[0].mxu0
  %v2449 = vadd.f32 0.0, %v2448
  %v2450 = vpop.f32.mrb[0].mxu0
  %v2451 = vadd.f32 0.0, %v2450
  %2452 = vdwg.mxu0
  %2453 = vmatprep.subr.mxu0 %v2321
  %2454 = vmatpush1.msra.mxu0 %v2320
  %2455 = vmatprep.subr.mxu0 %v2325
  %2456 = vmatpush1.msra.mxu0 %v2324
  %2457 = vmatprep.subr.mxu0 %v2329
  %2458 = vmatpush1.msra.mxu0 %v2328
  %2459 = vmatprep.subr.mxu0 %v2333
  %2460 = vmatpush1.msra.mxu0 %v2332
  %2461 = vmatprep.subr.mxu0 %v2337
  %2462 = vmatpush1.msra.mxu0 %v2336
  %2463 = vmatprep.subr.mxu0 %v2341
  %2464 = vmatpush1.msra.mxu0 %v2340
  %2465 = vmatprep.subr.mxu0 %v2345
  %2466 = vmatpush1.msra.mxu0 %v2344
  %2467 = vmatprep.subr.mxu0 %v2349
  %2468 = vmatpush1.msra.mxu0 %v2348
  %2469 = vmatprep.subr.mxu0 %v2353
  %2470 = vmatpush1.msra.mxu0 %v2352
  %2471 = vmatprep.subr.mxu0 %v2357
  %2472 = vmatpush1.msra.mxu0 %v2356
  %2473 = vmatprep.subr.mxu0 %v2361
  %2474 = vmatpush1.msra.mxu0 %v2360
  %2475 = vmatprep.subr.mxu0 %v2365
  %2476 = vmatpush1.msra.mxu0 %v2364
  %2477 = vmatprep.subr.mxu0 %v2369
  %2478 = vmatpush1.msra.mxu0 %v2368
  %2479 = vmatprep.subr.mxu0 %v2373
  %2480 = vmatpush1.msra.mxu0 %v2372
  %2481 = vmatprep.subr.mxu0 %v2377
  %2482 = vmatpush1.msra.mxu0 %v2376
  %2483 = vmatprep.subr.mxu0 %v2381
  %2484 = vmatpush1.msra.mxu0 %v2380
  %2485 = vmatprep.subr.mxu0 0.0
  %2486 = vmatpush1.msra.mxu0 0.0
  %2487 = vmatprep.subr.mxu0 0.0
  %2488 = vmatpush1.msra.mxu0 0.0
  %2489 = vmatprep.subr.mxu0 0.0
  %2490 = vmatpush1.msra.mxu0 0.0
  %2491 = vmatprep.subr.mxu0 0.0
  %2492 = vmatpush1.msra.mxu0 0.0
  %2493 = vmatprep.subr.mxu0 0.0
  %2494 = vmatpush1.msra.mxu0 0.0
  %2495 = vmatprep.subr.mxu0 0.0
  %2496 = vmatpush1.msra.mxu0 0.0
  %2497 = vmatprep.subr.mxu0 0.0
  %2498 = vmatpush1.msra.mxu0 0.0
  %2499 = vmatprep.subr.mxu0 0.0
  %2500 = vmatpush1.msra.mxu0 0.0
  %2501 = vmatprep.subr.mxu0 0.0
  %2502 = vmatpush1.msra.mxu0 0.0
  %2503 = vmatprep.subr.mxu0 0.0
  %2504 = vmatpush1.msra.mxu0 0.0
  %2505 = vmatprep.subr.mxu0 0.0
  %2506 = vmatpush1.msra.mxu0 0.0
  %2507 = vmatprep.subr.mxu0 0.0
  %2508 = vmatpush1.msra.mxu0 0.0
  %2509 = vmatprep.subr.mxu0 0.0
  %2510 = vmatpush1.msra.mxu0 0.0
  %2511 = vmatprep.subr.mxu0 0.0
  %2512 = vmatpush1.msra.mxu0 0.0
  %2513 = vmatprep.subr.mxu0 0.0
  %2514 = vmatpush1.msra.mxu0 0.0
  %2515 = vmatprep.subr.mxu0 0.0
  %2516 = vmatpush1.msra.mxu0 0.0
  %2517 = vmatprep.mubr.f32.mxu0 0.0
  %2518 = vmatmul.mubr.f32.gmra.mrb[0].mxu0 %v2317
  %v2519 = vpop.f32.mrb[0].mxu0
  %v2520 = vadd.f32 0.0, %v2519
  %v2521 = vpop.f32.mrb[0].mxu0
  %v2522 = vadd.f32 0.0, %v2521
  %2523 = vdwg.mxu0
  %v2528 = vrot.slane %v2449, 6
  %v2529 = vrot.slane %v2451, 6
  %v2530 = vrot.slane %v2520, 6
  %v2531 = vrot.slane %v2522, 6
  %v2536 = vadd.f32 %v2313, %v2528
  %v2537 = vadd.f32 %v2314, %v2529
  %v2538 = vadd.f32 %v2315, %v2530
  %v2539 = vadd.f32 %v2316, %v2531
  %v2540 = vxor.u32 %v2536, 2147483648
  %v2541 = vmul.f32 %v2540, 1.442695
  %v2542 = vpow.pop %v2541
  %v2543 = vadd.f32 %v2542, 1.0
  %v2544 = vrcp.pop %v2543
  %v2545 = vmul.f32 1.0, %v2544
  %v2546 = vxor.u32 %v2537, 2147483648
  %v2547 = vmul.f32 %v2546, 1.442695
  %v2548 = vpow.pop %v2547
  %v2549 = vadd.f32 %v2548, 1.0
  %v2550 = vrcp.pop %v2549
  %v2551 = vmul.f32 1.0, %v2550
  %v2552 = vtanh.pop %v2538
  %v2553 = vxor.u32 %v2539, 2147483648
  %v2554 = vmul.f32 %v2553, 1.442695
  %v2555 = vpow.pop %v2554
  %v2556 = vadd.f32 %v2555, 1.0
  %v2557 = vrcp.pop %v2556
  %v2558 = vmul.f32 1.0, %v2557
  %v2559 = vld [vmem:[#allocation6] sm:$0x3]
  %v2561 = vrot.slane %v2559, 6
  %v2563 = vmul.f32 %v2551, %v2561
  %v2564 = vmul.f32 %v2545, %v2552
  %v2565 = vadd.f32 %v2563, %v2564
  %v2566 = vtanh.pop %v2565
  %v2567 = vmul.f32 %v2558, %v2566
  %2568 = vst [vmem:[#allocation6 - $0x2] sm:$0xc] %v2565
  %2569 = vst [vmem:[#allocation5 - $0x2] sm:$0xc] %v2567
  %2570 = vst [vmem:[#allocation3] sm:$0xc] %v2567
  %2571 = vst [vmem:[#allocation4 + $0xa] sm:$0xc] %v2567
  %v2572 = vld [vmem:[#allocation2] sm:$0x30]
  %v2573 = vld [vmem:[#allocation2 + $0x8] sm:$0x30]
  %v2574 = vld [vmem:[#allocation2 + $0x10] sm:$0x30]
  %v2575 = vld [vmem:[#allocation2 + $0x18] sm:$0x30]
  %v2576 = vld [vmem:[#allocation5] sm:$0x3]
  %v2577 = vld [vmem:[%s3] sm:$0xff]
  %v2578 = vld [vmem:[%s3 + $0x8] sm:$0xff]
  %v2579 = vld [vmem:[%s3 + $0x10] sm:$0xff]
  %v2580 = vld [vmem:[%s3 + $0x18] sm:$0xff]
  %v2581 = vld [vmem:[%s3 + $0x20] sm:$0xff]
  %v2582 = vld [vmem:[%s3 + $0x28] sm:$0xff]
  %v2583 = vld [vmem:[%s3 + $0x30] sm:$0xff]
  %v2584 = vld [vmem:[%s3 + $0x38] sm:$0xff]
  %v2585 = vld [vmem:[%s3 + $0x40] sm:$0xff]
  %v2586 = vld [vmem:[%s3 + $0x48] sm:$0xff]
  %v2587 = vld [vmem:[%s3 + $0x50] sm:$0xff]
  %v2588 = vld [vmem:[%s3 + $0x58] sm:$0xff]
  %v2589 = vld [vmem:[%s3 + $0x60] sm:$0xff]
  %v2590 = vld [vmem:[%s3 + $0x68] sm:$0xff]
  %v2591 = vld [vmem:[%s3 + $0x70] sm:$0xff]
  %v2592 = vld [vmem:[%s3 + $0x78] sm:$0xff]
  %v2593 = vld [vmem:[%s3 + $0x80] sm:$0xff]
  %v2594 = vld [vmem:[%s3 + $0x88] sm:$0xff]
  %v2595 = vld [vmem:[%s3 + $0x90] sm:$0xff]
  %v2596 = vld [vmem:[%s3 + $0x98] sm:$0xff]
  %v2597 = vld [vmem:[%s3 + $0xa0] sm:$0xff]
  %v2598 = vld [vmem:[%s3 + $0xa8] sm:$0xff]
  %v2599 = vld [vmem:[%s3 + $0xb0] sm:$0xff]
  %v2600 = vld [vmem:[%s3 + $0xb8] sm:$0xff]
  %v2601 = vld [vmem:[%s3 + $0xc0] sm:$0xff]
  %v2602 = vld [vmem:[%s3 + $0xc8] sm:$0xff]
  %v2603 = vld [vmem:[%s3 + $0xd0] sm:$0xff]
  %v2604 = vld [vmem:[%s3 + $0xd8] sm:$0xff]
  %v2605 = vld [vmem:[%s3 + $0xe0] sm:$0xff]
  %v2606 = vld [vmem:[%s3 + $0xe8] sm:$0xff]
  %v2607 = vld [vmem:[%s3 + $0xf0] sm:$0xff]
  %v2608 = vld [vmem:[%s3 + $0xf8] sm:$0xff]
  %v2609 = vld [vmem:[%s3 + $0x100] sm:$0xff]
  %v2610 = vld [vmem:[%s3 + $0x108] sm:$0xff]
  %v2611 = vld [vmem:[%s3 + $0x110] sm:$0xff]
  %v2612 = vld [vmem:[%s3 + $0x118] sm:$0xff]
  %v2613 = vld [vmem:[%s3 + $0x120] sm:$0xff]
  %v2614 = vld [vmem:[%s3 + $0x128] sm:$0xff]
  %v2615 = vld [vmem:[%s3 + $0x130] sm:$0xff]
  %v2616 = vld [vmem:[%s3 + $0x138] sm:$0xff]
  %v2617 = vld [vmem:[%s3 + $0x140] sm:$0xff]
  %v2618 = vld [vmem:[%s3 + $0x148] sm:$0xff]
  %v2619 = vld [vmem:[%s3 + $0x150] sm:$0xff]
  %v2620 = vld [vmem:[%s3 + $0x158] sm:$0xff]
  %v2621 = vld [vmem:[%s3 + $0x160] sm:$0xff]
  %v2622 = vld [vmem:[%s3 + $0x168] sm:$0xff]
  %v2623 = vld [vmem:[%s3 + $0x170] sm:$0xff]
  %v2624 = vld [vmem:[%s3 + $0x178] sm:$0xff]
  %v2625 = vld [vmem:[%s3 + $0x180] sm:$0xff]
  %v2626 = vld [vmem:[%s3 + $0x188] sm:$0xff]
  %v2627 = vld [vmem:[%s3 + $0x190] sm:$0xff]
  %v2628 = vld [vmem:[%s3 + $0x198] sm:$0xff]
  %v2629 = vld [vmem:[%s3 + $0x1a0] sm:$0xff]
  %v2630 = vld [vmem:[%s3 + $0x1a8] sm:$0xff]
  %v2631 = vld [vmem:[%s3 + $0x1b0] sm:$0xff]
  %v2632 = vld [vmem:[%s3 + $0x1b8] sm:$0xff]
  %v2633 = vld [vmem:[%s3 + $0x1c0] sm:$0xff]
  %v2634 = vld [vmem:[%s3 + $0x1c8] sm:$0xff]
  %v2635 = vld [vmem:[%s3 + $0x1d0] sm:$0xff]
  %v2636 = vld [vmem:[%s3 + $0x1d8] sm:$0xff]
  %v2637 = vld [vmem:[%s3 + $0x1e0] sm:$0xff]
  %v2638 = vld [vmem:[%s3 + $0x1e8] sm:$0xff]
  %v2639 = vld [vmem:[%s3 + $0x1f0] sm:$0xff]
  %v2640 = vld [vmem:[%s3 + $0x1f8] sm:$0xff]
  %2641 = vmatprep.subr.mxu0 %v2578
  %2642 = vmatpush1.msra.mxu0 %v2577
  %2643 = vmatprep.subr.mxu0 %v2582
  %2644 = vmatpush1.msra.mxu0 %v2581
  %2645 = vmatprep.subr.mxu0 %v2586
  %2646 = vmatpush1.msra.mxu0 %v2585
  %2647 = vmatprep.subr.mxu0 %v2590
  %2648 = vmatpush1.msra.mxu0 %v2589
  %2649 = vmatprep.subr.mxu0 %v2594
  %2650 = vmatpush1.msra.mxu0 %v2593
  %2651 = vmatprep.subr.mxu0 %v2598
  %2652 = vmatpush1.msra.mxu0 %v2597
  %2653 = vmatprep.subr.mxu0 %v2602
  %2654 = vmatpush1.msra.mxu0 %v2601
  %2655 = vmatprep.subr.mxu0 %v2606
  %2656 = vmatpush1.msra.mxu0 %v2605
  %2657 = vmatprep.subr.mxu0 %v2610
  %2658 = vmatpush1.msra.mxu0 %v2609
  %2659 = vmatprep.subr.mxu0 %v2614
  %2660 = vmatpush1.msra.mxu0 %v2613
  %2661 = vmatprep.subr.mxu0 %v2618
  %2662 = vmatpush1.msra.mxu0 %v2617
  %2663 = vmatprep.subr.mxu0 %v2622
  %2664 = vmatpush1.msra.mxu0 %v2621
  %2665 = vmatprep.subr.mxu0 %v2626
  %2666 = vmatpush1.msra.mxu0 %v2625
  %2667 = vmatprep.subr.mxu0 %v2630
  %2668 = vmatpush1.msra.mxu0 %v2629
  %2669 = vmatprep.subr.mxu0 %v2634
  %2670 = vmatpush1.msra.mxu0 %v2633
  %2671 = vmatprep.subr.mxu0 %v2638
  %2672 = vmatpush1.msra.mxu0 %v2637
  %2673 = vmatprep.subr.mxu0 0.0
  %2674 = vmatpush1.msra.mxu0 0.0
  %2675 = vmatprep.subr.mxu0 0.0
  %2676 = vmatpush1.msra.mxu0 0.0
  %2677 = vmatprep.subr.mxu0 0.0
  %2678 = vmatpush1.msra.mxu0 0.0
  %2679 = vmatprep.subr.mxu0 0.0
  %2680 = vmatpush1.msra.mxu0 0.0
  %2681 = vmatprep.subr.mxu0 0.0
  %2682 = vmatpush1.msra.mxu0 0.0
  %2683 = vmatprep.subr.mxu0 0.0
  %2684 = vmatpush1.msra.mxu0 0.0
  %2685 = vmatprep.subr.mxu0 0.0
  %2686 = vmatpush1.msra.mxu0 0.0
  %2687 = vmatprep.subr.mxu0 0.0
  %2688 = vmatpush1.msra.mxu0 0.0
  %2689 = vmatprep.subr.mxu0 0.0
  %2690 = vmatpush1.msra.mxu0 0.0
  %2691 = vmatprep.subr.mxu0 0.0
  %2692 = vmatpush1.msra.mxu0 0.0
  %2693 = vmatprep.subr.mxu0 0.0
  %2694 = vmatpush1.msra.mxu0 0.0
  %2695 = vmatprep.subr.mxu0 0.0
  %2696 = vmatpush1.msra.mxu0 0.0
  %2697 = vmatprep.subr.mxu0 0.0
  %2698 = vmatpush1.msra.mxu0 0.0
  %2699 = vmatprep.subr.mxu0 0.0
  %2700 = vmatpush1.msra.mxu0 0.0
  %2701 = vmatprep.subr.mxu0 0.0
  %2702 = vmatpush1.msra.mxu0 0.0
  %2703 = vmatprep.subr.mxu0 0.0
  %2704 = vmatpush1.msra.mxu0 0.0
  %2705 = vmatprep.mubr.f32.mxu0 0.0
  %2706 = vmatmul.mubr.f32.gmra.mrb[0].mxu0 %v2576
  %v2707 = vpop.f32.mrb[0].mxu0
  %v2708 = vadd.f32 0.0, %v2707
  %v2709 = vpop.f32.mrb[0].mxu0
  %v2710 = vadd.f32 0.0, %v2709
  %2711 = vdwg.mxu0
  %2712 = vmatprep.subr.mxu0 %v2580
  %2713 = vmatpush1.msra.mxu0 %v2579
  %2714 = vmatprep.subr.mxu0 %v2584
  %2715 = vmatpush1.msra.mxu0 %v2583
  %2716 = vmatprep.subr.mxu0 %v2588
  %2717 = vmatpush1.msra.mxu0 %v2587
  %2718 = vmatprep.subr.mxu0 %v2592
  %2719 = vmatpush1.msra.mxu0 %v2591
  %2720 = vmatprep.subr.mxu0 %v2596
  %2721 = vmatpush1.msra.mxu0 %v2595
  %2722 = vmatprep.subr.mxu0 %v2600
  %2723 = vmatpush1.msra.mxu0 %v2599
  %2724 = vmatprep.subr.mxu0 %v2604
  %2725 = vmatpush1.msra.mxu0 %v2603
  %2726 = vmatprep.subr.mxu0 %v2608
  %2727 = vmatpush1.msra.mxu0 %v2607
  %2728 = vmatprep.subr.mxu0 %v2612
  %2729 = vmatpush1.msra.mxu0 %v2611
  %2730 = vmatprep.subr.mxu0 %v2616
  %2731 = vmatpush1.msra.mxu0 %v2615
  %2732 = vmatprep.subr.mxu0 %v2620
  %2733 = vmatpush1.msra.mxu0 %v2619
  %2734 = vmatprep.subr.mxu0 %v2624
  %2735 = vmatpush1.msra.mxu0 %v2623
  %2736 = vmatprep.subr.mxu0 %v2628
  %2737 = vmatpush1.msra.mxu0 %v2627
  %2738 = vmatprep.subr.mxu0 %v2632
  %2739 = vmatpush1.msra.mxu0 %v2631
  %2740 = vmatprep.subr.mxu0 %v2636
  %2741 = vmatpush1.msra.mxu0 %v2635
  %2742 = vmatprep.subr.mxu0 %v2640
  %2743 = vmatpush1.msra.mxu0 %v2639
  %2744 = vmatprep.subr.mxu0 0.0
  %2745 = vmatpush1.msra.mxu0 0.0
  %2746 = vmatprep.subr.mxu0 0.0
  %2747 = vmatpush1.msra.mxu0 0.0
  %2748 = vmatprep.subr.mxu0 0.0
  %2749 = vmatpush1.msra.mxu0 0.0
  %2750 = vmatprep.subr.mxu0 0.0
  %2751 = vmatpush1.msra.mxu0 0.0
  %2752 = vmatprep.subr.mxu0 0.0
  %2753 = vmatpush1.msra.mxu0 0.0
  %2754 = vmatprep.subr.mxu0 0.0
  %2755 = vmatpush1.msra.mxu0 0.0
  %2756 = vmatprep.subr.mxu0 0.0
  %2757 = vmatpush1.msra.mxu0 0.0
  %2758 = vmatprep.subr.mxu0 0.0
  %2759 = vmatpush1.msra.mxu0 0.0
  %2760 = vmatprep.subr.mxu0 0.0
  %2761 = vmatpush1.msra.mxu0 0.0
  %2762 = vmatprep.subr.mxu0 0.0
  %2763 = vmatpush1.msra.mxu0 0.0
  %2764 = vmatprep.subr.mxu0 0.0
  %2765 = vmatpush1.msra.mxu0 0.0
  %2766 = vmatprep.subr.mxu0 0.0
  %2767 = vmatpush1.msra.mxu0 0.0
  %2768 = vmatprep.subr.mxu0 0.0
  %2769 = vmatpush1.msra.mxu0 0.0
  %2770 = vmatprep.subr.mxu0 0.0
  %2771 = vmatpush1.msra.mxu0 0.0
  %2772 = vmatprep.subr.mxu0 0.0
  %2773 = vmatpush1.msra.mxu0 0.0
  %2774 = vmatprep.subr.mxu0 0.0
  %2775 = vmatpush1.msra.mxu0 0.0
  %2776 = vmatprep.mubr.f32.mxu0 0.0
  %2777 = vmatmul.mubr.f32.gmra.mrb[0].mxu0 %v2576
  %v2778 = vpop.f32.mrb[0].mxu0
  %v2779 = vadd.f32 0.0, %v2778
  %v2780 = vpop.f32.mrb[0].mxu0
  %v2781 = vadd.f32 0.0, %v2780
  %2782 = vdwg.mxu0
  %v2787 = vrot.slane %v2708, 4
  %v2788 = vrot.slane %v2710, 4
  %v2789 = vrot.slane %v2779, 4
  %v2790 = vrot.slane %v2781, 4
  %v2795 = vadd.f32 %v2572, %v2787
  %v2796 = vadd.f32 %v2573, %v2788
  %v2797 = vadd.f32 %v2574, %v2789
  %v2798 = vadd.f32 %v2575, %v2790
  %v2799 = vxor.u32 %v2795, 2147483648
  %v2800 = vmul.f32 %v2799, 1.442695
  %v2801 = vpow.pop %v2800
  %v2802 = vadd.f32 %v2801, 1.0
  %v2803 = vrcp.pop %v2802
  %v2804 = vmul.f32 1.0, %v2803
  %v2805 = vxor.u32 %v2796, 2147483648
  %v2806 = vmul.f32 %v2805, 1.442695
  %v2807 = vpow.pop %v2806
  %v2808 = vadd.f32 %v2807, 1.0
  %v2809 = vrcp.pop %v2808
  %v2810 = vmul.f32 1.0, %v2809
  %v2811 = vtanh.pop %v2797
  %v2812 = vxor.u32 %v2798, 2147483648
  %v2813 = vmul.f32 %v2812, 1.442695
  %v2814 = vpow.pop %v2813
  %v2815 = vadd.f32 %v2814, 1.0
  %v2816 = vrcp.pop %v2815
  %v2817 = vmul.f32 1.0, %v2816
  %v2818 = vld [vmem:[#allocation6] sm:$0x3]
  %v2820 = vrot.slane %v2818, 4
  %v2822 = vmul.f32 %v2810, %v2820
  %v2823 = vmul.f32 %v2804, %v2811
  %v2824 = vadd.f32 %v2822, %v2823
  %v2825 = vtanh.pop %v2824
  %v2826 = vmul.f32 %v2817, %v2825
  %2827 = vst [vmem:[#allocation6 - $0x4] sm:$0x30] %v2824
  %2828 = vst [vmem:[#allocation5 - $0x4] sm:$0x30] %v2826
  %2829 = vst [vmem:[#allocation3] sm:$0x30] %v2826
  %2830 = vst [vmem:[#allocation4 + $0x6] sm:$0x30] %v2826
  %v2831 = vld [vmem:[#allocation2] sm:$0xc0]
  %v2832 = vld [vmem:[#allocation2 + $0x8] sm:$0xc0]
  %v2833 = vld [vmem:[#allocation2 + $0x10] sm:$0xc0]
  %v2834 = vld [vmem:[#allocation2 + $0x18] sm:$0xc0]
  %v2835 = vld [vmem:[#allocation5] sm:$0x3]
  %v2836 = vld [vmem:[%s3] sm:$0xff]
  %v2837 = vld [vmem:[%s3 + $0x8] sm:$0xff]
  %v2838 = vld [vmem:[%s3 + $0x10] sm:$0xff]
  %v2839 = vld [vmem:[%s3 + $0x18] sm:$0xff]
  %v2840 = vld [vmem:[%s3 + $0x20] sm:$0xff]
  %v2841 = vld [vmem:[%s3 + $0x28] sm:$0xff]
  %v2842 = vld [vmem:[%s3 + $0x30] sm:$0xff]
  %v2843 = vld [vmem:[%s3 + $0x38] sm:$0xff]
  %v2844 = vld [vmem:[%s3 + $0x40] sm:$0xff]
  %v2845 = vld [vmem:[%s3 + $0x48] sm:$0xff]
  %v2846 = vld [vmem:[%s3 + $0x50] sm:$0xff]
  %v2847 = vld [vmem:[%s3 + $0x58] sm:$0xff]
  %v2848 = vld [vmem:[%s3 + $0x60] sm:$0xff]
  %v2849 = vld [vmem:[%s3 + $0x68] sm:$0xff]
  %v2850 = vld [vmem:[%s3 + $0x70] sm:$0xff]
  %v2851 = vld [vmem:[%s3 + $0x78] sm:$0xff]
  %v2852 = vld [vmem:[%s3 + $0x80] sm:$0xff]
  %v2853 = vld [vmem:[%s3 + $0x88] sm:$0xff]
  %v2854 = vld [vmem:[%s3 + $0x90] sm:$0xff]
  %v2855 = vld [vmem:[%s3 + $0x98] sm:$0xff]
  %v2856 = vld [vmem:[%s3 + $0xa0] sm:$0xff]
  %v2857 = vld [vmem:[%s3 + $0xa8] sm:$0xff]
  %v2858 = vld [vmem:[%s3 + $0xb0] sm:$0xff]
  %v2859 = vld [vmem:[%s3 + $0xb8] sm:$0xff]
  %v2860 = vld [vmem:[%s3 + $0xc0] sm:$0xff]
  %v2861 = vld [vmem:[%s3 + $0xc8] sm:$0xff]
  %v2862 = vld [vmem:[%s3 + $0xd0] sm:$0xff]
  %v2863 = vld [vmem:[%s3 + $0xd8] sm:$0xff]
  %v2864 = vld [vmem:[%s3 + $0xe0] sm:$0xff]
  %v2865 = vld [vmem:[%s3 + $0xe8] sm:$0xff]
  %v2866 = vld [vmem:[%s3 + $0xf0] sm:$0xff]
  %v2867 = vld [vmem:[%s3 + $0xf8] sm:$0xff]
  %v2868 = vld [vmem:[%s3 + $0x100] sm:$0xff]
  %v2869 = vld [vmem:[%s3 + $0x108] sm:$0xff]
  %v2870 = vld [vmem:[%s3 + $0x110] sm:$0xff]
  %v2871 = vld [vmem:[%s3 + $0x118] sm:$0xff]
  %v2872 = vld [vmem:[%s3 + $0x120] sm:$0xff]
  %v2873 = vld [vmem:[%s3 + $0x128] sm:$0xff]
  %v2874 = vld [vmem:[%s3 + $0x130] sm:$0xff]
  %v2875 = vld [vmem:[%s3 + $0x138] sm:$0xff]
  %v2876 = vld [vmem:[%s3 + $0x140] sm:$0xff]
  %v2877 = vld [vmem:[%s3 + $0x148] sm:$0xff]
  %v2878 = vld [vmem:[%s3 + $0x150] sm:$0xff]
  %v2879 = vld [vmem:[%s3 + $0x158] sm:$0xff]
  %v2880 = vld [vmem:[%s3 + $0x160] sm:$0xff]
  %v2881 = vld [vmem:[%s3 + $0x168] sm:$0xff]
  %v2882 = vld [vmem:[%s3 + $0x170] sm:$0xff]
  %v2883 = vld [vmem:[%s3 + $0x178] sm:$0xff]
  %v2884 = vld [vmem:[%s3 + $0x180] sm:$0xff]
  %v2885 = vld [vmem:[%s3 + $0x188] sm:$0xff]
  %v2886 = vld [vmem:[%s3 + $0x190] sm:$0xff]
  %v2887 = vld [vmem:[%s3 + $0x198] sm:$0xff]
  %v2888 = vld [vmem:[%s3 + $0x1a0] sm:$0xff]
  %v2889 = vld [vmem:[%s3 + $0x1a8] sm:$0xff]
  %v2890 = vld [vmem:[%s3 + $0x1b0] sm:$0xff]
  %v2891 = vld [vmem:[%s3 + $0x1b8] sm:$0xff]
  %v2892 = vld [vmem:[%s3 + $0x1c0] sm:$0xff]
  %v2893 = vld [vmem:[%s3 + $0x1c8] sm:$0xff]
  %v2894 = vld [vmem:[%s3 + $0x1d0] sm:$0xff]
  %v2895 = vld [vmem:[%s3 + $0x1d8] sm:$0xff]
  %v2896 = vld [vmem:[%s3 + $0x1e0] sm:$0xff]
  %v2897 = vld [vmem:[%s3 + $0x1e8] sm:$0xff]
  %v2898 = vld [vmem:[%s3 + $0x1f0] sm:$0xff]
  %v2899 = vld [vmem:[%s3 + $0x1f8] sm:$0xff]
  %2900 = vmatprep.subr.mxu0 %v2837
  %2901 = vmatpush1.msra.mxu0 %v2836
  %2902 = vmatprep.subr.mxu0 %v2841
  %2903 = vmatpush1.msra.mxu0 %v2840
  %2904 = vmatprep.subr.mxu0 %v2845
  %2905 = vmatpush1.msra.mxu0 %v2844
  %2906 = vmatprep.subr.mxu0 %v2849
  %2907 = vmatpush1.msra.mxu0 %v2848
  %2908 = vmatprep.subr.mxu0 %v2853
  %2909 = vmatpush1.msra.mxu0 %v2852
  %2910 = vmatprep.subr.mxu0 %v2857
  %2911 = vmatpush1.msra.mxu0 %v2856
  %2912 = vmatprep.subr.mxu0 %v2861
  %2913 = vmatpush1.msra.mxu0 %v2860
  %2914 = vmatprep.subr.mxu0 %v2865
  %2915 = vmatpush1.msra.mxu0 %v2864
  %2916 = vmatprep.subr.mxu0 %v2869
  %2917 = vmatpush1.msra.mxu0 %v2868
  %2918 = vmatprep.subr.mxu0 %v2873
  %2919 = vmatpush1.msra.mxu0 %v2872
  %2920 = vmatprep.subr.mxu0 %v2877
  %2921 = vmatpush1.msra.mxu0 %v2876
  %2922 = vmatprep.subr.mxu0 %v2881
  %2923 = vmatpush1.msra.mxu0 %v2880
  %2924 = vmatprep.subr.mxu0 %v2885
  %2925 = vmatpush1.msra.mxu0 %v2884
  %2926 = vmatprep.subr.mxu0 %v2889
  %2927 = vmatpush1.msra.mxu0 %v2888
  %2928 = vmatprep.subr.mxu0 %v2893
  %2929 = vmatpush1.msra.mxu0 %v2892
  %2930 = vmatprep.subr.mxu0 %v2897
  %2931 = vmatpush1.msra.mxu0 %v2896
  %2932 = vmatprep.subr.mxu0 0.0
  %2933 = vmatpush1.msra.mxu0 0.0
  %2934 = vmatprep.subr.mxu0 0.0
  %2935 = vmatpush1.msra.mxu0 0.0
  %2936 = vmatprep.subr.mxu0 0.0
  %2937 = vmatpush1.msra.mxu0 0.0
  %2938 = vmatprep.subr.mxu0 0.0
  %2939 = vmatpush1.msra.mxu0 0.0
  %2940 = vmatprep.subr.mxu0 0.0
  %2941 = vmatpush1.msra.mxu0 0.0
  %2942 = vmatprep.subr.mxu0 0.0
  %2943 = vmatpush1.msra.mxu0 0.0
  %2944 = vmatprep.subr.mxu0 0.0
  %2945 = vmatpush1.msra.mxu0 0.0
  %2946 = vmatprep.subr.mxu0 0.0
  %2947 = vmatpush1.msra.mxu0 0.0
  %2948 = vmatprep.subr.mxu0 0.0
  %2949 = vmatpush1.msra.mxu0 0.0
  %2950 = vmatprep.subr.mxu0 0.0
  %2951 = vmatpush1.msra.mxu0 0.0
  %2952 = vmatprep.subr.mxu0 0.0
  %2953 = vmatpush1.msra.mxu0 0.0
  %2954 = vmatprep.subr.mxu0 0.0
  %2955 = vmatpush1.msra.mxu0 0.0
  %2956 = vmatprep.subr.mxu0 0.0
  %2957 = vmatpush1.msra.mxu0 0.0
  %2958 = vmatprep.subr.mxu0 0.0
  %2959 = vmatpush1.msra.mxu0 0.0
  %2960 = vmatprep.subr.mxu0 0.0
  %2961 = vmatpush1.msra.mxu0 0.0
  %2962 = vmatprep.subr.mxu0 0.0
  %2963 = vmatpush1.msra.mxu0 0.0
  %2964 = vmatprep.mubr.f32.mxu0 0.0
  %2965 = vmatmul.mubr.f32.gmra.mrb[0].mxu0 %v2835
  %v2966 = vpop.f32.mrb[0].mxu0
  %v2967 = vadd.f32 0.0, %v2966
  %v2968 = vpop.f32.mrb[0].mxu0
  %v2969 = vadd.f32 0.0, %v2968
  %2970 = vdwg.mxu0
  %2971 = vmatprep.subr.mxu0 %v2839
  %2972 = vmatpush1.msra.mxu0 %v2838
  %2973 = vmatprep.subr.mxu0 %v2843
  %2974 = vmatpush1.msra.mxu0 %v2842
  %2975 = vmatprep.subr.mxu0 %v2847
  %2976 = vmatpush1.msra.mxu0 %v2846
  %2977 = vmatprep.subr.mxu0 %v2851
  %2978 = vmatpush1.msra.mxu0 %v2850
  %2979 = vmatprep.subr.mxu0 %v2855
  %2980 = vmatpush1.msra.mxu0 %v2854
  %2981 = vmatprep.subr.mxu0 %v2859
  %2982 = vmatpush1.msra.mxu0 %v2858
  %2983 = vmatprep.subr.mxu0 %v2863
  %2984 = vmatpush1.msra.mxu0 %v2862
  %2985 = vmatprep.subr.mxu0 %v2867
  %2986 = vmatpush1.msra.mxu0 %v2866
  %2987 = vmatprep.subr.mxu0 %v2871
  %2988 = vmatpush1.msra.mxu0 %v2870
  %2989 = vmatprep.subr.mxu0 %v2875
  %2990 = vmatpush1.msra.mxu0 %v2874
  %2991 = vmatprep.subr.mxu0 %v2879
  %2992 = vmatpush1.msra.mxu0 %v2878
  %2993 = vmatprep.subr.mxu0 %v2883
  %2994 = vmatpush1.msra.mxu0 %v2882
  %2995 = vmatprep.subr.mxu0 %v2887
  %2996 = vmatpush1.msra.mxu0 %v2886
  %2997 = vmatprep.subr.mxu0 %v2891
  %2998 = vmatpush1.msra.mxu0 %v2890
  %2999 = vmatprep.subr.mxu0 %v2895
  %3000 = vmatpush1.msra.mxu0 %v2894
  %3001 = vmatprep.subr.mxu0 %v2899
  %3002 = vmatpush1.msra.mxu0 %v2898
  %3003 = vmatprep.subr.mxu0 0.0
  %3004 = vmatpush1.msra.mxu0 0.0
  %3005 = vmatprep.subr.mxu0 0.0
  %3006 = vmatpush1.msra.mxu0 0.0
  %3007 = vmatprep.subr.mxu0 0.0
  %3008 = vmatpush1.msra.mxu0 0.0
  %3009 = vmatprep.subr.mxu0 0.0
  %3010 = vmatpush1.msra.mxu0 0.0
  %3011 = vmatprep.subr.mxu0 0.0
  %3012 = vmatpush1.msra.mxu0 0.0
  %3013 = vmatprep.subr.mxu0 0.0
  %3014 = vmatpush1.msra.mxu0 0.0
  %3015 = vmatprep.subr.mxu0 0.0
  %3016 = vmatpush1.msra.mxu0 0.0
  %3017 = vmatprep.subr.mxu0 0.0
  %3018 = vmatpush1.msra.mxu0 0.0
  %3019 = vmatprep.subr.mxu0 0.0
  %3020 = vmatpush1.msra.mxu0 0.0
  %3021 = vmatprep.subr.mxu0 0.0
  %3022 = vmatpush1.msra.mxu0 0.0
  %3023 = vmatprep.subr.mxu0 0.0
  %3024 = vmatpush1.msra.mxu0 0.0
  %3025 = vmatprep.subr.mxu0 0.0
  %3026 = vmatpush1.msra.mxu0 0.0
  %3027 = vmatprep.subr.mxu0 0.0
  %3028 = vmatpush1.msra.mxu0 0.0
  %3029 = vmatprep.subr.mxu0 0.0
  %3030 = vmatpush1.msra.mxu0 0.0
  %3031 = vmatprep.subr.mxu0 0.0
  %3032 = vmatpush1.msra.mxu0 0.0
  %3033 = vmatprep.subr.mxu0 0.0
  %3034 = vmatpush1.msra.mxu0 0.0
  %3035 = vmatprep.mubr.f32.mxu0 0.0
  %3036 = vmatmul.mubr.f32.gmra.mrb[0].mxu0 %v2835
  %v3037 = vpop.f32.mrb[0].mxu0
  %v3038 = vadd.f32 0.0, %v3037
  %v3039 = vpop.f32.mrb[0].mxu0
  %v3040 = vadd.f32 0.0, %v3039
  %3041 = vdwg.mxu0
  %v3046 = vrot.slane %v2967, 2
  %v3047 = vrot.slane %v2969, 2
  %v3048 = vrot.slane %v3038, 2
  %v3049 = vrot.slane %v3040, 2
  %v3054 = vadd.f32 %v2831, %v3046
  %v3055 = vadd.f32 %v2832, %v3047
  %v3056 = vadd.f32 %v2833, %v3048
  %v3057 = vadd.f32 %v2834, %v3049
  %v3058 = vxor.u32 %v3054, 2147483648
  %v3059 = vmul.f32 %v3058, 1.442695
  %v3060 = vpow.pop %v3059
  %v3061 = vadd.f32 %v3060, 1.0
  %v3062 = vrcp.pop %v3061
  %v3063 = vmul.f32 1.0, %v3062
  %v3064 = vxor.u32 %v3055, 2147483648
  %v3065 = vmul.f32 %v3064, 1.442695
  %v3066 = vpow.pop %v3065
  %v3067 = vadd.f32 %v3066, 1.0
  %v3068 = vrcp.pop %v3067
  %v3069 = vmul.f32 1.0, %v3068
  %v3070 = vtanh.pop %v3056
  %v3071 = vxor.u32 %v3057, 2147483648
  %v3072 = vmul.f32 %v3071, 1.442695
  %v3073 = vpow.pop %v3072
  %v3074 = vadd.f32 %v3073, 1.0
  %v3075 = vrcp.pop %v3074
  %v3076 = vmul.f32 1.0, %v3075
  %v3077 = vld [vmem:[#allocation6] sm:$0x3]
  %v3079 = vrot.slane %v3077, 2
  %v3081 = vmul.f32 %v3069, %v3079
  %v3082 = vmul.f32 %v3063, %v3070
  %v3083 = vadd.f32 %v3081, %v3082
  %v3084 = vtanh.pop %v3083
  %v3085 = vmul.f32 %v3076, %v3084
  %3086 = vst [vmem:[#allocation6 - $0x6] sm:$0xc0] %v3083
  %3087 = vst [vmem:[#allocation5 - $0x6] sm:$0xc0] %v3085
  %3088 = vst [vmem:[#allocation3] sm:$0xc0] %v3085
  %3089 = vst [vmem:[#allocation4 + $0x2] sm:$0xc0] %v3085
  %v3090 = vld [vmem:[#allocation2 + $0x20] sm:$0x3]
  %v3091 = vld [vmem:[#allocation2 + $0x28] sm:$0x3]
  %v3092 = vld [vmem:[#allocation2 + $0x30] sm:$0x3]
  %v3093 = vld [vmem:[#allocation2 + $0x38] sm:$0x3]
  %v3094 = vld [vmem:[#allocation5] sm:$0x3]
  %v3095 = vld [vmem:[%s3] sm:$0xff]
  %v3096 = vld [vmem:[%s3 + $0x8] sm:$0xff]
  %v3097 = vld [vmem:[%s3 + $0x10] sm:$0xff]
  %v3098 = vld [vmem:[%s3 + $0x18] sm:$0xff]
  %v3099 = vld [vmem:[%s3 + $0x20] sm:$0xff]
  %v3100 = vld [vmem:[%s3 + $0x28] sm:$0xff]
  %v3101 = vld [vmem:[%s3 + $0x30] sm:$0xff]
  %v3102 = vld [vmem:[%s3 + $0x38] sm:$0xff]
  %v3103 = vld [vmem:[%s3 + $0x40] sm:$0xff]
  %v3104 = vld [vmem:[%s3 + $0x48] sm:$0xff]
  %v3105 = vld [vmem:[%s3 + $0x50] sm:$0xff]
  %v3106 = vld [vmem:[%s3 + $0x58] sm:$0xff]
  %v3107 = vld [vmem:[%s3 + $0x60] sm:$0xff]
  %v3108 = vld [vmem:[%s3 + $0x68] sm:$0xff]
  %v3109 = vld [vmem:[%s3 + $0x70] sm:$0xff]
  %v3110 = vld [vmem:[%s3 + $0x78] sm:$0xff]
  %v3111 = vld [vmem:[%s3 + $0x80] sm:$0xff]
  %v3112 = vld [vmem:[%s3 + $0x88] sm:$0xff]
  %v3113 = vld [vmem:[%s3 + $0x90] sm:$0xff]
  %v3114 = vld [vmem:[%s3 + $0x98] sm:$0xff]
  %v3115 = vld [vmem:[%s3 + $0xa0] sm:$0xff]
  %v3116 = vld [vmem:[%s3 + $0xa8] sm:$0xff]
  %v3117 = vld [vmem:[%s3 + $0xb0] sm:$0xff]
  %v3118 = vld [vmem:[%s3 + $0xb8] sm:$0xff]
  %v3119 = vld [vmem:[%s3 + $0xc0] sm:$0xff]
  %v3120 = vld [vmem:[%s3 + $0xc8] sm:$0xff]
  %v3121 = vld [vmem:[%s3 + $0xd0] sm:$0xff]
  %v3122 = vld [vmem:[%s3 + $0xd8] sm:$0xff]
  %v3123 = vld [vmem:[%s3 + $0xe0] sm:$0xff]
  %v3124 = vld [vmem:[%s3 + $0xe8] sm:$0xff]
  %v3125 = vld [vmem:[%s3 + $0xf0] sm:$0xff]
  %v3126 = vld [vmem:[%s3 + $0xf8] sm:$0xff]
  %v3127 = vld [vmem:[%s3 + $0x100] sm:$0xff]
  %v3128 = vld [vmem:[%s3 + $0x108] sm:$0xff]
  %v3129 = vld [vmem:[%s3 + $0x110] sm:$0xff]
  %v3130 = vld [vmem:[%s3 + $0x118] sm:$0xff]
  %v3131 = vld [vmem:[%s3 + $0x120] sm:$0xff]
  %v3132 = vld [vmem:[%s3 + $0x128] sm:$0xff]
  %v3133 = vld [vmem:[%s3 + $0x130] sm:$0xff]
  %v3134 = vld [vmem:[%s3 + $0x138] sm:$0xff]
  %v3135 = vld [vmem:[%s3 + $0x140] sm:$0xff]
  %v3136 = vld [vmem:[%s3 + $0x148] sm:$0xff]
  %v3137 = vld [vmem:[%s3 + $0x150] sm:$0xff]
  %v3138 = vld [vmem:[%s3 + $0x158] sm:$0xff]
  %v3139 = vld [vmem:[%s3 + $0x160] sm:$0xff]
  %v3140 = vld [vmem:[%s3 + $0x168] sm:$0xff]
  %v3141 = vld [vmem:[%s3 + $0x170] sm:$0xff]
  %v3142 = vld [vmem:[%s3 + $0x178] sm:$0xff]
  %v3143 = vld [vmem:[%s3 + $0x180] sm:$0xff]
  %v3144 = vld [vmem:[%s3 + $0x188] sm:$0xff]
  %v3145 = vld [vmem:[%s3 + $0x190] sm:$0xff]
  %v3146 = vld [vmem:[%s3 + $0x198] sm:$0xff]
  %v3147 = vld [vmem:[%s3 + $0x1a0] sm:$0xff]
  %v3148 = vld [vmem:[%s3 + $0x1a8] sm:$0xff]
  %v3149 = vld [vmem:[%s3 + $0x1b0] sm:$0xff]
  %v3150 = vld [vmem:[%s3 + $0x1b8] sm:$0xff]
  %v3151 = vld [vmem:[%s3 + $0x1c0] sm:$0xff]
  %v3152 = vld [vmem:[%s3 + $0x1c8] sm:$0xff]
  %v3153 = vld [vmem:[%s3 + $0x1d0] sm:$0xff]
  %v3154 = vld [vmem:[%s3 + $0x1d8] sm:$0xff]
  %v3155 = vld [vmem:[%s3 + $0x1e0] sm:$0xff]
  %v3156 = vld [vmem:[%s3 + $0x1e8] sm:$0xff]
  %v3157 = vld [vmem:[%s3 + $0x1f0] sm:$0xff]
  %v3158 = vld [vmem:[%s3 + $0x1f8] sm:$0xff]
  %3159 = vmatprep.subr.mxu0 %v3096
  %3160 = vmatpush1.msra.mxu0 %v3095
  %3161 = vmatprep.subr.mxu0 %v3100
  %3162 = vmatpush1.msra.mxu0 %v3099
  %3163 = vmatprep.subr.mxu0 %v3104
  %3164 = vmatpush1.msra.mxu0 %v3103
  %3165 = vmatprep.subr.mxu0 %v3108
  %3166 = vmatpush1.msra.mxu0 %v3107
  %3167 = vmatprep.subr.mxu0 %v3112
  %3168 = vmatpush1.msra.mxu0 %v3111
  %3169 = vmatprep.subr.mxu0 %v3116
  %3170 = vmatpush1.msra.mxu0 %v3115
  %3171 = vmatprep.subr.mxu0 %v3120
  %3172 = vmatpush1.msra.mxu0 %v3119
  %3173 = vmatprep.subr.mxu0 %v3124
  %3174 = vmatpush1.msra.mxu0 %v3123
  %3175 = vmatprep.subr.mxu0 %v3128
  %3176 = vmatpush1.msra.mxu0 %v3127
  %3177 = vmatprep.subr.mxu0 %v3132
  %3178 = vmatpush1.msra.mxu0 %v3131
  %3179 = vmatprep.subr.mxu0 %v3136
  %3180 = vmatpush1.msra.mxu0 %v3135
  %3181 = vmatprep.subr.mxu0 %v3140
  %3182 = vmatpush1.msra.mxu0 %v3139
  %3183 = vmatprep.subr.mxu0 %v3144
  %3184 = vmatpush1.msra.mxu0 %v3143
  %3185 = vmatprep.subr.mxu0 %v3148
  %3186 = vmatpush1.msra.mxu0 %v3147
  %3187 = vmatprep.subr.mxu0 %v3152
  %3188 = vmatpush1.msra.mxu0 %v3151
  %3189 = vmatprep.subr.mxu0 %v3156
  %3190 = vmatpush1.msra.mxu0 %v3155
  %3191 = vmatprep.subr.mxu0 0.0
  %3192 = vmatpush1.msra.mxu0 0.0
  %3193 = vmatprep.subr.mxu0 0.0
  %3194 = vmatpush1.msra.mxu0 0.0
  %3195 = vmatprep.subr.mxu0 0.0
  %3196 = vmatpush1.msra.mxu0 0.0
  %3197 = vmatprep.subr.mxu0 0.0
  %3198 = vmatpush1.msra.mxu0 0.0
  %3199 = vmatprep.subr.mxu0 0.0
  %3200 = vmatpush1.msra.mxu0 0.0
  %3201 = vmatprep.subr.mxu0 0.0
  %3202 = vmatpush1.msra.mxu0 0.0
  %3203 = vmatprep.subr.mxu0 0.0
  %3204 = vmatpush1.msra.mxu0 0.0
  %3205 = vmatprep.subr.mxu0 0.0
  %3206 = vmatpush1.msra.mxu0 0.0
  %3207 = vmatprep.subr.mxu0 0.0
  %3208 = vmatpush1.msra.mxu0 0.0
  %3209 = vmatprep.subr.mxu0 0.0
  %3210 = vmatpush1.msra.mxu0 0.0
  %3211 = vmatprep.subr.mxu0 0.0
  %3212 = vmatpush1.msra.mxu0 0.0
  %3213 = vmatprep.subr.mxu0 0.0
  %3214 = vmatpush1.msra.mxu0 0.0
  %3215 = vmatprep.subr.mxu0 0.0
  %3216 = vmatpush1.msra.mxu0 0.0
  %3217 = vmatprep.subr.mxu0 0.0
  %3218 = vmatpush1.msra.mxu0 0.0
  %3219 = vmatprep.subr.mxu0 0.0
  %3220 = vmatpush1.msra.mxu0 0.0
  %3221 = vmatprep.subr.mxu0 0.0
  %3222 = vmatpush1.msra.mxu0 0.0
  %3223 = vmatprep.mubr.f32.mxu0 0.0
  %3224 = vmatmul.mubr.f32.gmra.mrb[0].mxu0 %v3094
  %v3225 = vpop.f32.mrb[0].mxu0
  %v3226 = vadd.f32 0.0, %v3225
  %v3227 = vpop.f32.mrb[0].mxu0
  %v3228 = vadd.f32 0.0, %v3227
  %3229 = vdwg.mxu0
  %3230 = vmatprep.subr.mxu0 %v3098
  %3231 = vmatpush1.msra.mxu0 %v3097
  %3232 = vmatprep.subr.mxu0 %v3102
  %3233 = vmatpush1.msra.mxu0 %v3101
  %3234 = vmatprep.subr.mxu0 %v3106
  %3235 = vmatpush1.msra.mxu0 %v3105
  %3236 = vmatprep.subr.mxu0 %v3110
  %3237 = vmatpush1.msra.mxu0 %v3109
  %3238 = vmatprep.subr.mxu0 %v3114
  %3239 = vmatpush1.msra.mxu0 %v3113
  %3240 = vmatprep.subr.mxu0 %v3118
  %3241 = vmatpush1.msra.mxu0 %v3117
  %3242 = vmatprep.subr.mxu0 %v3122
  %3243 = vmatpush1.msra.mxu0 %v3121
  %3244 = vmatprep.subr.mxu0 %v3126
  %3245 = vmatpush1.msra.mxu0 %v3125
  %3246 = vmatprep.subr.mxu0 %v3130
  %3247 = vmatpush1.msra.mxu0 %v3129
  %3248 = vmatprep.subr.mxu0 %v3134
  %3249 = vmatpush1.msra.mxu0 %v3133
  %3250 = vmatprep.subr.mxu0 %v3138
  %3251 = vmatpush1.msra.mxu0 %v3137
  %3252 = vmatprep.subr.mxu0 %v3142
  %3253 = vmatpush1.msra.mxu0 %v3141
  %3254 = vmatprep.subr.mxu0 %v3146
  %3255 = vmatpush1.msra.mxu0 %v3145
  %3256 = vmatprep.subr.mxu0 %v3150
  %3257 = vmatpush1.msra.mxu0 %v3149
  %3258 = vmatprep.subr.mxu0 %v3154
  %3259 = vmatpush1.msra.mxu0 %v3153
  %3260 = vmatprep.subr.mxu0 %v3158
  %3261 = vmatpush1.msra.mxu0 %v3157
  %3262 = vmatprep.subr.mxu0 0.0
  %3263 = vmatpush1.msra.mxu0 0.0
  %3264 = vmatprep.subr.mxu0 0.0
  %3265 = vmatpush1.msra.mxu0 0.0
  %3266 = vmatprep.subr.mxu0 0.0
  %3267 = vmatpush1.msra.mxu0 0.0
  %3268 = vmatprep.subr.mxu0 0.0
  %3269 = vmatpush1.msra.mxu0 0.0
  %3270 = vmatprep.subr.mxu0 0.0
  %3271 = vmatpush1.msra.mxu0 0.0
  %3272 = vmatprep.subr.mxu0 0.0
  %3273 = vmatpush1.msra.mxu0 0.0
  %3274 = vmatprep.subr.mxu0 0.0
  %3275 = vmatpush1.msra.mxu0 0.0
  %3276 = vmatprep.subr.mxu0 0.0
  %3277 = vmatpush1.msra.mxu0 0.0
  %3278 = vmatprep.subr.mxu0 0.0
  %3279 = vmatpush1.msra.mxu0 0.0
  %3280 = vmatprep.subr.mxu0 0.0
  %3281 = vmatpush1.msra.mxu0 0.0
  %3282 = vmatprep.subr.mxu0 0.0
  %3283 = vmatpush1.msra.mxu0 0.0
  %3284 = vmatprep.subr.mxu0 0.0
  %3285 = vmatpush1.msra.mxu0 0.0
  %3286 = vmatprep.subr.mxu0 0.0
  %3287 = vmatpush1.msra.mxu0 0.0
  %3288 = vmatprep.subr.mxu0 0.0
  %3289 = vmatpush1.msra.mxu0 0.0
  %3290 = vmatprep.subr.mxu0 0.0
  %3291 = vmatpush1.msra.mxu0 0.0
  %3292 = vmatprep.subr.mxu0 0.0
  %3293 = vmatpush1.msra.mxu0 0.0
  %3294 = vmatprep.mubr.f32.mxu0 0.0
  %3295 = vmatmul.mubr.f32.gmra.mrb[0].mxu0 %v3094
  %v3296 = vpop.f32.mrb[0].mxu0
  %v3297 = vadd.f32 0.0, %v3296
  %v3298 = vpop.f32.mrb[0].mxu0
  %v3299 = vadd.f32 0.0, %v3298
  %3300 = vdwg.mxu0
  %v3301 = vadd.f32 %v3090, %v3226
  %v3302 = vadd.f32 %v3091, %v3228
  %v3303 = vadd.f32 %v3092, %v3297
  %v3304 = vadd.f32 %v3093, %v3299
  %v3305 = vxor.u32 %v3301, 2147483648
  %v3306 = vmul.f32 %v3305, 1.442695
  %v3307 = vpow.pop %v3306
  %v3308 = vadd.f32 %v3307, 1.0
  %v3309 = vrcp.pop %v3308
  %v3310 = vmul.f32 1.0, %v3309
  %v3311 = vxor.u32 %v3302, 2147483648
  %v3312 = vmul.f32 %v3311, 1.442695
  %v3313 = vpow.pop %v3312
  %v3314 = vadd.f32 %v3313, 1.0
  %v3315 = vrcp.pop %v3314
  %v3316 = vmul.f32 1.0, %v3315
  %v3317 = vtanh.pop %v3303
  %v3318 = vxor.u32 %v3304, 2147483648
  %v3319 = vmul.f32 %v3318, 1.442695
  %v3320 = vpow.pop %v3319
  %v3321 = vadd.f32 %v3320, 1.0
  %v3322 = vrcp.pop %v3321
  %v3323 = vmul.f32 1.0, %v3322
  %v3324 = vld [vmem:[#allocation6] sm:$0x3]
  %v3325 = vmul.f32 %v3316, %v3324
  %v3326 = vmul.f32 %v3310, %v3317
  %v3327 = vadd.f32 %v3325, %v3326
  %v3328 = vtanh.pop %v3327
  %v3329 = vmul.f32 %v3323, %v3328
  %3330 = vst [vmem:[#allocation6] sm:$0x3] %v3327
  %3331 = vst [vmem:[#allocation5] sm:$0x3] %v3329
  %3332 = vst [vmem:[#allocation3 + $0x8] sm:$0x3] %v3329
  %3333 = vst [vmem:[#allocation4 + $0x6] sm:$0x3] %v3329
  %v3334 = vld [vmem:[#allocation2 + $0x20] sm:$0xc]
  %v3335 = vld [vmem:[#allocation2 + $0x28] sm:$0xc]
  %v3336 = vld [vmem:[#allocation2 + $0x30] sm:$0xc]
  %v3337 = vld [vmem:[#allocation2 + $0x38] sm:$0xc]
  %v3338 = vld [vmem:[#allocation5] sm:$0x3]
  %v3339 = vld [vmem:[%s3] sm:$0xff]
  %v3340 = vld [vmem:[%s3 + $0x8] sm:$0xff]
  %v3341 = vld [vmem:[%s3 + $0x10] sm:$0xff]
  %v3342 = vld [vmem:[%s3 + $0x18] sm:$0xff]
  %v3343 = vld [vmem:[%s3 + $0x20] sm:$0xff]
  %v3344 = vld [vmem:[%s3 + $0x28] sm:$0xff]
  %v3345 = vld [vmem:[%s3 + $0x30] sm:$0xff]
  %v3346 = vld [vmem:[%s3 + $0x38] sm:$0xff]
  %v3347 = vld [vmem:[%s3 + $0x40] sm:$0xff]
  %v3348 = vld [vmem:[%s3 + $0x48] sm:$0xff]
  %v3349 = vld [vmem:[%s3 + $0x50] sm:$0xff]
  %v3350 = vld [vmem:[%s3 + $0x58] sm:$0xff]
  %v3351 = vld [vmem:[%s3 + $0x60] sm:$0xff]
  %v3352 = vld [vmem:[%s3 + $0x68] sm:$0xff]
  %v3353 = vld [vmem:[%s3 + $0x70] sm:$0xff]
  %v3354 = vld [vmem:[%s3 + $0x78] sm:$0xff]
  %v3355 = vld [vmem:[%s3 + $0x80] sm:$0xff]
  %v3356 = vld [vmem:[%s3 + $0x88] sm:$0xff]
  %v3357 = vld [vmem:[%s3 + $0x90] sm:$0xff]
  %v3358 = vld [vmem:[%s3 + $0x98] sm:$0xff]
  %v3359 = vld [vmem:[%s3 + $0xa0] sm:$0xff]
  %v3360 = vld [vmem:[%s3 + $0xa8] sm:$0xff]
  %v3361 = vld [vmem:[%s3 + $0xb0] sm:$0xff]
  %v3362 = vld [vmem:[%s3 + $0xb8] sm:$0xff]
  %v3363 = vld [vmem:[%s3 + $0xc0] sm:$0xff]
  %v3364 = vld [vmem:[%s3 + $0xc8] sm:$0xff]
  %v3365 = vld [vmem:[%s3 + $0xd0] sm:$0xff]
  %v3366 = vld [vmem:[%s3 + $0xd8] sm:$0xff]
  %v3367 = vld [vmem:[%s3 + $0xe0] sm:$0xff]
  %v3368 = vld [vmem:[%s3 + $0xe8] sm:$0xff]
  %v3369 = vld [vmem:[%s3 + $0xf0] sm:$0xff]
  %v3370 = vld [vmem:[%s3 + $0xf8] sm:$0xff]
  %v3371 = vld [vmem:[%s3 + $0x100] sm:$0xff]
  %v3372 = vld [vmem:[%s3 + $0x108] sm:$0xff]
  %v3373 = vld [vmem:[%s3 + $0x110] sm:$0xff]
  %v3374 = vld [vmem:[%s3 + $0x118] sm:$0xff]
  %v3375 = vld [vmem:[%s3 + $0x120] sm:$0xff]
  %v3376 = vld [vmem:[%s3 + $0x128] sm:$0xff]
  %v3377 = vld [vmem:[%s3 + $0x130] sm:$0xff]
  %v3378 = vld [vmem:[%s3 + $0x138] sm:$0xff]
  %v3379 = vld [vmem:[%s3 + $0x140] sm:$0xff]
  %v3380 = vld [vmem:[%s3 + $0x148] sm:$0xff]
  %v3381 = vld [vmem:[%s3 + $0x150] sm:$0xff]
  %v3382 = vld [vmem:[%s3 + $0x158] sm:$0xff]
  %v3383 = vld [vmem:[%s3 + $0x160] sm:$0xff]
  %v3384 = vld [vmem:[%s3 + $0x168] sm:$0xff]
  %v3385 = vld [vmem:[%s3 + $0x170] sm:$0xff]
  %v3386 = vld [vmem:[%s3 + $0x178] sm:$0xff]
  %v3387 = vld [vmem:[%s3 + $0x180] sm:$0xff]
  %v3388 = vld [vmem:[%s3 + $0x188] sm:$0xff]
  %v3389 = vld [vmem:[%s3 + $0x190] sm:$0xff]
  %v3390 = vld [vmem:[%s3 + $0x198] sm:$0xff]
  %v3391 = vld [vmem:[%s3 + $0x1a0] sm:$0xff]
  %v3392 = vld [vmem:[%s3 + $0x1a8] sm:$0xff]
  %v3393 = vld [vmem:[%s3 + $0x1b0] sm:$0xff]
  %v3394 = vld [vmem:[%s3 + $0x1b8] sm:$0xff]
  %v3395 = vld [vmem:[%s3 + $0x1c0] sm:$0xff]
  %v3396 = vld [vmem:[%s3 + $0x1c8] sm:$0xff]
  %v3397 = vld [vmem:[%s3 + $0x1d0] sm:$0xff]
  %v3398 = vld [vmem:[%s3 + $0x1d8] sm:$0xff]
  %v3399 = vld [vmem:[%s3 + $0x1e0] sm:$0xff]
  %v3400 = vld [vmem:[%s3 + $0x1e8] sm:$0xff]
  %v3401 = vld [vmem:[%s3 + $0x1f0] sm:$0xff]
  %v3402 = vld [vmem:[%s3 + $0x1f8] sm:$0xff]
  %3403 = vmatprep.subr.mxu0 %v3340
  %3404 = vmatpush1.msra.mxu0 %v3339
  %3405 = vmatprep.subr.mxu0 %v3344
  %3406 = vmatpush1.msra.mxu0 %v3343
  %3407 = vmatprep.subr.mxu0 %v3348
  %3408 = vmatpush1.msra.mxu0 %v3347
  %3409 = vmatprep.subr.mxu0 %v3352
  %3410 = vmatpush1.msra.mxu0 %v3351
  %3411 = vmatprep.subr.mxu0 %v3356
  %3412 = vmatpush1.msra.mxu0 %v3355
  %3413 = vmatprep.subr.mxu0 %v3360
  %3414 = vmatpush1.msra.mxu0 %v3359
  %3415 = vmatprep.subr.mxu0 %v3364
  %3416 = vmatpush1.msra.mxu0 %v3363
  %3417 = vmatprep.subr.mxu0 %v3368
  %3418 = vmatpush1.msra.mxu0 %v3367
  %3419 = vmatprep.subr.mxu0 %v3372
  %3420 = vmatpush1.msra.mxu0 %v3371
  %3421 = vmatprep.subr.mxu0 %v3376
  %3422 = vmatpush1.msra.mxu0 %v3375
  %3423 = vmatprep.subr.mxu0 %v3380
  %3424 = vmatpush1.msra.mxu0 %v3379
  %3425 = vmatprep.subr.mxu0 %v3384
  %3426 = vmatpush1.msra.mxu0 %v3383
  %3427 = vmatprep.subr.mxu0 %v3388
  %3428 = vmatpush1.msra.mxu0 %v3387
  %3429 = vmatprep.subr.mxu0 %v3392
  %3430 = vmatpush1.msra.mxu0 %v3391
  %3431 = vmatprep.subr.mxu0 %v3396
  %3432 = vmatpush1.msra.mxu0 %v3395
  %3433 = vmatprep.subr.mxu0 %v3400
  %3434 = vmatpush1.msra.mxu0 %v3399
  %3435 = vmatprep.subr.mxu0 0.0
  %3436 = vmatpush1.msra.mxu0 0.0
  %3437 = vmatprep.subr.mxu0 0.0
  %3438 = vmatpush1.msra.mxu0 0.0
  %3439 = vmatprep.subr.mxu0 0.0
  %3440 = vmatpush1.msra.mxu0 0.0
  %3441 = vmatprep.subr.mxu0 0.0
  %3442 = vmatpush1.msra.mxu0 0.0
  %3443 = vmatprep.subr.mxu0 0.0
  %3444 = vmatpush1.msra.mxu0 0.0
  %3445 = vmatprep.subr.mxu0 0.0
  %3446 = vmatpush1.msra.mxu0 0.0
  %3447 = vmatprep.subr.mxu0 0.0
  %3448 = vmatpush1.msra.mxu0 0.0
  %3449 = vmatprep.subr.mxu0 0.0
  %3450 = vmatpush1.msra.mxu0 0.0
  %3451 = vmatprep.subr.mxu0 0.0
  %3452 = vmatpush1.msra.mxu0 0.0
  %3453 = vmatprep.subr.mxu0 0.0
  %3454 = vmatpush1.msra.mxu0 0.0
  %3455 = vmatprep.subr.mxu0 0.0
  %3456 = vmatpush1.msra.mxu0 0.0
  %3457 = vmatprep.subr.mxu0 0.0
  %3458 = vmatpush1.msra.mxu0 0.0
  %3459 = vmatprep.subr.mxu0 0.0
  %3460 = vmatpush1.msra.mxu0 0.0
  %3461 = vmatprep.subr.mxu0 0.0
  %3462 = vmatpush1.msra.mxu0 0.0
  %3463 = vmatprep.subr.mxu0 0.0
  %3464 = vmatpush1.msra.mxu0 0.0
  %3465 = vmatprep.subr.mxu0 0.0
  %3466 = vmatpush1.msra.mxu0 0.0
  %3467 = vmatprep.mubr.f32.mxu0 0.0
  %3468 = vmatmul.mubr.f32.gmra.mrb[0].mxu0 %v3338
  %v3469 = vpop.f32.mrb[0].mxu0
  %v3470 = vadd.f32 0.0, %v3469
  %v3471 = vpop.f32.mrb[0].mxu0
  %v3472 = vadd.f32 0.0, %v3471
  %3473 = vdwg.mxu0
  %3474 = vmatprep.subr.mxu0 %v3342
  %3475 = vmatpush1.msra.mxu0 %v3341
  %3476 = vmatprep.subr.mxu0 %v3346
  %3477 = vmatpush1.msra.mxu0 %v3345
  %3478 = vmatprep.subr.mxu0 %v3350
  %3479 = vmatpush1.msra.mxu0 %v3349
  %3480 = vmatprep.subr.mxu0 %v3354
  %3481 = vmatpush1.msra.mxu0 %v3353
  %3482 = vmatprep.subr.mxu0 %v3358
  %3483 = vmatpush1.msra.mxu0 %v3357
  %3484 = vmatprep.subr.mxu0 %v3362
  %3485 = vmatpush1.msra.mxu0 %v3361
  %3486 = vmatprep.subr.mxu0 %v3366
  %3487 = vmatpush1.msra.mxu0 %v3365
  %3488 = vmatprep.subr.mxu0 %v3370
  %3489 = vmatpush1.msra.mxu0 %v3369
  %3490 = vmatprep.subr.mxu0 %v3374
  %3491 = vmatpush1.msra.mxu0 %v3373
  %3492 = vmatprep.subr.mxu0 %v3378
  %3493 = vmatpush1.msra.mxu0 %v3377
  %3494 = vmatprep.subr.mxu0 %v3382
  %3495 = vmatpush1.msra.mxu0 %v3381
  %3496 = vmatprep.subr.mxu0 %v3386
  %3497 = vmatpush1.msra.mxu0 %v3385
  %3498 = vmatprep.subr.mxu0 %v3390
  %3499 = vmatpush1.msra.mxu0 %v3389
  %3500 = vmatprep.subr.mxu0 %v3394
  %3501 = vmatpush1.msra.mxu0 %v3393
  %3502 = vmatprep.subr.mxu0 %v3398
  %3503 = vmatpush1.msra.mxu0 %v3397
  %3504 = vmatprep.subr.mxu0 %v3402
  %3505 = vmatpush1.msra.mxu0 %v3401
  %3506 = vmatprep.subr.mxu0 0.0
  %3507 = vmatpush1.msra.mxu0 0.0
  %3508 = vmatprep.subr.mxu0 0.0
  %3509 = vmatpush1.msra.mxu0 0.0
  %3510 = vmatprep.subr.mxu0 0.0
  %3511 = vmatpush1.msra.mxu0 0.0
  %3512 = vmatprep.subr.mxu0 0.0
  %3513 = vmatpush1.msra.mxu0 0.0
  %3514 = vmatprep.subr.mxu0 0.0
  %3515 = vmatpush1.msra.mxu0 0.0
  %3516 = vmatprep.subr.mxu0 0.0
  %3517 = vmatpush1.msra.mxu0 0.0
  %3518 = vmatprep.subr.mxu0 0.0
  %3519 = vmatpush1.msra.mxu0 0.0
  %3520 = vmatprep.subr.mxu0 0.0
  %3521 = vmatpush1.msra.mxu0 0.0
  %3522 = vmatprep.subr.mxu0 0.0
  %3523 = vmatpush1.msra.mxu0 0.0
  %3524 = vmatprep.subr.mxu0 0.0
  %3525 = vmatpush1.msra.mxu0 0.0
  %3526 = vmatprep.subr.mxu0 0.0
  %3527 = vmatpush1.msra.mxu0 0.0
  %3528 = vmatprep.subr.mxu0 0.0
  %3529 = vmatpush1.msra.mxu0 0.0
  %3530 = vmatprep.subr.mxu0 0.0
  %3531 = vmatpush1.msra.mxu0 0.0
  %3532 = vmatprep.subr.mxu0 0.0
  %3533 = vmatpush1.msra.mxu0 0.0
  %3534 = vmatprep.subr.mxu0 0.0
  %3535 = vmatpush1.msra.mxu0 0.0
  %3536 = vmatprep.subr.mxu0 0.0
  %3537 = vmatpush1.msra.mxu0 0.0
  %3538 = vmatprep.mubr.f32.mxu0 0.0
  %3539 = vmatmul.mubr.f32.gmra.mrb[0].mxu0 %v3338
  %v3540 = vpop.f32.mrb[0].mxu0
  %v3541 = vadd.f32 0.0, %v3540
  %v3542 = vpop.f32.mrb[0].mxu0
  %v3543 = vadd.f32 0.0, %v3542
  %3544 = vdwg.mxu0
  %v3549 = vrot.slane %v3470, 6
  %v3550 = vrot.slane %v3472, 6
  %v3551 = vrot.slane %v3541, 6
  %v3552 = vrot.slane %v3543, 6
  %v3557 = vadd.f32 %v3334, %v3549
  %v3558 = vadd.f32 %v3335, %v3550
  %v3559 = vadd.f32 %v3336, %v3551
  %v3560 = vadd.f32 %v3337, %v3552
  %v3561 = vxor.u32 %v3557, 2147483648
  %v3562 = vmul.f32 %v3561, 1.442695
  %v3563 = vpow.pop %v3562
  %v3564 = vadd.f32 %v3563, 1.0
  %v3565 = vrcp.pop %v3564
  %v3566 = vmul.f32 1.0, %v3565
  %v3567 = vxor.u32 %v3558, 2147483648
  %v3568 = vmul.f32 %v3567, 1.442695
  %v3569 = vpow.pop %v3568
  %v3570 = vadd.f32 %v3569, 1.0
  %v3571 = vrcp.pop %v3570
  %v3572 = vmul.f32 1.0, %v3571
  %v3573 = vtanh.pop %v3559
  %v3574 = vxor.u32 %v3560, 2147483648
  %v3575 = vmul.f32 %v3574, 1.442695
  %v3576 = vpow.pop %v3575
  %v3577 = vadd.f32 %v3576, 1.0
  %v3578 = vrcp.pop %v3577
  %v3579 = vmul.f32 1.0, %v3578
  %v3580 = vld [vmem:[#allocation6] sm:$0x3]
  %v3582 = vrot.slane %v3580, 6
  %v3584 = vmul.f32 %v3572, %v3582
  %v3585 = vmul.f32 %v3566, %v3573
  %v3586 = vadd.f32 %v3584, %v3585
  %v3587 = vtanh.pop %v3586
  %v3588 = vmul.f32 %v3579, %v3587
  %3589 = vst [vmem:[#allocation6 - $0x2] sm:$0xc] %v3586
  %3590 = vst [vmem:[#allocation5 - $0x2] sm:$0xc] %v3588
  %3591 = vst [vmem:[#allocation3 + $0x8] sm:$0xc] %v3588
  %3592 = vst [vmem:[#allocation4 + $0x2] sm:$0xc] %v3588
  %v3593 = vld [vmem:[#allocation2 + $0x20] sm:$0x30]
  %v3594 = vld [vmem:[#allocation2 + $0x28] sm:$0x30]
  %v3595 = vld [vmem:[#allocation2 + $0x30] sm:$0x30]
  %v3596 = vld [vmem:[#allocation2 + $0x38] sm:$0x30]
  %v3597 = vld [vmem:[#allocation5] sm:$0x3]
  %v3598 = vld [vmem:[%s3] sm:$0xff]
  %v3599 = vld [vmem:[%s3 + $0x8] sm:$0xff]
  %v3600 = vld [vmem:[%s3 + $0x10] sm:$0xff]
  %v3601 = vld [vmem:[%s3 + $0x18] sm:$0xff]
  %v3602 = vld [vmem:[%s3 + $0x20] sm:$0xff]
  %v3603 = vld [vmem:[%s3 + $0x28] sm:$0xff]
  %v3604 = vld [vmem:[%s3 + $0x30] sm:$0xff]
  %v3605 = vld [vmem:[%s3 + $0x38] sm:$0xff]
  %v3606 = vld [vmem:[%s3 + $0x40] sm:$0xff]
  %v3607 = vld [vmem:[%s3 + $0x48] sm:$0xff]
  %v3608 = vld [vmem:[%s3 + $0x50] sm:$0xff]
  %v3609 = vld [vmem:[%s3 + $0x58] sm:$0xff]
  %v3610 = vld [vmem:[%s3 + $0x60] sm:$0xff]
  %v3611 = vld [vmem:[%s3 + $0x68] sm:$0xff]
  %v3612 = vld [vmem:[%s3 + $0x70] sm:$0xff]
  %v3613 = vld [vmem:[%s3 + $0x78] sm:$0xff]
  %v3614 = vld [vmem:[%s3 + $0x80] sm:$0xff]
  %v3615 = vld [vmem:[%s3 + $0x88] sm:$0xff]
  %v3616 = vld [vmem:[%s3 + $0x90] sm:$0xff]
  %v3617 = vld [vmem:[%s3 + $0x98] sm:$0xff]
  %v3618 = vld [vmem:[%s3 + $0xa0] sm:$0xff]
  %v3619 = vld [vmem:[%s3 + $0xa8] sm:$0xff]
  %v3620 = vld [vmem:[%s3 + $0xb0] sm:$0xff]
  %v3621 = vld [vmem:[%s3 + $0xb8] sm:$0xff]
  %v3622 = vld [vmem:[%s3 + $0xc0] sm:$0xff]
  %v3623 = vld [vmem:[%s3 + $0xc8] sm:$0xff]
  %v3624 = vld [vmem:[%s3 + $0xd0] sm:$0xff]
  %v3625 = vld [vmem:[%s3 + $0xd8] sm:$0xff]
  %v3626 = vld [vmem:[%s3 + $0xe0] sm:$0xff]
  %v3627 = vld [vmem:[%s3 + $0xe8] sm:$0xff]
  %v3628 = vld [vmem:[%s3 + $0xf0] sm:$0xff]
  %v3629 = vld [vmem:[%s3 + $0xf8] sm:$0xff]
  %v3630 = vld [vmem:[%s3 + $0x100] sm:$0xff]
  %v3631 = vld [vmem:[%s3 + $0x108] sm:$0xff]
  %v3632 = vld [vmem:[%s3 + $0x110] sm:$0xff]
  %v3633 = vld [vmem:[%s3 + $0x118] sm:$0xff]
  %v3634 = vld [vmem:[%s3 + $0x120] sm:$0xff]
  %v3635 = vld [vmem:[%s3 + $0x128] sm:$0xff]
  %v3636 = vld [vmem:[%s3 + $0x130] sm:$0xff]
  %v3637 = vld [vmem:[%s3 + $0x138] sm:$0xff]
  %v3638 = vld [vmem:[%s3 + $0x140] sm:$0xff]
  %v3639 = vld [vmem:[%s3 + $0x148] sm:$0xff]
  %v3640 = vld [vmem:[%s3 + $0x150] sm:$0xff]
  %v3641 = vld [vmem:[%s3 + $0x158] sm:$0xff]
  %v3642 = vld [vmem:[%s3 + $0x160] sm:$0xff]
  %v3643 = vld [vmem:[%s3 + $0x168] sm:$0xff]
  %v3644 = vld [vmem:[%s3 + $0x170] sm:$0xff]
  %v3645 = vld [vmem:[%s3 + $0x178] sm:$0xff]
  %v3646 = vld [vmem:[%s3 + $0x180] sm:$0xff]
  %v3647 = vld [vmem:[%s3 + $0x188] sm:$0xff]
  %v3648 = vld [vmem:[%s3 + $0x190] sm:$0xff]
  %v3649 = vld [vmem:[%s3 + $0x198] sm:$0xff]
  %v3650 = vld [vmem:[%s3 + $0x1a0] sm:$0xff]
  %v3651 = vld [vmem:[%s3 + $0x1a8] sm:$0xff]
  %v3652 = vld [vmem:[%s3 + $0x1b0] sm:$0xff]
  %v3653 = vld [vmem:[%s3 + $0x1b8] sm:$0xff]
  %v3654 = vld [vmem:[%s3 + $0x1c0] sm:$0xff]
  %v3655 = vld [vmem:[%s3 + $0x1c8] sm:$0xff]
  %v3656 = vld [vmem:[%s3 + $0x1d0] sm:$0xff]
  %v3657 = vld [vmem:[%s3 + $0x1d8] sm:$0xff]
  %v3658 = vld [vmem:[%s3 + $0x1e0] sm:$0xff]
  %v3659 = vld [vmem:[%s3 + $0x1e8] sm:$0xff]
  %v3660 = vld [vmem:[%s3 + $0x1f0] sm:$0xff]
  %v3661 = vld [vmem:[%s3 + $0x1f8] sm:$0xff]
  %3662 = vmatprep.subr.mxu0 %v3599
  %3663 = vmatpush1.msra.mxu0 %v3598
  %3664 = vmatprep.subr.mxu0 %v3603
  %3665 = vmatpush1.msra.mxu0 %v3602
  %3666 = vmatprep.subr.mxu0 %v3607
  %3667 = vmatpush1.msra.mxu0 %v3606
  %3668 = vmatprep.subr.mxu0 %v3611
  %3669 = vmatpush1.msra.mxu0 %v3610
  %3670 = vmatprep.subr.mxu0 %v3615
  %3671 = vmatpush1.msra.mxu0 %v3614
  %3672 = vmatprep.subr.mxu0 %v3619
  %3673 = vmatpush1.msra.mxu0 %v3618
  %3674 = vmatprep.subr.mxu0 %v3623
  %3675 = vmatpush1.msra.mxu0 %v3622
  %3676 = vmatprep.subr.mxu0 %v3627
  %3677 = vmatpush1.msra.mxu0 %v3626
  %3678 = vmatprep.subr.mxu0 %v3631
  %3679 = vmatpush1.msra.mxu0 %v3630
  %3680 = vmatprep.subr.mxu0 %v3635
  %3681 = vmatpush1.msra.mxu0 %v3634
  %3682 = vmatprep.subr.mxu0 %v3639
  %3683 = vmatpush1.msra.mxu0 %v3638
  %3684 = vmatprep.subr.mxu0 %v3643
  %3685 = vmatpush1.msra.mxu0 %v3642
  %3686 = vmatprep.subr.mxu0 %v3647
  %3687 = vmatpush1.msra.mxu0 %v3646
  %3688 = vmatprep.subr.mxu0 %v3651
  %3689 = vmatpush1.msra.mxu0 %v3650
  %3690 = vmatprep.subr.mxu0 %v3655
  %3691 = vmatpush1.msra.mxu0 %v3654
  %3692 = vmatprep.subr.mxu0 %v3659
  %3693 = vmatpush1.msra.mxu0 %v3658
  %3694 = vmatprep.subr.mxu0 0.0
  %3695 = vmatpush1.msra.mxu0 0.0
  %3696 = vmatprep.subr.mxu0 0.0
  %3697 = vmatpush1.msra.mxu0 0.0
  %3698 = vmatprep.subr.mxu0 0.0
  %3699 = vmatpush1.msra.mxu0 0.0
  %3700 = vmatprep.subr.mxu0 0.0
  %3701 = vmatpush1.msra.mxu0 0.0
  %3702 = vmatprep.subr.mxu0 0.0
  %3703 = vmatpush1.msra.mxu0 0.0
  %3704 = vmatprep.subr.mxu0 0.0
  %3705 = vmatpush1.msra.mxu0 0.0
  %3706 = vmatprep.subr.mxu0 0.0
  %3707 = vmatpush1.msra.mxu0 0.0
  %3708 = vmatprep.subr.mxu0 0.0
  %3709 = vmatpush1.msra.mxu0 0.0
  %3710 = vmatprep.subr.mxu0 0.0
  %3711 = vmatpush1.msra.mxu0 0.0
  %3712 = vmatprep.subr.mxu0 0.0
  %3713 = vmatpush1.msra.mxu0 0.0
  %3714 = vmatprep.subr.mxu0 0.0
  %3715 = vmatpush1.msra.mxu0 0.0
  %3716 = vmatprep.subr.mxu0 0.0
  %3717 = vmatpush1.msra.mxu0 0.0
  %3718 = vmatprep.subr.mxu0 0.0
  %3719 = vmatpush1.msra.mxu0 0.0
  %3720 = vmatprep.subr.mxu0 0.0
  %3721 = vmatpush1.msra.mxu0 0.0
  %3722 = vmatprep.subr.mxu0 0.0
  %3723 = vmatpush1.msra.mxu0 0.0
  %3724 = vmatprep.subr.mxu0 0.0
  %3725 = vmatpush1.msra.mxu0 0.0
  %3726 = vmatprep.mubr.f32.mxu0 0.0
  %3727 = vmatmul.mubr.f32.gmra.mrb[0].mxu0 %v3597
  %v3728 = vpop.f32.mrb[0].mxu0
  %v3729 = vadd.f32 0.0, %v3728
  %v3730 = vpop.f32.mrb[0].mxu0
  %v3731 = vadd.f32 0.0, %v3730
  %3732 = vdwg.mxu0
  %3733 = vmatprep.subr.mxu0 %v3601
  %3734 = vmatpush1.msra.mxu0 %v3600
  %3735 = vmatprep.subr.mxu0 %v3605
  %3736 = vmatpush1.msra.mxu0 %v3604
  %3737 = vmatprep.subr.mxu0 %v3609
  %3738 = vmatpush1.msra.mxu0 %v3608
  %3739 = vmatprep.subr.mxu0 %v3613
  %3740 = vmatpush1.msra.mxu0 %v3612
  %3741 = vmatprep.subr.mxu0 %v3617
  %3742 = vmatpush1.msra.mxu0 %v3616
  %3743 = vmatprep.subr.mxu0 %v3621
  %3744 = vmatpush1.msra.mxu0 %v3620
  %3745 = vmatprep.subr.mxu0 %v3625
  %3746 = vmatpush1.msra.mxu0 %v3624
  %3747 = vmatprep.subr.mxu0 %v3629
  %3748 = vmatpush1.msra.mxu0 %v3628
  %3749 = vmatprep.subr.mxu0 %v3633
  %3750 = vmatpush1.msra.mxu0 %v3632
  %3751 = vmatprep.subr.mxu0 %v3637
  %3752 = vmatpush1.msra.mxu0 %v3636
  %3753 = vmatprep.subr.mxu0 %v3641
  %3754 = vmatpush1.msra.mxu0 %v3640
  %3755 = vmatprep.subr.mxu0 %v3645
  %3756 = vmatpush1.msra.mxu0 %v3644
  %3757 = vmatprep.subr.mxu0 %v3649
  %3758 = vmatpush1.msra.mxu0 %v3648
  %3759 = vmatprep.subr.mxu0 %v3653
  %3760 = vmatpush1.msra.mxu0 %v3652
  %3761 = vmatprep.subr.mxu0 %v3657
  %3762 = vmatpush1.msra.mxu0 %v3656
  %3763 = vmatprep.subr.mxu0 %v3661
  %3764 = vmatpush1.msra.mxu0 %v3660
  %3765 = vmatprep.subr.mxu0 0.0
  %3766 = vmatpush1.msra.mxu0 0.0
  %3767 = vmatprep.subr.mxu0 0.0
  %3768 = vmatpush1.msra.mxu0 0.0
  %3769 = vmatprep.subr.mxu0 0.0
  %3770 = vmatpush1.msra.mxu0 0.0
  %3771 = vmatprep.subr.mxu0 0.0
  %3772 = vmatpush1.msra.mxu0 0.0
  %3773 = vmatprep.subr.mxu0 0.0
  %3774 = vmatpush1.msra.mxu0 0.0
  %3775 = vmatprep.subr.mxu0 0.0
  %3776 = vmatpush1.msra.mxu0 0.0
  %3777 = vmatprep.subr.mxu0 0.0
  %3778 = vmatpush1.msra.mxu0 0.0
  %3779 = vmatprep.subr.mxu0 0.0
  %3780 = vmatpush1.msra.mxu0 0.0
  %3781 = vmatprep.subr.mxu0 0.0
  %3782 = vmatpush1.msra.mxu0 0.0
  %3783 = vmatprep.subr.mxu0 0.0
  %3784 = vmatpush1.msra.mxu0 0.0
  %3785 = vmatprep.subr.mxu0 0.0
  %3786 = vmatpush1.msra.mxu0 0.0
  %3787 = vmatprep.subr.mxu0 0.0
  %3788 = vmatpush1.msra.mxu0 0.0
  %3789 = vmatprep.subr.mxu0 0.0
  %3790 = vmatpush1.msra.mxu0 0.0
  %3791 = vmatprep.subr.mxu0 0.0
  %3792 = vmatpush1.msra.mxu0 0.0
  %3793 = vmatprep.subr.mxu0 0.0
  %3794 = vmatpush1.msra.mxu0 0.0
  %3795 = vmatprep.subr.mxu0 0.0
  %3796 = vmatpush1.msra.mxu0 0.0
  %3797 = vmatprep.mubr.f32.mxu0 0.0
  %3798 = vmatmul.mubr.f32.gmra.mrb[0].mxu0 %v3597
  %v3799 = vpop.f32.mrb[0].mxu0
  %v3800 = vadd.f32 0.0, %v3799
  %v3801 = vpop.f32.mrb[0].mxu0
  %v3802 = vadd.f32 0.0, %v3801
  %3803 = vdwg.mxu0
  %v3808 = vrot.slane %v3729, 4
  %v3809 = vrot.slane %v3731, 4
  %v3810 = vrot.slane %v3800, 4
  %v3811 = vrot.slane %v3802, 4
  %v3816 = vadd.f32 %v3593, %v3808
  %v3817 = vadd.f32 %v3594, %v3809
  %v3818 = vadd.f32 %v3595, %v3810
  %v3819 = vadd.f32 %v3596, %v3811
  %v3820 = vxor.u32 %v3816, 2147483648
  %v3821 = vmul.f32 %v3820, 1.442695
  %v3822 = vpow.pop %v3821
  %v3823 = vadd.f32 %v3822, 1.0
  %v3824 = vrcp.pop %v3823
  %v3825 = vmul.f32 1.0, %v3824
  %v3826 = vxor.u32 %v3817, 2147483648
  %v3827 = vmul.f32 %v3826, 1.442695
  %v3828 = vpow.pop %v3827
  %v3829 = vadd.f32 %v3828, 1.0
  %v3830 = vrcp.pop %v3829
  %v3831 = vmul.f32 1.0, %v3830
  %v3832 = vtanh.pop %v3818
  %v3833 = vxor.u32 %v3819, 2147483648
  %v3834 = vmul.f32 %v3833, 1.442695
  %v3835 = vpow.pop %v3834
  %v3836 = vadd.f32 %v3835, 1.0
  %v3837 = vrcp.pop %v3836
  %v3838 = vmul.f32 1.0, %v3837
  %v3839 = vld [vmem:[#allocation6] sm:$0x3]
  %v3841 = vrot.slane %v3839, 4
  %v3843 = vmul.f32 %v3831, %v3841
  %v3844 = vmul.f32 %v3825, %v3832
  %v3845 = vadd.f32 %v3843, %v3844
  %v3846 = vtanh.pop %v3845
  %v3847 = vmul.f32 %v3838, %v3846
  %3848 = vst [vmem:[#allocation6 - $0x4] sm:$0x30] %v3845
  %3849 = vst [vmem:[#allocation5 - $0x4] sm:$0x30] %v3847
  %3850 = vst [vmem:[#allocation3 + $0x8] sm:$0x30] %v3847
  %3851 = vst [vmem:[#allocation4 - $0x2] sm:$0x30] %v3847
  %v3852 = vld [vmem:[#allocation2 + $0x20] sm:$0xc0]
  %v3853 = vld [vmem:[#allocation2 + $0x28] sm:$0xc0]
  %v3854 = vld [vmem:[#allocation2 + $0x30] sm:$0xc0]
  %v3855 = vld [vmem:[#allocation2 + $0x38] sm:$0xc0]
  %v3856 = vld [vmem:[#allocation5] sm:$0x3]
  %v3857 = vld [vmem:[%s3] sm:$0xff]
  %v3858 = vld [vmem:[%s3 + $0x8] sm:$0xff]
  %v3859 = vld [vmem:[%s3 + $0x10] sm:$0xff]
  %v3860 = vld [vmem:[%s3 + $0x18] sm:$0xff]
  %v3861 = vld [vmem:[%s3 + $0x20] sm:$0xff]
  %v3862 = vld [vmem:[%s3 + $0x28] sm:$0xff]
  %v3863 = vld [vmem:[%s3 + $0x30] sm:$0xff]
  %v3864 = vld [vmem:[%s3 + $0x38] sm:$0xff]
  %v3865 = vld [vmem:[%s3 + $0x40] sm:$0xff]
  %v3866 = vld [vmem:[%s3 + $0x48] sm:$0xff]
  %v3867 = vld [vmem:[%s3 + $0x50] sm:$0xff]
  %v3868 = vld [vmem:[%s3 + $0x58] sm:$0xff]
  %v3869 = vld [vmem:[%s3 + $0x60] sm:$0xff]
  %v3870 = vld [vmem:[%s3 + $0x68] sm:$0xff]
  %v3871 = vld [vmem:[%s3 + $0x70] sm:$0xff]
  %v3872 = vld [vmem:[%s3 + $0x78] sm:$0xff]
  %v3873 = vld [vmem:[%s3 + $0x80] sm:$0xff]
  %v3874 = vld [vmem:[%s3 + $0x88] sm:$0xff]
  %v3875 = vld [vmem:[%s3 + $0x90] sm:$0xff]
  %v3876 = vld [vmem:[%s3 + $0x98] sm:$0xff]
  %v3877 = vld [vmem:[%s3 + $0xa0] sm:$0xff]
  %v3878 = vld [vmem:[%s3 + $0xa8] sm:$0xff]
  %v3879 = vld [vmem:[%s3 + $0xb0] sm:$0xff]
  %v3880 = vld [vmem:[%s3 + $0xb8] sm:$0xff]
  %v3881 = vld [vmem:[%s3 + $0xc0] sm:$0xff]
  %v3882 = vld [vmem:[%s3 + $0xc8] sm:$0xff]
  %v3883 = vld [vmem:[%s3 + $0xd0] sm:$0xff]
  %v3884 = vld [vmem:[%s3 + $0xd8] sm:$0xff]
  %v3885 = vld [vmem:[%s3 + $0xe0] sm:$0xff]
  %v3886 = vld [vmem:[%s3 + $0xe8] sm:$0xff]
  %v3887 = vld [vmem:[%s3 + $0xf0] sm:$0xff]
  %v3888 = vld [vmem:[%s3 + $0xf8] sm:$0xff]
  %v3889 = vld [vmem:[%s3 + $0x100] sm:$0xff]
  %v3890 = vld [vmem:[%s3 + $0x108] sm:$0xff]
  %v3891 = vld [vmem:[%s3 + $0x110] sm:$0xff]
  %v3892 = vld [vmem:[%s3 + $0x118] sm:$0xff]
  %v3893 = vld [vmem:[%s3 + $0x120] sm:$0xff]
  %v3894 = vld [vmem:[%s3 + $0x128] sm:$0xff]
  %v3895 = vld [vmem:[%s3 + $0x130] sm:$0xff]
  %v3896 = vld [vmem:[%s3 + $0x138] sm:$0xff]
  %v3897 = vld [vmem:[%s3 + $0x140] sm:$0xff]
  %v3898 = vld [vmem:[%s3 + $0x148] sm:$0xff]
  %v3899 = vld [vmem:[%s3 + $0x150] sm:$0xff]
  %v3900 = vld [vmem:[%s3 + $0x158] sm:$0xff]
  %v3901 = vld [vmem:[%s3 + $0x160] sm:$0xff]
  %v3902 = vld [vmem:[%s3 + $0x168] sm:$0xff]
  %v3903 = vld [vmem:[%s3 + $0x170] sm:$0xff]
  %v3904 = vld [vmem:[%s3 + $0x178] sm:$0xff]
  %v3905 = vld [vmem:[%s3 + $0x180] sm:$0xff]
  %v3906 = vld [vmem:[%s3 + $0x188] sm:$0xff]
  %v3907 = vld [vmem:[%s3 + $0x190] sm:$0xff]
  %v3908 = vld [vmem:[%s3 + $0x198] sm:$0xff]
  %v3909 = vld [vmem:[%s3 + $0x1a0] sm:$0xff]
  %v3910 = vld [vmem:[%s3 + $0x1a8] sm:$0xff]
  %v3911 = vld [vmem:[%s3 + $0x1b0] sm:$0xff]
  %v3912 = vld [vmem:[%s3 + $0x1b8] sm:$0xff]
  %v3913 = vld [vmem:[%s3 + $0x1c0] sm:$0xff]
  %v3914 = vld [vmem:[%s3 + $0x1c8] sm:$0xff]
  %v3915 = vld [vmem:[%s3 + $0x1d0] sm:$0xff]
  %v3916 = vld [vmem:[%s3 + $0x1d8] sm:$0xff]
  %v3917 = vld [vmem:[%s3 + $0x1e0] sm:$0xff]
  %v3918 = vld [vmem:[%s3 + $0x1e8] sm:$0xff]
  %v3919 = vld [vmem:[%s3 + $0x1f0] sm:$0xff]
  %v3920 = vld [vmem:[%s3 + $0x1f8] sm:$0xff]
  %3921 = vmatprep.subr.mxu0 %v3858
  %3922 = vmatpush1.msra.mxu0 %v3857
  %3923 = vmatprep.subr.mxu0 %v3862
  %3924 = vmatpush1.msra.mxu0 %v3861
  %3925 = vmatprep.subr.mxu0 %v3866
  %3926 = vmatpush1.msra.mxu0 %v3865
  %3927 = vmatprep.subr.mxu0 %v3870
  %3928 = vmatpush1.msra.mxu0 %v3869
  %3929 = vmatprep.subr.mxu0 %v3874
  %3930 = vmatpush1.msra.mxu0 %v3873
  %3931 = vmatprep.subr.mxu0 %v3878
  %3932 = vmatpush1.msra.mxu0 %v3877
  %3933 = vmatprep.subr.mxu0 %v3882
  %3934 = vmatpush1.msra.mxu0 %v3881
  %3935 = vmatprep.subr.mxu0 %v3886
  %3936 = vmatpush1.msra.mxu0 %v3885
  %3937 = vmatprep.subr.mxu0 %v3890
  %3938 = vmatpush1.msra.mxu0 %v3889
  %3939 = vmatprep.subr.mxu0 %v3894
  %3940 = vmatpush1.msra.mxu0 %v3893
  %3941 = vmatprep.subr.mxu0 %v3898
  %3942 = vmatpush1.msra.mxu0 %v3897
  %3943 = vmatprep.subr.mxu0 %v3902
  %3944 = vmatpush1.msra.mxu0 %v3901
  %3945 = vmatprep.subr.mxu0 %v3906
  %3946 = vmatpush1.msra.mxu0 %v3905
  %3947 = vmatprep.subr.mxu0 %v3910
  %3948 = vmatpush1.msra.mxu0 %v3909
  %3949 = vmatprep.subr.mxu0 %v3914
  %3950 = vmatpush1.msra.mxu0 %v3913
  %3951 = vmatprep.subr.mxu0 %v3918
  %3952 = vmatpush1.msra.mxu0 %v3917
  %3953 = vmatprep.subr.mxu0 0.0
  %3954 = vmatpush1.msra.mxu0 0.0
  %3955 = vmatprep.subr.mxu0 0.0
  %3956 = vmatpush1.msra.mxu0 0.0
  %3957 = vmatprep.subr.mxu0 0.0
  %3958 = vmatpush1.msra.mxu0 0.0
  %3959 = vmatprep.subr.mxu0 0.0
  %3960 = vmatpush1.msra.mxu0 0.0
  %3961 = vmatprep.subr.mxu0 0.0
  %3962 = vmatpush1.msra.mxu0 0.0
  %3963 = vmatprep.subr.mxu0 0.0
  %3964 = vmatpush1.msra.mxu0 0.0
  %3965 = vmatprep.subr.mxu0 0.0
  %3966 = vmatpush1.msra.mxu0 0.0
  %3967 = vmatprep.subr.mxu0 0.0
  %3968 = vmatpush1.msra.mxu0 0.0
  %3969 = vmatprep.subr.mxu0 0.0
  %3970 = vmatpush1.msra.mxu0 0.0
  %3971 = vmatprep.subr.mxu0 0.0
  %3972 = vmatpush1.msra.mxu0 0.0
  %3973 = vmatprep.subr.mxu0 0.0
  %3974 = vmatpush1.msra.mxu0 0.0
  %3975 = vmatprep.subr.mxu0 0.0
  %3976 = vmatpush1.msra.mxu0 0.0
  %3977 = vmatprep.subr.mxu0 0.0
  %3978 = vmatpush1.msra.mxu0 0.0
  %3979 = vmatprep.subr.mxu0 0.0
  %3980 = vmatpush1.msra.mxu0 0.0
  %3981 = vmatprep.subr.mxu0 0.0
  %3982 = vmatpush1.msra.mxu0 0.0
  %3983 = vmatprep.subr.mxu0 0.0
  %3984 = vmatpush1.msra.mxu0 0.0
  %3985 = vmatprep.mubr.f32.mxu0 0.0
  %3986 = vmatmul.mubr.f32.gmra.mrb[0].mxu0 %v3856
  %v3987 = vpop.f32.mrb[0].mxu0
  %v3988 = vadd.f32 0.0, %v3987
  %v3989 = vpop.f32.mrb[0].mxu0
  %v3990 = vadd.f32 0.0, %v3989
  %3991 = vdwg.mxu0
  %3992 = vmatprep.subr.mxu0 %v3860
  %3993 = vmatpush1.msra.mxu0 %v3859
  %3994 = vmatprep.subr.mxu0 %v3864
  %3995 = vmatpush1.msra.mxu0 %v3863
  %3996 = vmatprep.subr.mxu0 %v3868
  %3997 = vmatpush1.msra.mxu0 %v3867
  %3998 = vmatprep.subr.mxu0 %v3872
  %3999 = vmatpush1.msra.mxu0 %v3871
  %4000 = vmatprep.subr.mxu0 %v3876
  %4001 = vmatpush1.msra.mxu0 %v3875
  %4002 = vmatprep.subr.mxu0 %v3880
  %4003 = vmatpush1.msra.mxu0 %v3879
  %4004 = vmatprep.subr.mxu0 %v3884
  %4005 = vmatpush1.msra.mxu0 %v3883
  %4006 = vmatprep.subr.mxu0 %v3888
  %4007 = vmatpush1.msra.mxu0 %v3887
  %4008 = vmatprep.subr.mxu0 %v3892
  %4009 = vmatpush1.msra.mxu0 %v3891
  %4010 = vmatprep.subr.mxu0 %v3896
  %4011 = vmatpush1.msra.mxu0 %v3895
  %4012 = vmatprep.subr.mxu0 %v3900
  %4013 = vmatpush1.msra.mxu0 %v3899
  %4014 = vmatprep.subr.mxu0 %v3904
  %4015 = vmatpush1.msra.mxu0 %v3903
  %4016 = vmatprep.subr.mxu0 %v3908
  %4017 = vmatpush1.msra.mxu0 %v3907
  %4018 = vmatprep.subr.mxu0 %v3912
  %4019 = vmatpush1.msra.mxu0 %v3911
  %4020 = vmatprep.subr.mxu0 %v3916
  %4021 = vmatpush1.msra.mxu0 %v3915
  %4022 = vmatprep.subr.mxu0 %v3920
  %4023 = vmatpush1.msra.mxu0 %v3919
  %4024 = vmatprep.subr.mxu0 0.0
  %4025 = vmatpush1.msra.mxu0 0.0
  %4026 = vmatprep.subr.mxu0 0.0
  %4027 = vmatpush1.msra.mxu0 0.0
  %4028 = vmatprep.subr.mxu0 0.0
  %4029 = vmatpush1.msra.mxu0 0.0
  %4030 = vmatprep.subr.mxu0 0.0
  %4031 = vmatpush1.msra.mxu0 0.0
  %4032 = vmatprep.subr.mxu0 0.0
  %4033 = vmatpush1.msra.mxu0 0.0
  %4034 = vmatprep.subr.mxu0 0.0
  %4035 = vmatpush1.msra.mxu0 0.0
  %4036 = vmatprep.subr.mxu0 0.0
  %4037 = vmatpush1.msra.mxu0 0.0
  %4038 = vmatprep.subr.mxu0 0.0
  %4039 = vmatpush1.msra.mxu0 0.0
  %4040 = vmatprep.subr.mxu0 0.0
  %4041 = vmatpush1.msra.mxu0 0.0
  %4042 = vmatprep.subr.mxu0 0.0
  %4043 = vmatpush1.msra.mxu0 0.0
  %4044 = vmatprep.subr.mxu0 0.0
  %4045 = vmatpush1.msra.mxu0 0.0
  %4046 = vmatprep.subr.mxu0 0.0
  %4047 = vmatpush1.msra.mxu0 0.0
  %4048 = vmatprep.subr.mxu0 0.0
  %4049 = vmatpush1.msra.mxu0 0.0
  %4050 = vmatprep.subr.mxu0 0.0
  %4051 = vmatpush1.msra.mxu0 0.0
  %4052 = vmatprep.subr.mxu0 0.0
  %4053 = vmatpush1.msra.mxu0 0.0
  %4054 = vmatprep.subr.mxu0 0.0
  %4055 = vmatpush1.msra.mxu0 0.0
  %4056 = vmatprep.mubr.f32.mxu0 0.0
  %4057 = vmatmul.mubr.f32.gmra.mrb[0].mxu0 %v3856
  %v4058 = vpop.f32.mrb[0].mxu0
  %v4059 = vadd.f32 0.0, %v4058
  %v4060 = vpop.f32.mrb[0].mxu0
  %v4061 = vadd.f32 0.0, %v4060
  %4062 = vdwg.mxu0
  %v4067 = vrot.slane %v3988, 2
  %v4068 = vrot.slane %v3990, 2
  %v4069 = vrot.slane %v4059, 2
  %v4070 = vrot.slane %v4061, 2
  %v4075 = vadd.f32 %v3852, %v4067
  %v4076 = vadd.f32 %v3853, %v4068
  %v4077 = vadd.f32 %v3854, %v4069
  %v4078 = vadd.f32 %v3855, %v4070
  %v4079 = vxor.u32 %v4075, 2147483648
  %v4080 = vmul.f32 %v4079, 1.442695
  %v4081 = vpow.pop %v4080
  %v4082 = vadd.f32 %v4081, 1.0
  %v4083 = vrcp.pop %v4082
  %v4084 = vmul.f32 1.0, %v4083
  %v4085 = vxor.u32 %v4076, 2147483648
  %v4086 = vmul.f32 %v4085, 1.442695
  %v4087 = vpow.pop %v4086
  %v4088 = vadd.f32 %v4087, 1.0
  %v4089 = vrcp.pop %v4088
  %v4090 = vmul.f32 1.0, %v4089
  %v4091 = vtanh.pop %v4077
  %v4092 = vxor.u32 %v4078, 2147483648
  %v4093 = vmul.f32 %v4092, 1.442695
  %v4094 = vpow.pop %v4093
  %v4095 = vadd.f32 %v4094, 1.0
  %v4096 = vrcp.pop %v4095
  %v4097 = vmul.f32 1.0, %v4096
  %v4098 = vld [vmem:[#allocation6] sm:$0x3]
  %v4100 = vrot.slane %v4098, 2
  %v4102 = vmul.f32 %v4090, %v4100
  %v4103 = vmul.f32 %v4084, %v4091
  %v4104 = vadd.f32 %v4102, %v4103
  %v4105 = vtanh.pop %v4104
  %v4106 = vmul.f32 %v4097, %v4105
  %4107 = vst [vmem:[#allocation6 - $0x6] sm:$0xc0] %v4104
  %4108 = vst [vmem:[#allocation5 - $0x6] sm:$0xc0] %v4106
  %4109 = vst [vmem:[#allocation3 + $0x8] sm:$0xc0] %v4106
  %4110 = vst [vmem:[#allocation4 - $0x6] sm:$0xc0] %v4106
  %v4111 = vlaneseq
  %v4112 = vand.u32 %v4111, 127
  %vm4113 = vcmp.lt.s32.totalorder %v4112, 64
  %v4114 = vld [vmem:[#allocation3] sm:$0xff]
  %v4115 = vld [vmem:[#allocation3 + $0x8] sm:$0xff]
  %v4116 = vld [vmem:[#allocation4] sm:$0xff]
  %v4117 = vld [vmem:[#allocation4 + $0x8] sm:$0xff]
  %v4118 = vsel %vm4113, %v4114, %v4116
  %v4119 = vsel %vm4113, %v4115, %v4117
  %v4120 = vld [vmem:[%s4] sm:$0xff]
  %v4121 = vld [vmem:[%s4 + $0x8] sm:$0xff]
  %v4122 = vld [vmem:[%s4 + $0x10] sm:$0xff]
  %v4123 = vld [vmem:[%s4 + $0x18] sm:$0xff]
  %v4124 = vld [vmem:[%s4 + $0x20] sm:$0xff]
  %v4125 = vld [vmem:[%s4 + $0x28] sm:$0xff]
  %v4126 = vld [vmem:[%s4 + $0x30] sm:$0xff]
  %v4127 = vld [vmem:[%s4 + $0x38] sm:$0xff]
  %v4128 = vld [vmem:[%s4 + $0x40] sm:$0xff]
  %v4129 = vld [vmem:[%s4 + $0x48] sm:$0xff]
  %v4130 = vld [vmem:[%s4 + $0x50] sm:$0xff]
  %v4131 = vld [vmem:[%s4 + $0x58] sm:$0xff]
  %v4132 = vld [vmem:[%s4 + $0x60] sm:$0xff]
  %v4133 = vld [vmem:[%s4 + $0x68] sm:$0xff]
  %v4134 = vld [vmem:[%s4 + $0x70] sm:$0xff]
  %v4135 = vld [vmem:[%s4 + $0x78] sm:$0xff]
  %v4136 = vld [vmem:[%s5] sm:$0x1]
  %v4138 = vlaneseq
  %v4139 = vshrl.u32 %v4138, 7
  %v4140 = vsub.s32 0, %v4139
  %v4141 = vrot.slane %v4136, %v4140
  %4143 = vmatprep.subr.mxu0 0.0
  %4144 = vmatpush1.msra.mxu0 %v4120
  %4145 = vmatprep.subr.mxu0 0.0
  %4146 = vmatpush1.msra.mxu0 %v4121
  %4147 = vmatprep.subr.mxu0 0.0
  %4148 = vmatpush1.msra.mxu0 %v4122
  %4149 = vmatprep.subr.mxu0 0.0
  %4150 = vmatpush1.msra.mxu0 %v4123
  %4151 = vmatprep.subr.mxu0 0.0
  %4152 = vmatpush1.msra.mxu0 %v4124
  %4153 = vmatprep.subr.mxu0 0.0
  %4154 = vmatpush1.msra.mxu0 %v4125
  %4155 = vmatprep.subr.mxu0 0.0
  %4156 = vmatpush1.msra.mxu0 %v4126
  %4157 = vmatprep.subr.mxu0 0.0
  %4158 = vmatpush1.msra.mxu0 %v4127
  %4159 = vmatprep.subr.mxu0 0.0
  %4160 = vmatpush1.msra.mxu0 %v4128
  %4161 = vmatprep.subr.mxu0 0.0
  %4162 = vmatpush1.msra.mxu0 %v4129
  %4163 = vmatprep.subr.mxu0 0.0
  %4164 = vmatpush1.msra.mxu0 %v4130
  %4165 = vmatprep.subr.mxu0 0.0
  %4166 = vmatpush1.msra.mxu0 %v4131
  %4167 = vmatprep.subr.mxu0 0.0
  %4168 = vmatpush1.msra.mxu0 %v4132
  %4169 = vmatprep.subr.mxu0 0.0
  %4170 = vmatpush1.msra.mxu0 %v4133
  %4171 = vmatprep.subr.mxu0 0.0
  %4172 = vmatpush1.msra.mxu0 %v4134
  %4173 = vmatprep.subr.mxu0 0.0
  %4174 = vmatpush1.msra.mxu0 %v4135
  %4175 = vmatprep.subr.mxu0 0.0
  %4176 = vmatpush1.msra.mxu0 0.0
  %4177 = vmatprep.subr.mxu0 0.0
  %4178 = vmatpush1.msra.mxu0 0.0
  %4179 = vmatprep.subr.mxu0 0.0
  %4180 = vmatpush1.msra.mxu0 0.0
  %4181 = vmatprep.subr.mxu0 0.0
  %4182 = vmatpush1.msra.mxu0 0.0
  %4183 = vmatprep.subr.mxu0 0.0
  %4184 = vmatpush1.msra.mxu0 0.0
  %4185 = vmatprep.subr.mxu0 0.0
  %4186 = vmatpush1.msra.mxu0 0.0
  %4187 = vmatprep.subr.mxu0 0.0
  %4188 = vmatpush1.msra.mxu0 0.0
  %4189 = vmatprep.subr.mxu0 0.0
  %4190 = vmatpush1.msra.mxu0 0.0
  %4191 = vmatprep.subr.mxu0 0.0
  %4192 = vmatpush1.msra.mxu0 0.0
  %4193 = vmatprep.subr.mxu0 0.0
  %4194 = vmatpush1.msra.mxu0 0.0
  %4195 = vmatprep.subr.mxu0 0.0
  %4196 = vmatpush1.msra.mxu0 0.0
  %4197 = vmatprep.subr.mxu0 0.0
  %4198 = vmatpush1.msra.mxu0 0.0
  %4199 = vmatprep.subr.mxu0 0.0
  %4200 = vmatpush1.msra.mxu0 0.0
  %4201 = vmatprep.subr.mxu0 0.0
  %4202 = vmatpush1.msra.mxu0 0.0
  %4203 = vmatprep.subr.mxu0 0.0
  %4204 = vmatpush1.msra.mxu0 0.0
  %4205 = vmatprep.subr.mxu0 0.0
  %4206 = vmatpush1.msra.mxu0 0.0
  %4207 = vmatprep.mubr.f32.mxu0 0.0
  %4208 = vmatmul.mubr.f32.gmra.mrb[0].mxu0 %v4118
  %v4209 = vpop.f32.mrb[0].mxu0
  %v4210 = vadd.f32 %v4141, %v4209
  %v4211 = vpop.f32.mrb[0].mxu0
  %4212 = vmatprep.mubr.f32.mxu0 0.0
  %4213 = vmatmul.mubr.f32.gmra.mrb[0].mxu0 %v4119
  %v4214 = vpop.f32.mrb[0].mxu0
  %v4215 = vadd.f32 %v4141, %v4214
  %v4216 = vpop.f32.mrb[0].mxu0
  %4217 = vdwg.mxu0
  %vm4218 = vcmask 261120
  %v4219 = vsel %vm4218, %v4210, 0.0
  %4220 = vadd.xlane.f32.xlu0 %v4219
  %v4221 = vpop.xlane.xlu0 %4220
  %v4222 = vsel %vm4218, %v4215, 0.0
  %4223 = vadd.xlane.f32.xlu0 %v4222
  %v4224 = vpop.xlane.xlu0 %4223
  %v4225 = vrcp.pop 32.0
  %v4226 = vmul.f32 %v4221, %v4225
  %v4227 = vmul.f32 %v4224, %v4225
  %v4228 = vsub.f32 %v4210, %v4226
  %v4229 = vsub.f32 %v4215, %v4227
  %v4230 = vmul.f32 %v4228, %v4228
  %v4231 = vmul.f32 %v4229, %v4229
  %v4232 = vsel %vm4218, %v4230, 0.0
  %4233 = vadd.xlane.f32.xlu0 %v4232
  %v4234 = vpop.xlane.xlu0 %4233
  %v4235 = vsel %vm4218, %v4231, 0.0
  %4236 = vadd.xlane.f32.xlu0 %v4235
  %v4237 = vpop.xlane.xlu0 %4236
  %v4238 = vmul.f32 %v4234, %v4225
  %v4239 = vmul.f32 %v4237, %v4225
  %v4240 = vadd.f32 %v4238, 1e-05
  %v4241 = vadd.f32 %v4239, 1e-05
  %v4242 = vrsqrt.pop %v4240
  %v4243 = vrsqrt.pop %v4241
  %v4244 = vmul.f32 %v4228, %v4242
  %v4245 = vmul.f32 %v4229, %v4243
  %v4246 = vld [vmem:[%s6] sm:$0x1]
  %v4248 = vlaneseq
  %v4249 = vshrl.u32 %v4248, 7
  %v4250 = vsub.s32 0, %v4249
  %v4251 = vrot.slane %v4246, %v4250
  %v4253 = vmul.f32 %v4244, %v4251
  %v4254 = vmul.f32 %v4245, %v4251
  %v4255 = vld [vmem:[%s7] sm:$0x1]
  %v4257 = vlaneseq
  %v4258 = vshrl.u32 %v4257, 7
  %v4259 = vsub.s32 0, %v4258
  %v4260 = vrot.slane %v4255, %v4259
  %v4262 = vadd.f32 %v4253, %v4260
  %v4263 = vadd.f32 %v4254, %v4260
  %v4264 = vmax.f32 %v4262, 0.0
  %v4265 = vmax.f32 %v4263, 0.0
  %v4266 = vld [vmem:[%s8] sm:$0xff]
  %v4267 = vld [vmem:[%s8 + $0x8] sm:$0xff]
  %v4268 = vld [vmem:[%s8 + $0x10] sm:$0xff]
  %v4269 = vld [vmem:[%s8 + $0x18] sm:$0xff]
  %v4270 = vld [vmem:[%s9] sm:$0x1]
  %v4272 = vlaneseq
  %v4273 = vshrl.u32 %v4272, 7
  %v4274 = vsub.s32 0, %v4273
  %v4275 = vrot.slane %v4270, %v4274
  %v4278 = vsel %vm4218, %v4264, 0
  %v4281 = vsel %vm4218, %v4265, 0
  %4283 = vmatprep.subr.mxu0 0.0
  %4284 = vmatpush1.msra.mxu0 %v4266
  %4285 = vmatprep.subr.mxu0 0.0
  %4286 = vmatpush1.msra.mxu0 %v4267
  %4287 = vmatprep.subr.mxu0 0.0
  %4288 = vmatpush1.msra.mxu0 %v4268
  %4289 = vmatprep.subr.mxu0 0.0
  %4290 = vmatpush1.msra.mxu0 %v4269
  %4291 = vmatprep.subr.mxu0 0.0
  %4292 = vmatpush1.msra.mxu0 0.0
  %4293 = vmatprep.subr.mxu0 0.0
  %4294 = vmatpush1.msra.mxu0 0.0
  %4295 = vmatprep.subr.mxu0 0.0
  %4296 = vmatpush1.msra.mxu0 0.0
  %4297 = vmatprep.subr.mxu0 0.0
  %4298 = vmatpush1.msra.mxu0 0.0
  %4299 = vmatprep.subr.mxu0 0.0
  %4300 = vmatpush1.msra.mxu0 0.0
  %4301 = vmatprep.subr.mxu0 0.0
  %4302 = vmatpush1.msra.mxu0 0.0
  %4303 = vmatprep.subr.mxu0 0.0
  %4304 = vmatpush1.msra.mxu0 0.0
  %4305 = vmatprep.subr.mxu0 0.0
  %4306 = vmatpush1.msra.mxu0 0.0
  %4307 = vmatprep.subr.mxu0 0.0
  %4308 = vmatpush1.msra.mxu0 0.0
  %4309 = vmatprep.subr.mxu0 0.0
  %4310 = vmatpush1.msra.mxu0 0.0
  %4311 = vmatprep.subr.mxu0 0.0
  %4312 = vmatpush1.msra.mxu0 0.0
  %4313 = vmatprep.subr.mxu0 0.0
  %4314 = vmatpush1.msra.mxu0 0.0
  %4315 = vmatprep.subr.mxu0 0.0
  %4316 = vmatpush1.msra.mxu0 0.0
  %4317 = vmatprep.subr.mxu0 0.0
  %4318 = vmatpush1.msra.mxu0 0.0
  %4319 = vmatprep.subr.mxu0 0.0
  %4320 = vmatpush1.msra.mxu0 0.0
  %4321 = vmatprep.subr.mxu0 0.0
  %4322 = vmatpush1.msra.mxu0 0.0
  %4323 = vmatprep.subr.mxu0 0.0
  %4324 = vmatpush1.msra.mxu0 0.0
  %4325 = vmatprep.subr.mxu0 0.0
  %4326 = vmatpush1.msra.mxu0 0.0
  %4327 = vmatprep.subr.mxu0 0.0
  %4328 = vmatpush1.msra.mxu0 0.0
  %4329 = vmatprep.subr.mxu0 0.0
  %4330 = vmatpush1.msra.mxu0 0.0
  %4331 = vmatprep.subr.mxu0 0.0
  %4332 = vmatpush1.msra.mxu0 0.0
  %4333 = vmatprep.subr.mxu0 0.0
  %4334 = vmatpush1.msra.mxu0 0.0
  %4335 = vmatprep.subr.mxu0 0.0
  %4336 = vmatpush1.msra.mxu0 0.0
  %4337 = vmatprep.subr.mxu0 0.0
  %4338 = vmatpush1.msra.mxu0 0.0
  %4339 = vmatprep.subr.mxu0 0.0
  %4340 = vmatpush1.msra.mxu0 0.0
  %4341 = vmatprep.subr.mxu0 0.0
  %4342 = vmatpush1.msra.mxu0 0.0
  %4343 = vmatprep.subr.mxu0 0.0
  %4344 = vmatpush1.msra.mxu0 0.0
  %4345 = vmatprep.subr.mxu0 0.0
  %4346 = vmatpush1.msra.mxu0 0.0
  %4347 = vmatprep.mubr.f32.mxu0 0.0
  %4348 = vmatmul.mubr.f32.gmra.mrb[0].mxu0 %v4278
  %v4349 = vpop.f32.mrb[0].mxu0
  %v4350 = vadd.f32 %v4275, %v4349
  %v4351 = vpop.f32.mrb[0].mxu0
  %4352 = vmatprep.mubr.f32.mxu0 0.0
  %4353 = vmatmul.mubr.f32.gmra.mrb[0].mxu0 %v4281
  %v4354 = vpop.f32.mrb[0].mxu0
  %v4355 = vadd.f32 %v4275, %v4354
  %v4356 = vpop.f32.mrb[0].mxu0
  %4357 = vdwg.mxu0
  %vm4358 = vcmask 31744
  %4359 = vst.msk [vmem:[%s10] sm:$0xff] %vm4358, %v4350
  %4360 = vst.msk [vmem:[%s10 + $0x8] sm:$0xff] %vm4358, %v4355
  // Predicated region
  $region42: #{model_forward.1} parent=0 // pred_check
    _
  $region43: #{model_forward.1} parent=0 // pred_check_branch
    %4362 = sbr.rel (0) target = $region45
  $region44: #{model_forward.1} parent=0 // pred_region
    _
  $region45: #{model_forward.1} parent=0 // pred_fallthru
    _
  // Predicated region
  $region46: #{model_forward.1} parent=0 // pred_check
    _
  $region47: #{model_forward.1} parent=0 // pred_check_branch
    %4364 = sbr.rel (0) target = $region49
  $region48: #{model_forward.1} parent=0 // pred_region
    _
  $region49: #{model_forward.1} parent=0 // pred_fallthru
    _

</llo_original>
